<compile_context>
chip_gen: v7x
topology: tpu7x:2x2x1
jax: 0.10.0
libtpu: 0.0.40
codegen_flags: <defaults>
</compile_context>

<pallas_src>
import functools
import math

import jax
import jax.numpy as jnp
import numpy as np
from jax.experimental import pallas as pl
from jax.experimental.pallas import tpu as pltpu


# ----------------------------- in-kernel helpers -----------------------------

def _erf(x):
    # Abramowitz & Stegun 7.1.26 polynomial (|err| < 1.5e-7). Kept instead of
    # jax.lax.erf because erf has no guaranteed Mosaic lowering; the exp() goes to
    # the EUP slot and this preserves torch's exact (erf) GELU semantics.
    a1, a2, a3, a4, a5 = 0.254829592, -0.284496736, 1.421413741, -1.453152027, 1.061405429
    p = 0.3275911
    s = jnp.where(x >= 0.0, 1.0, -1.0)
    z = jnp.abs(x)
    t = 1.0 / (1.0 + p * z)
    poly = ((((a5 * t + a4) * t + a3) * t + a2) * t + a1) * t
    return s * (1.0 - poly * jnp.exp(-z * z))


def _gelu_exact(x):
    # TODO(synk): swap for tanh-approx GELU (single EUP tanh) if VALU is the
    #             binding slot at real MLP sizes and the ~1e-3 deviation is OK.
    return 0.5 * x * (1.0 + _erf(x * (1.0 / math.sqrt(2.0))))


def _layer_norm(x, w, b, eps=1e-6):
    # Fused statistics: one pass for sum and sum-of-squares, var = E[x^2] - mean^2
    # (biased variance, matching torch.nn.LayerNorm; eps=1e-6 per the Block spec).
    inv_n = 1.0 / x.shape[-1]
    s1 = jnp.sum(x, axis=-1, keepdims=True)
    s2 = jnp.sum(x * x, axis=-1, keepdims=True)
    mean = s1 * inv_n
    var = jnp.maximum(s2 * inv_n - mean * mean, 0.0)
    return (x - mean) * jax.lax.rsqrt(var + eps) * w + b


# --------------------------------- the kernel --------------------------------

def block_kernel(num_heads,
                 x_ref,
                 ln1_w_ref, ln1_b_ref,
                 wqkv_ref, bqkv_ref,
                 wo_ref, bo_ref,
                 ln2_w_ref, ln2_b_ref,
                 w1_ref, b1_ref, w2_ref, b2_ref,
                 out_ref, *attn_w_refs):
    bb, S, D = x_ref.shape
    H = num_heads
    dh = D // H

    # Fold the batch block into the token axis (leading-dim reshape: free).
    xf = x_ref[...].reshape(bb * S, D)

    # ---- attention sub-block (pre-LN + residual) ----
    # 1/sqrt(dh) is pre-folded into the Q columns of wqkv / bqkv by the wrapper.
    xn = _layer_norm(xf, ln1_w_ref[0], ln1_b_ref[0])
    qkv = jnp.dot(xn.astype(jnp.bfloat16), wqkv_ref[...],
                  preferred_element_type=jnp.float32) + bqkv_ref[0]
    q, k, v = qkv[:, :D], qkv[:, D:2 * D], qkv[:, 2 * D:]

    def to_heads(t):
        # (bb*S, D) f32 -> (bb*H, S, dh) bf16, (batch, head) flattened & leading.
        t = pltpu.einshape("bshd->bhsd", t.reshape(bb, S, H, dh))
        return t.reshape(bb * H, S, dh).astype(jnp.bfloat16)

    qh, kh, vh = to_heads(q), to_heads(k), to_heads(v)

    scores = jnp.einsum('gqd,gkd->gqk', qh, kh,
                        preferred_element_type=jnp.float32)          # (bb*H, S, S)
    m = jnp.max(scores, axis=-1, keepdims=True)
    e = jnp.exp(scores - m)
    denom = jnp.sum(e, axis=-1, keepdims=True)
    probs = e * pl.reciprocal(denom, approx=True)                    # EUP reciprocal
    # NOTE: approx reciprocal => rows sum to 1 only to ~2e-4 rel; fine for attn_vis.

    if attn_w_refs:                                                  # optional output
        attn_w_refs[0][...] = probs.reshape(bb, H, S, S)

    ctx = jnp.einsum('gqk,gkd->gqd', probs.astype(jnp.bfloat16), vh,
                     preferred_element_type=jnp.float32)             # (bb*H, S, dh)
    ctx = ctx.reshape(bb, H, S, dh)

    # Output projection without the 'hsd->shd' XLU transpose: accumulate per-head
    # (bb*S, dh) x (dh, D) matmuls against wo reshaped to (H, dh, D) in the wrapper.
    # TODO(synk): verify MXU vs XLU occupancy in the bundle dump at ViT sizes
    #             (trade-off: H matmuls of contraction depth dh).
    acc = None
    for h in range(H):
        ch = ctx[:, h].reshape(bb * S, dh).astype(jnp.bfloat16)
        ph = jnp.dot(ch, wo_ref[h], preferred_element_type=jnp.float32)
        acc = ph if acc is None else acc + ph
    x1 = acc + bo_ref[0] + xf                                        # residual

    # ---- MLP sub-block (pre-LN + residual) ----
    xn2 = _layer_norm(x1, ln2_w_ref[0], ln2_b_ref[0])
    f = jnp.dot(xn2.astype(jnp.bfloat16), w1_ref[...],
                preferred_element_type=jnp.float32) + b1_ref[0]
    f = _gelu_exact(f)
    g = jnp.dot(f.astype(jnp.bfloat16), w2_ref[...],
                preferred_element_type=jnp.float32) + b2_ref[0]
    out_ref[...] = (g + x1).reshape(bb, S, D).astype(out_ref.dtype)


# --------------------------------- wrapper -----------------------------------

def transformer_block(x, params, num_heads, *, return_attn_weights=True,
                      batch_block=None, single_buffer_weights=True):
    B, S, D = x.shape
    H = num_heads
    dh = D // H
    M = params['w1'].shape[1]

    if batch_block is None:
        # Fold the whole batch into one grid step when the tiles are tiny (fills
        # sublanes/lanes, avoids per-step ~0.35us overhead); one batch per step
        # otherwise.
        batch_block = B if B * S <= 512 else 1
    bb = batch_block
    assert B % bb == 0, "batch_block must divide the batch size"

    # ---- constant packing (wrapper-side layout plumbing, zero kernel cost) ----
    scale = 1.0 / math.sqrt(dh)
    wqkv = jnp.concatenate([params['wq'] * scale, params['wk'], params['wv']],
                           axis=1).astype(jnp.bfloat16)               # (D, 3D) bf16
    bqkv = jnp.concatenate([params['bq'] * scale, params['bk'], params['bv']],
                           axis=1)                                    # (1, 3D) f32
    wo_h = params['wo'].reshape(H, dh, D).astype(jnp.bfloat16)        # (H, dh, D) bf16
    w1 = params['w1'].astype(jnp.bfloat16)                            # (D, M) bf16
    w2 = params['w2'].astype(jnp.bfloat16)                            # (M, D) bf16

    consts = [params['ln1_w'], params['ln1_b'],
              wqkv, bqkv, wo_h, params['bo'],
              params['ln2_w'], params['ln2_b'],
              w1, params['b1'], w2, params['b2']]

    # ---- VMEM budget: footprint-derived, capped at 48 MiB (v7x: 64 MiB/TC) ----
    weight_bytes = sum(int(c.size) * c.dtype.itemsize for c in consts)
    rows = bb * S
    interm_elems = (rows * 3 * D + 3 * bb * H * S * dh + 3 * bb * H * S * S
                    + bb * H * S * dh + rows * (2 * D + 2 * M))
    footprint = (2 * weight_bytes                       # weights (worst case: 2 bufs)
                 + 2 * 2 * rows * D * 4                 # x + out double buffers
                 + (2 * bb * H * S * S * 4 if return_attn_weights else 0)
                 + 4 * interm_elems)                    # in-kernel intermediates
    vmem_limit = int(min(48 << 20, max(32 << 20, int(1.5 * footprint))))

    def const_spec(c, single):
        zeros = (0,) * c.ndim
        imap = lambda b, _z=zeros: _z                   # constant across the grid
        if single:
            # Single-buffer the constants to halve weight VMEM (mandatory at ViT
            # sizes on v7x's 64 MiB VMEM).
            return pl.BlockSpec(c.shape, imap, pipeline_mode=pl.Buffered(1))
        return pl.BlockSpec(c.shape, imap)

    out_shape = jax.ShapeDtypeStruct((B, S, D), x.dtype)
    out_spec = pl.BlockSpec((bb, S, D), lambda b: (b, 0, 0))
    if return_attn_weights:
        # TODO(synk): at real ViT sizes store attn_w in bf16 and write a lane-dense
        #             flattened (bb, H*S*S) block; kept (B,H,S,S) f32 here for exact
        #             parity with the PyTorch module's returned weights.
        out_shape = (out_shape, jax.ShapeDtypeStruct((B, H, S, S), jnp.float32))
        out_spec = (out_spec, pl.BlockSpec((bb, H, S, S), lambda b: (b, 0, 0, 0)))

    def run(single):
        in_specs = [pl.BlockSpec((bb, S, D), lambda b: (b, 0, 0))]
        in_specs += [const_spec(c, single) for c in consts]
        return pl.pallas_call(
            functools.partial(block_kernel, H),
            grid=(B // bb,),
            in_specs=in_specs,
            out_specs=out_spec,
            out_shape=out_shape,
            compiler_params=pltpu.CompilerParams(
                dimension_semantics=("parallel",),      # batch blocks independent
                vmem_limit_bytes=vmem_limit),
        )(x, *consts)

    if single_buffer_weights:
        try:
            result = run(True)
        except Exception:  # noqa: BLE001
            # Capability fallback only for Pallas builds that reject single-buffered
            # (pipeline_mode=Buffered(1)) constant specs. Any genuine kernel /
            # lowering error reproduces in run(False) and propagates from there,
            # so real bugs are never silently masked.
            result = run(False)
    else:
        result = run(False)

    if return_attn_weights:
        return result[0], result[1]
    return result, None


# ----------------------- deterministic parameter init ------------------------

def init_params(key, D, M):
    ks = jax.random.split(key, 8)

    def torch_linear(k, fan_in, fan_out):
        # torch.nn.Linear default: U(-1/sqrt(fan_in), 1/sqrt(fan_in)) for W and b.
        kw, kb = jax.random.split(k)
        bound = 1.0 / math.sqrt(fan_in)
        w = jax.random.uniform(kw, (fan_in, fan_out), jnp.float32, -bound, bound)
        b = jax.random.uniform(kb, (1, fan_out), jnp.float32, -bound, bound)
        return w, b

    def xavier_linear(k, fan_in, fan_out):
        # Mlp._init_weights: xavier_uniform weight, normal(std=1e-6) bias.
        kw, kb = jax.random.split(k)
        bound = math.sqrt(6.0 / (fan_in + fan_out))
        w = jax.random.uniform(kw, (fan_in, fan_out), jnp.float32, -bound, bound)
        b = 1e-6 * jax.random.normal(kb, (1, fan_out), jnp.float32)
        return w, b

    wq, bq = torch_linear(ks[0], D, D)
    wk, bk = torch_linear(ks[1], D, D)
    wv, bv = torch_linear(ks[2], D, D)
    wo, bo = torch_linear(ks[3], D, D)
    w1, b1 = xavier_linear(ks[4], D, M)
    w2, b2 = xavier_linear(ks[5], M, D)

    return dict(
        ln1_w=jnp.ones((1, D), jnp.float32), ln1_b=jnp.zeros((1, D), jnp.float32),
        wq=wq, bq=bq, wk=wk, bk=bk, wv=wv, bv=bv, wo=wo, bo=bo,
        ln2_w=jnp.ones((1, D), jnp.float32), ln2_b=jnp.zeros((1, D), jnp.float32),
        w1=w1, b1=b1, w2=w2, b2=b2,
    )


# --------------------------- pure-JAX reference -------------------------------

def block_reference(x, p, num_heads):
    hp = jax.lax.Precision.HIGHEST

    def ln(y, w, b):
        mean = jnp.mean(y, -1, keepdims=True)
        var = jnp.mean((y - mean) ** 2, -1, keepdims=True)
        return (y - mean) / jnp.sqrt(var + 1e-6) * w[0] + b[0]

    B, S, D = x.shape
    dh = D // num_heads
    h = x
    xn = ln(x, p['ln1_w'], p['ln1_b'])
    q = jnp.dot(xn, p['wq'], precision=hp) + p['bq'][0]
    k = jnp.dot(xn, p['wk'], precision=hp) + p['bk'][0]
    v = jnp.dot(xn, p['wv'], precision=hp) + p['bv'][0]
    qh = q.reshape(B, S, num_heads, dh).transpose(0, 2, 1, 3)
    kh = k.reshape(B, S, num_heads, dh).transpose(0, 2, 1, 3)
    vh = v.reshape(B, S, num_heads, dh).transpose(0, 2, 1, 3)
    scores = jnp.einsum('bhqd,bhkd->bhqk', qh, kh, precision=hp) / math.sqrt(dh)
    probs = jax.nn.softmax(scores, axis=-1)
    ctx = jnp.einsum('bhqk,bhkd->bhqd', probs, vh, precision=hp)
    ctx = ctx.transpose(0, 2, 1, 3).reshape(B, S, D)
    attn_out = jnp.dot(ctx, p['wo'], precision=hp) + p['bo'][0]
    x1 = attn_out + h

    xn2 = ln(x1, p['ln2_w'], p['ln2_b'])
    f = jnp.dot(xn2, p['w1'], precision=hp) + p['b1'][0]
    f = jax.nn.gelu(f, approximate=False)
    y = jnp.dot(f, p['w2'], precision=hp) + p['b2'][0]
    return y + x1, probs


# ----------------------------------- main --------------------------------------

if __name__ == "__main__":
    B, S, D, H, M = 2, 8, 32, 4, 64   # batch, seq, hidden_size, num_heads, mlp_dim
    key = jax.random.PRNGKey(0)
    k_x, k_p = jax.random.split(key)
    x = jax.random.normal(k_x, (B, S, D), jnp.float32)
    params = init_params(k_p, D, M)

    # Variant 1: attn_vis=True (returns attention probabilities).
    out, attn_w = transformer_block(x, params, H, return_attn_weights=True)
    out = jax.block_until_ready(out)
    attn_w = jax.block_until_ready(attn_w)

    # Variant 2: no attention-probability output (drops the (B,H,S,S) HBM write).
    out2, none_w = transformer_block(x, params, H, return_attn_weights=False)
    out2 = jax.block_until_ready(out2)
    assert none_w is None

    ref_out, ref_w = block_reference(x, params, H)
    # Tolerances absorb bf16 MXU operands (f32 accumulation) and the EUP
    # approx-reciprocal in the softmax; reference is f32 at HIGHEST precision.
    np.testing.assert_allclose(np.asarray(out), np.asarray(ref_out), atol=3e-2, rtol=3e-2)
    np.testing.assert_allclose(np.asarray(out2), np.asarray(ref_out), atol=3e-2, rtol=3e-2)
    np.testing.assert_allclose(np.asarray(attn_w), np.asarray(ref_w), atol=2e-2, rtol=2e-2)

    print("KERNEL_OK")
</pallas_src>

<mosaic_0001>
module attributes {stable_mosaic.version = 11 : i64} {
  func.func @block_kernel(%arg0: i32, %arg1: memref<2x8x32xf32, #tpu.memory_space<vmem>>, %arg2: memref<1x32xf32, #tpu.memory_space<vmem>>, %arg3: memref<1x32xf32, #tpu.memory_space<vmem>>, %arg4: memref<32x96xbf16, #tpu.memory_space<vmem>>, %arg5: memref<1x96xf32, #tpu.memory_space<vmem>>, %arg6: memref<4x8x32xbf16, #tpu.memory_space<vmem>>, %arg7: memref<1x32xf32, #tpu.memory_space<vmem>>, %arg8: memref<1x32xf32, #tpu.memory_space<vmem>>, %arg9: memref<1x32xf32, #tpu.memory_space<vmem>>, %arg10: memref<32x64xbf16, #tpu.memory_space<vmem>>, %arg11: memref<1x64xf32, #tpu.memory_space<vmem>>, %arg12: memref<64x32xbf16, #tpu.memory_space<vmem>>, %arg13: memref<1x32xf32, #tpu.memory_space<vmem>>, %arg14: memref<2x8x32xf32, #tpu.memory_space<vmem>>, %arg15: memref<2x4x8x8xf32, #tpu.memory_space<vmem>>) attributes {dimension_semantics = [#tpu.dimension_semantics<parallel>], iteration_bounds = array<i64: 1>, scalar_prefetch = 0 : i64, scratch_operands = 0 : i64, tpu.core_type = #tpu.core_type<tc>, window_params = [{transform_indices = @transform_0, window_bounds = array<i64: 2, 8, 32>}, {pipeline_mode = #tpu.pipeline_mode<synchronous>, transform_indices = @transform_1, window_bounds = array<i64: 1, 32>}, {pipeline_mode = #tpu.pipeline_mode<synchronous>, transform_indices = @transform_2, window_bounds = array<i64: 1, 32>}, {pipeline_mode = #tpu.pipeline_mode<synchronous>, transform_indices = @transform_3, window_bounds = array<i64: 32, 96>}, {pipeline_mode = #tpu.pipeline_mode<synchronous>, transform_indices = @transform_4, window_bounds = array<i64: 1, 96>}, {pipeline_mode = #tpu.pipeline_mode<synchronous>, transform_indices = @transform_5, window_bounds = array<i64: 4, 8, 32>}, {pipeline_mode = #tpu.pipeline_mode<synchronous>, transform_indices = @transform_6, window_bounds = array<i64: 1, 32>}, {pipeline_mode = #tpu.pipeline_mode<synchronous>, transform_indices = @transform_7, window_bounds = array<i64: 1, 32>}, {pipeline_mode = #tpu.pipeline_mode<synchronous>, transform_indices = @transform_8, window_bounds = array<i64: 1, 32>}, {pipeline_mode = #tpu.pipeline_mode<synchronous>, transform_indices = @transform_9, window_bounds = array<i64: 32, 64>}, {pipeline_mode = #tpu.pipeline_mode<synchronous>, transform_indices = @transform_10, window_bounds = array<i64: 1, 64>}, {pipeline_mode = #tpu.pipeline_mode<synchronous>, transform_indices = @transform_11, window_bounds = array<i64: 64, 32>}, {pipeline_mode = #tpu.pipeline_mode<synchronous>, transform_indices = @transform_12, window_bounds = array<i64: 1, 32>}, {transform_indices = @transform_13, window_bounds = array<i64: 2, 8, 32>}, {transform_indices = @transform_14, window_bounds = array<i64: 2, 4, 8, 8>}]} {
    %c0 = arith.constant 0 : index
    %c0_0 = arith.constant 0 : index
    %c0_1 = arith.constant 0 : index
    %0 = vector.load %arg1[%c0, %c0_0, %c0_1] : memref<2x8x32xf32, #tpu.memory_space<vmem>>, vector<2x8x32xf32>
    %1 = vector.shape_cast %0 : vector<2x8x32xf32> to vector<16x32xf32>
    %c0_2 = arith.constant 0 : index
    %c0_3 = arith.constant 0 : index
    %2 = vector.load %arg2[%c0_2, %c0_3] : memref<1x32xf32, #tpu.memory_space<vmem>>, vector<1x32xf32>
    %3 = vector.shape_cast %2 : vector<1x32xf32> to vector<32xf32>
    %c0_4 = arith.constant 0 : index
    %c0_5 = arith.constant 0 : index
    %4 = vector.load %arg3[%c0_4, %c0_5] : memref<1x32xf32, #tpu.memory_space<vmem>>, vector<1x32xf32>
    %5 = vector.shape_cast %4 : vector<1x32xf32> to vector<32xf32>
    %cst = arith.constant dense<0.000000e+00> : vector<16xf32>
    %6 = vector.multi_reduction <add>, %1, %cst [1] : vector<16x32xf32> to vector<16xf32>
    %7 = vector.shape_cast %6 : vector<16xf32> to vector<16x1xf32>
    %8 = arith.mulf %1, %1 : vector<16x32xf32>
    %cst_6 = arith.constant dense<0.000000e+00> : vector<16xf32>
    %9 = vector.multi_reduction <add>, %8, %cst_6 [1] : vector<16x32xf32> to vector<16xf32>
    %10 = vector.shape_cast %9 : vector<16xf32> to vector<16x1xf32>
    %cst_7 = arith.constant 3.125000e-02 : f32
    %11 = vector.broadcast %cst_7 : f32 to vector<16x1xf32>
    %12 = arith.mulf %7, %11 : vector<16x1xf32>
    %cst_8 = arith.constant 3.125000e-02 : f32
    %13 = vector.broadcast %cst_8 : f32 to vector<16x1xf32>
    %14 = arith.mulf %10, %13 : vector<16x1xf32>
    %15 = arith.mulf %12, %12 : vector<16x1xf32>
    %16 = arith.subf %14, %15 : vector<16x1xf32>
    %cst_9 = arith.constant 0.000000e+00 : f32
    %17 = vector.broadcast %cst_9 : f32 to vector<16x1xf32>
    %18 = arith.maximumf %16, %17 : vector<16x1xf32>
    %19 = vector.broadcast %12 : vector<16x1xf32> to vector<16x32xf32>
    %20 = arith.subf %1, %19 : vector<16x32xf32>
    %cst_10 = arith.constant 9.99999997E-7 : f32
    %21 = vector.broadcast %cst_10 : f32 to vector<16x1xf32>
    %22 = arith.addf %18, %21 : vector<16x1xf32>
    %23 = math.rsqrt %22 : vector<16x1xf32>
    %24 = vector.broadcast %23 : vector<16x1xf32> to vector<16x32xf32>
    %25 = arith.mulf %20, %24 : vector<16x32xf32>
    %26 = vector.shape_cast %3 : vector<32xf32> to vector<1x32xf32>
    %27 = vector.broadcast %26 : vector<1x32xf32> to vector<16x32xf32>
    %28 = arith.mulf %25, %27 : vector<16x32xf32>
    %29 = vector.shape_cast %5 : vector<32xf32> to vector<1x32xf32>
    %30 = vector.broadcast %29 : vector<1x32xf32> to vector<16x32xf32>
    %31 = arith.addf %28, %30 : vector<16x32xf32>
    %32 = arith.truncf %31 : vector<16x32xf32> to vector<16x32xbf16>
    %c0_11 = arith.constant 0 : index
    %c0_12 = arith.constant 0 : index
    %33 = vector.load %arg4[%c0_11, %c0_12] : memref<32x96xbf16, #tpu.memory_space<vmem>>, vector<32x96xbf16>
    %cst_13 = arith.constant dense<0.000000e+00> : vector<16x96xf32>
    %34 = tpu.matmul %32, %33, %cst_13 {dimension_numbers = #tpu.dot_dimension_numbers<[1], [0], [0], [1], [0, 0, 1, 1], [], []>} : vector<16x32xbf16>, vector<32x96xbf16>, vector<16x96xf32> -> vector<16x96xf32>
    %c0_14 = arith.constant 0 : index
    %c0_15 = arith.constant 0 : index
    %35 = vector.load %arg5[%c0_14, %c0_15] : memref<1x96xf32, #tpu.memory_space<vmem>>, vector<1x96xf32>
    %36 = vector.shape_cast %35 : vector<1x96xf32> to vector<96xf32>
    %37 = vector.shape_cast %36 : vector<96xf32> to vector<1x96xf32>
    %38 = vector.broadcast %37 : vector<1x96xf32> to vector<16x96xf32>
    %39 = arith.addf %34, %38 : vector<16x96xf32>
    %40 = vector.extract_strided_slice %39 {offsets = [0, 0], sizes = [16, 32], strides = [1, 1]} : vector<16x96xf32> to vector<16x32xf32>
    %41 = vector.extract_strided_slice %39 {offsets = [0, 32], sizes = [16, 32], strides = [1, 1]} : vector<16x96xf32> to vector<16x32xf32>
    %42 = vector.extract_strided_slice %39 {offsets = [0, 64], sizes = [16, 32], strides = [1, 1]} : vector<16x96xf32> to vector<16x32xf32>
    %43 = vector.shape_cast %40 : vector<16x32xf32> to vector<2x8x4x8xf32>
    %44 = tpu.transpose %43, [0, 2, 1, 3] : vector<2x8x4x8xf32> -> vector<2x4x8x8xf32>
    %45 = vector.shape_cast %44 : vector<2x4x8x8xf32> to vector<8x8x8xf32>
    %46 = arith.truncf %45 : vector<8x8x8xf32> to vector<8x8x8xbf16>
    %47 = vector.shape_cast %41 : vector<16x32xf32> to vector<2x8x4x8xf32>
    %48 = tpu.transpose %47, [0, 2, 1, 3] : vector<2x8x4x8xf32> -> vector<2x4x8x8xf32>
    %49 = vector.shape_cast %48 : vector<2x4x8x8xf32> to vector<8x8x8xf32>
    %50 = arith.truncf %49 : vector<8x8x8xf32> to vector<8x8x8xbf16>
    %51 = vector.shape_cast %42 : vector<16x32xf32> to vector<2x8x4x8xf32>
    %52 = tpu.transpose %51, [0, 2, 1, 3] : vector<2x8x4x8xf32> -> vector<2x4x8x8xf32>
    %53 = vector.shape_cast %52 : vector<2x4x8x8xf32> to vector<8x8x8xf32>
    %54 = arith.truncf %53 : vector<8x8x8xf32> to vector<8x8x8xbf16>
    "tpu.trace_start"() <{level = 10 : i32, message = "gqd,gkd->gqk"}> : () -> ()
    %cst_16 = arith.constant dense<0.000000e+00> : vector<8x8x8xf32>
    %55 = tpu.matmul %46, %50, %cst_16 {dimension_numbers = #tpu.dot_dimension_numbers<[2], [2], [1], [1], [0, 0, 0, 1, 1, 1], [0], [0]>} : vector<8x8x8xbf16>, vector<8x8x8xbf16>, vector<8x8x8xf32> -> vector<8x8x8xf32>
    "tpu.trace_stop"() : () -> ()
    %cst_17 = arith.constant dense<0xFF800000> : vector<8x8xf32>
    %56 = vector.multi_reduction <maximumf>, %55, %cst_17 [2] : vector<8x8x8xf32> to vector<8x8xf32>
    %57 = vector.shape_cast %56 : vector<8x8xf32> to vector<8x8x1xf32>
    %58 = vector.broadcast %57 : vector<8x8x1xf32> to vector<8x8x8xf32>
    %59 = arith.subf %55, %58 : vector<8x8x8xf32>
    %60 = math.exp %59 : vector<8x8x8xf32>
    %cst_18 = arith.constant dense<0.000000e+00> : vector<8x8xf32>
    %61 = vector.multi_reduction <add>, %60, %cst_18 [2] : vector<8x8x8xf32> to vector<8x8xf32>
    %62 = vector.shape_cast %61 : vector<8x8xf32> to vector<8x8x1xf32>
    %63 = tpu.reciprocal %62 {approx = true} : vector<8x8x1xf32> -> vector<8x8x1xf32>
    %64 = vector.broadcast %63 : vector<8x8x1xf32> to vector<8x8x8xf32>
    %65 = arith.mulf %60, %64 : vector<8x8x8xf32>
    %66 = vector.shape_cast %65 : vector<8x8x8xf32> to vector<2x4x8x8xf32>
    %c0_19 = arith.constant 0 : index
    %c0_20 = arith.constant 0 : index
    %c0_21 = arith.constant 0 : index
    %c0_22 = arith.constant 0 : index
    %67 = vector.load %arg15[%c0_19, %c0_20, %c0_21, %c0_22] : memref<2x4x8x8xf32, #tpu.memory_space<vmem>>, vector<2x4x8x8xf32>
    tpu.vector_store %arg15[%c0_19, %c0_20, %c0_21, %c0_22], %66 {strides = array<i32>} : memref<2x4x8x8xf32, #tpu.memory_space<vmem>>, vector<2x4x8x8xf32>,
    %68 = arith.truncf %65 : vector<8x8x8xf32> to vector<8x8x8xbf16>
    "tpu.trace_start"() <{level = 10 : i32, message = "gqk,gkd->gqd"}> : () -> ()
    %cst_23 = arith.constant dense<0.000000e+00> : vector<8x8x8xf32>
    %69 = tpu.matmul %68, %54, %cst_23 {dimension_numbers = #tpu.dot_dimension_numbers<[2], [1], [1], [2], [0, 0, 0, 1, 1, 2], [0], [0]>} : vector<8x8x8xbf16>, vector<8x8x8xbf16>, vector<8x8x8xf32> -> vector<8x8x8xf32>
    "tpu.trace_stop"() : () -> ()
    %70 = vector.shape_cast %69 : vector<8x8x8xf32> to vector<2x4x8x8xf32>
    %71 = vector.extract_strided_slice %70 {offsets = [0, 0, 0, 0], sizes = [2, 1, 8, 8], strides = [1, 1, 1, 1]} : vector<2x4x8x8xf32> to vector<2x1x8x8xf32>
    %72 = vector.shape_cast %71 : vector<2x1x8x8xf32> to vector<2x8x8xf32>
    %73 = vector.shape_cast %72 : vector<2x8x8xf32> to vector<16x8xf32>
    %74 = arith.truncf %73 : vector<16x8xf32> to vector<16x8xbf16>
    %c0_24 = arith.constant 0 : index
    %c0_25 = arith.constant 0 : index
    %c0_26 = arith.constant 0 : index
    %75 = vector.load %arg6[%c0_24, %c0_25, %c0_26] : memref<4x8x32xbf16, #tpu.memory_space<vmem>>, vector<1x8x32xbf16>
    %76 = vector.shape_cast %75 : vector<1x8x32xbf16> to vector<8x32xbf16>
    %cst_27 = arith.constant dense<0.000000e+00> : vector<16x32xf32>
    %77 = tpu.matmul %74, %76, %cst_27 {dimension_numbers = #tpu.dot_dimension_numbers<[1], [0], [0], [1], [0, 0, 1, 1], [], []>} : vector<16x8xbf16>, vector<8x32xbf16>, vector<16x32xf32> -> vector<16x32xf32>
    %78 = vector.extract_strided_slice %70 {offsets = [0, 1, 0, 0], sizes = [2, 1, 8, 8], strides = [1, 1, 1, 1]} : vector<2x4x8x8xf32> to vector<2x1x8x8xf32>
    %79 = vector.shape_cast %78 : vector<2x1x8x8xf32> to vector<2x8x8xf32>
    %80 = vector.shape_cast %79 : vector<2x8x8xf32> to vector<16x8xf32>
    %81 = arith.truncf %80 : vector<16x8xf32> to vector<16x8xbf16>
    %c1 = arith.constant 1 : index
    %c0_28 = arith.constant 0 : index
    %c0_29 = arith.constant 0 : index
    %82 = vector.load %arg6[%c1, %c0_28, %c0_29] : memref<4x8x32xbf16, #tpu.memory_space<vmem>>, vector<1x8x32xbf16>
    %83 = vector.shape_cast %82 : vector<1x8x32xbf16> to vector<8x32xbf16>
    %cst_30 = arith.constant dense<0.000000e+00> : vector<16x32xf32>
    %84 = tpu.matmul %81, %83, %cst_30 {dimension_numbers = #tpu.dot_dimension_numbers<[1], [0], [0], [1], [0, 0, 1, 1], [], []>} : vector<16x8xbf16>, vector<8x32xbf16>, vector<16x32xf32> -> vector<16x32xf32>
    %85 = arith.addf %77, %84 : vector<16x32xf32>
    %86 = vector.extract_strided_slice %70 {offsets = [0, 2, 0, 0], sizes = [2, 1, 8, 8], strides = [1, 1, 1, 1]} : vector<2x4x8x8xf32> to vector<2x1x8x8xf32>
    %87 = vector.shape_cast %86 : vector<2x1x8x8xf32> to vector<2x8x8xf32>
    %88 = vector.shape_cast %87 : vector<2x8x8xf32> to vector<16x8xf32>
    %89 = arith.truncf %88 : vector<16x8xf32> to vector<16x8xbf16>
    %c2 = arith.constant 2 : index
    %c0_31 = arith.constant 0 : index
    %c0_32 = arith.constant 0 : index
    %90 = vector.load %arg6[%c2, %c0_31, %c0_32] : memref<4x8x32xbf16, #tpu.memory_space<vmem>>, vector<1x8x32xbf16>
    %91 = vector.shape_cast %90 : vector<1x8x32xbf16> to vector<8x32xbf16>
    %cst_33 = arith.constant dense<0.000000e+00> : vector<16x32xf32>
    %92 = tpu.matmul %89, %91, %cst_33 {dimension_numbers = #tpu.dot_dimension_numbers<[1], [0], [0], [1], [0, 0, 1, 1], [], []>} : vector<16x8xbf16>, vector<8x32xbf16>, vector<16x32xf32> -> vector<16x32xf32>
    %93 = arith.addf %85, %92 : vector<16x32xf32>
    %94 = vector.extract_strided_slice %70 {offsets = [0, 3, 0, 0], sizes = [2, 1, 8, 8], strides = [1, 1, 1, 1]} : vector<2x4x8x8xf32> to vector<2x1x8x8xf32>
    %95 = vector.shape_cast %94 : vector<2x1x8x8xf32> to vector<2x8x8xf32>
    %96 = vector.shape_cast %95 : vector<2x8x8xf32> to vector<16x8xf32>
    %97 = arith.truncf %96 : vector<16x8xf32> to vector<16x8xbf16>
    %c3 = arith.constant 3 : index
    %c0_34 = arith.constant 0 : index
    %c0_35 = arith.constant 0 : index
    %98 = vector.load %arg6[%c3, %c0_34, %c0_35] : memref<4x8x32xbf16, #tpu.memory_space<vmem>>, vector<1x8x32xbf16>
    %99 = vector.shape_cast %98 : vector<1x8x32xbf16> to vector<8x32xbf16>
    %cst_36 = arith.constant dense<0.000000e+00> : vector<16x32xf32>
    %100 = tpu.matmul %97, %99, %cst_36 {dimension_numbers = #tpu.dot_dimension_numbers<[1], [0], [0], [1], [0, 0, 1, 1], [], []>} : vector<16x8xbf16>, vector<8x32xbf16>, vector<16x32xf32> -> vector<16x32xf32>
    %101 = arith.addf %93, %100 : vector<16x32xf32>
    %c0_37 = arith.constant 0 : index
    %c0_38 = arith.constant 0 : index
    %102 = vector.load %arg7[%c0_37, %c0_38] : memref<1x32xf32, #tpu.memory_space<vmem>>, vector<1x32xf32>
    %103 = vector.shape_cast %102 : vector<1x32xf32> to vector<32xf32>
    %104 = vector.shape_cast %103 : vector<32xf32> to vector<1x32xf32>
    %105 = vector.broadcast %104 : vector<1x32xf32> to vector<16x32xf32>
    %106 = arith.addf %101, %105 : vector<16x32xf32>
    %107 = arith.addf %106, %1 : vector<16x32xf32>
    %c0_39 = arith.constant 0 : index
    %c0_40 = arith.constant 0 : index
    %108 = vector.load %arg8[%c0_39, %c0_40] : memref<1x32xf32, #tpu.memory_space<vmem>>, vector<1x32xf32>
    %109 = vector.shape_cast %108 : vector<1x32xf32> to vector<32xf32>
    %c0_41 = arith.constant 0 : index
    %c0_42 = arith.constant 0 : index
    %110 = vector.load %arg9[%c0_41, %c0_42] : memref<1x32xf32, #tpu.memory_space<vmem>>, vector<1x32xf32>
    %111 = vector.shape_cast %110 : vector<1x32xf32> to vector<32xf32>
    %cst_43 = arith.constant dense<0.000000e+00> : vector<16xf32>
    %112 = vector.multi_reduction <add>, %107, %cst_43 [1] : vector<16x32xf32> to vector<16xf32>
    %113 = vector.shape_cast %112 : vector<16xf32> to vector<16x1xf32>
    %114 = arith.mulf %107, %107 : vector<16x32xf32>
    %cst_44 = arith.constant dense<0.000000e+00> : vector<16xf32>
    %115 = vector.multi_reduction <add>, %114, %cst_44 [1] : vector<16x32xf32> to vector<16xf32>
    %116 = vector.shape_cast %115 : vector<16xf32> to vector<16x1xf32>
    %cst_45 = arith.constant 3.125000e-02 : f32
    %117 = vector.broadcast %cst_45 : f32 to vector<16x1xf32>
    %118 = arith.mulf %113, %117 : vector<16x1xf32>
    %cst_46 = arith.constant 3.125000e-02 : f32
    %119 = vector.broadcast %cst_46 : f32 to vector<16x1xf32>
    %120 = arith.mulf %116, %119 : vector<16x1xf32>
    %121 = arith.mulf %118, %118 : vector<16x1xf32>
    %122 = arith.subf %120, %121 : vector<16x1xf32>
    %cst_47 = arith.constant 0.000000e+00 : f32
    %123 = vector.broadcast %cst_47 : f32 to vector<16x1xf32>
    %124 = arith.maximumf %122, %123 : vector<16x1xf32>
    %125 = vector.broadcast %118 : vector<16x1xf32> to vector<16x32xf32>
    %126 = arith.subf %107, %125 : vector<16x32xf32>
    %cst_48 = arith.constant 9.99999997E-7 : f32
    %127 = vector.broadcast %cst_48 : f32 to vector<16x1xf32>
    %128 = arith.addf %124, %127 : vector<16x1xf32>
    %129 = math.rsqrt %128 : vector<16x1xf32>
    %130 = vector.broadcast %129 : vector<16x1xf32> to vector<16x32xf32>
    %131 = arith.mulf %126, %130 : vector<16x32xf32>
    %132 = vector.shape_cast %109 : vector<32xf32> to vector<1x32xf32>
    %133 = vector.broadcast %132 : vector<1x32xf32> to vector<16x32xf32>
    %134 = arith.mulf %131, %133 : vector<16x32xf32>
    %135 = vector.shape_cast %111 : vector<32xf32> to vector<1x32xf32>
    %136 = vector.broadcast %135 : vector<1x32xf32> to vector<16x32xf32>
    %137 = arith.addf %134, %136 : vector<16x32xf32>
    %138 = arith.truncf %137 : vector<16x32xf32> to vector<16x32xbf16>
    %c0_49 = arith.constant 0 : index
    %c0_50 = arith.constant 0 : index
    %139 = vector.load %arg10[%c0_49, %c0_50] : memref<32x64xbf16, #tpu.memory_space<vmem>>, vector<32x64xbf16>
    %cst_51 = arith.constant dense<0.000000e+00> : vector<16x64xf32>
    %140 = tpu.matmul %138, %139, %cst_51 {dimension_numbers = #tpu.dot_dimension_numbers<[1], [0], [0], [1], [0, 0, 1, 1], [], []>} : vector<16x32xbf16>, vector<32x64xbf16>, vector<16x64xf32> -> vector<16x64xf32>
    %c0_52 = arith.constant 0 : index
    %c0_53 = arith.constant 0 : index
    %141 = vector.load %arg11[%c0_52, %c0_53] : memref<1x64xf32, #tpu.memory_space<vmem>>, vector<1x64xf32>
    %142 = vector.shape_cast %141 : vector<1x64xf32> to vector<64xf32>
    %143 = vector.shape_cast %142 : vector<64xf32> to vector<1x64xf32>
    %144 = vector.broadcast %143 : vector<1x64xf32> to vector<16x64xf32>
    %145 = arith.addf %140, %144 : vector<16x64xf32>
    %cst_54 = arith.constant 5.000000e-01 : f32
    %146 = vector.broadcast %cst_54 : f32 to vector<16x64xf32>
    %147 = arith.mulf %146, %145 : vector<16x64xf32>
    %cst_55 = arith.constant 0.707106769 : f32
    %148 = vector.broadcast %cst_55 : f32 to vector<16x64xf32>
    %149 = arith.mulf %145, %148 : vector<16x64xf32>
    %cst_56 = arith.constant 0.000000e+00 : f32
    %150 = vector.broadcast %cst_56 : f32 to vector<16x64xf32>
    %151 = arith.cmpf oge, %149, %150 : vector<16x64xf32>
    %cst_57 = arith.constant 1.000000e+00 : f32
    %cst_58 = arith.constant -1.000000e+00 : f32
    %152 = vector.broadcast %cst_57 : f32 to vector<16x64xf32>
    %153 = vector.broadcast %cst_58 : f32 to vector<16x64xf32>
    %154 = arith.select %151, %152, %153 : vector<16x64xi1>, vector<16x64xf32>
    %155 = math.absf %149 : vector<16x64xf32>
    %cst_59 = arith.constant 0.327591091 : f32
    %156 = vector.broadcast %cst_59 : f32 to vector<16x64xf32>
    %157 = arith.mulf %156, %155 : vector<16x64xf32>
    %cst_60 = arith.constant 1.000000e+00 : f32
    %158 = vector.broadcast %cst_60 : f32 to vector<16x64xf32>
    %159 = arith.addf %158, %157 : vector<16x64xf32>
    %cst_61 = arith.constant 1.000000e+00 : f32
    %160 = vector.broadcast %cst_61 : f32 to vector<16x64xf32>
    %161 = arith.divf %160, %159 : vector<16x64xf32>
    %cst_62 = arith.constant 1.06140542 : f32
    %162 = vector.broadcast %cst_62 : f32 to vector<16x64xf32>
    %163 = arith.mulf %162, %161 : vector<16x64xf32>
    %cst_63 = arith.constant -1.45315206 : f32
    %164 = vector.broadcast %cst_63 : f32 to vector<16x64xf32>
    %165 = arith.addf %163, %164 : vector<16x64xf32>
    %166 = arith.mulf %165, %161 : vector<16x64xf32>
    %cst_64 = arith.constant 1.42141378 : f32
    %167 = vector.broadcast %cst_64 : f32 to vector<16x64xf32>
    %168 = arith.addf %166, %167 : vector<16x64xf32>
    %169 = arith.mulf %168, %161 : vector<16x64xf32>
    %cst_65 = arith.constant -0.284496725 : f32
    %170 = vector.broadcast %cst_65 : f32 to vector<16x64xf32>
    %171 = arith.addf %169, %170 : vector<16x64xf32>
    %172 = arith.mulf %171, %161 : vector<16x64xf32>
    %cst_66 = arith.constant 0.254829586 : f32
    %173 = vector.broadcast %cst_66 : f32 to vector<16x64xf32>
    %174 = arith.addf %172, %173 : vector<16x64xf32>
    %175 = arith.mulf %174, %161 : vector<16x64xf32>
    %cst_67 = arith.constant 0.000000e+00 : f32
    %176 = vector.broadcast %cst_67 : f32 to vector<16x64xf32>
    %177 = arith.subf %176, %155 : vector<16x64xf32>
    %178 = arith.mulf %177, %155 : vector<16x64xf32>
    %179 = math.exp %178 : vector<16x64xf32>
    %180 = arith.mulf %175, %179 : vector<16x64xf32>
    %cst_68 = arith.constant 1.000000e+00 : f32
    %181 = vector.broadcast %cst_68 : f32 to vector<16x64xf32>
    %182 = arith.subf %181, %180 : vector<16x64xf32>
    %183 = arith.mulf %154, %182 : vector<16x64xf32>
    %cst_69 = arith.constant 1.000000e+00 : f32
    %184 = vector.broadcast %cst_69 : f32 to vector<16x64xf32>
    %185 = arith.addf %184, %183 : vector<16x64xf32>
    %186 = arith.mulf %147, %185 : vector<16x64xf32>
    %187 = arith.truncf %186 : vector<16x64xf32> to vector<16x64xbf16>
    %c0_70 = arith.constant 0 : index
    %c0_71 = arith.constant 0 : index
    %188 = vector.load %arg12[%c0_70, %c0_71] : memref<64x32xbf16, #tpu.memory_space<vmem>>, vector<64x32xbf16>
    %cst_72 = arith.constant dense<0.000000e+00> : vector<16x32xf32>
    %189 = tpu.matmul %187, %188, %cst_72 {dimension_numbers = #tpu.dot_dimension_numbers<[1], [0], [0], [1], [0, 0, 1, 1], [], []>} : vector<16x64xbf16>, vector<64x32xbf16>, vector<16x32xf32> -> vector<16x32xf32>
    %c0_73 = arith.constant 0 : index
    %c0_74 = arith.constant 0 : index
    %190 = vector.load %arg13[%c0_73, %c0_74] : memref<1x32xf32, #tpu.memory_space<vmem>>, vector<1x32xf32>
    %191 = vector.shape_cast %190 : vector<1x32xf32> to vector<32xf32>
    %192 = vector.shape_cast %191 : vector<32xf32> to vector<1x32xf32>
    %193 = vector.broadcast %192 : vector<1x32xf32> to vector<16x32xf32>
    %194 = arith.addf %189, %193 : vector<16x32xf32>
    %195 = arith.addf %194, %107 : vector<16x32xf32>
    %196 = vector.shape_cast %195 : vector<16x32xf32> to vector<2x8x32xf32>
    %c0_75 = arith.constant 0 : index
    %c0_76 = arith.constant 0 : index
    %c0_77 = arith.constant 0 : index
    %197 = vector.load %arg14[%c0_75, %c0_76, %c0_77] : memref<2x8x32xf32, #tpu.memory_space<vmem>>, vector<2x8x32xf32>
    tpu.vector_store %arg14[%c0_75, %c0_76, %c0_77], %196 {strides = array<i32>} : memref<2x8x32xf32, #tpu.memory_space<vmem>>, vector<2x8x32xf32>,
    return
  }
  func.func @transform_0(%arg0: i32) -> (i32, i32, i32) {
    %c0_i32 = arith.constant 0 : i32
    %c0_i32_0 = arith.constant 0 : i32
    %c0_i32_1 = arith.constant 0 : i32
    return %arg0, %c0_i32, %c0_i32_0 : i32, i32, i32
  }
  func.func @transform_1(%arg0: i32) -> (i32, i32) {
    %c0_i32 = arith.constant 0 : i32
    %c0_i32_0 = arith.constant 0 : i32
    %c0_i32_1 = arith.constant 0 : i32
    return %c0_i32, %c0_i32_0 : i32, i32
  }
  func.func @transform_2(%arg0: i32) -> (i32, i32) {
    %c0_i32 = arith.constant 0 : i32
    %c0_i32_0 = arith.constant 0 : i32
    %c0_i32_1 = arith.constant 0 : i32
    return %c0_i32, %c0_i32_0 : i32, i32
  }
  func.func @transform_3(%arg0: i32) -> (i32, i32) {
    %c0_i32 = arith.constant 0 : i32
    %c0_i32_0 = arith.constant 0 : i32
    %c0_i32_1 = arith.constant 0 : i32
    return %c0_i32, %c0_i32_0 : i32, i32
  }
  func.func @transform_4(%arg0: i32) -> (i32, i32) {
    %c0_i32 = arith.constant 0 : i32
    %c0_i32_0 = arith.constant 0 : i32
    %c0_i32_1 = arith.constant 0 : i32
    return %c0_i32, %c0_i32_0 : i32, i32
  }
  func.func @transform_5(%arg0: i32) -> (i32, i32, i32) {
    %c0_i32 = arith.constant 0 : i32
    %c0_i32_0 = arith.constant 0 : i32
    %c0_i32_1 = arith.constant 0 : i32
    %c0_i32_2 = arith.constant 0 : i32
    return %c0_i32, %c0_i32_0, %c0_i32_1 : i32, i32, i32
  }
  func.func @transform_6(%arg0: i32) -> (i32, i32) {
    %c0_i32 = arith.constant 0 : i32
    %c0_i32_0 = arith.constant 0 : i32
    %c0_i32_1 = arith.constant 0 : i32
    return %c0_i32, %c0_i32_0 : i32, i32
  }
  func.func @transform_7(%arg0: i32) -> (i32, i32) {
    %c0_i32 = arith.constant 0 : i32
    %c0_i32_0 = arith.constant 0 : i32
    %c0_i32_1 = arith.constant 0 : i32
    return %c0_i32, %c0_i32_0 : i32, i32
  }
  func.func @transform_8(%arg0: i32) -> (i32, i32) {
    %c0_i32 = arith.constant 0 : i32
    %c0_i32_0 = arith.constant 0 : i32
    %c0_i32_1 = arith.constant 0 : i32
    return %c0_i32, %c0_i32_0 : i32, i32
  }
  func.func @transform_9(%arg0: i32) -> (i32, i32) {
    %c0_i32 = arith.constant 0 : i32
    %c0_i32_0 = arith.constant 0 : i32
    %c0_i32_1 = arith.constant 0 : i32
    return %c0_i32, %c0_i32_0 : i32, i32
  }
  func.func @transform_10(%arg0: i32) -> (i32, i32) {
    %c0_i32 = arith.constant 0 : i32
    %c0_i32_0 = arith.constant 0 : i32
    %c0_i32_1 = arith.constant 0 : i32
    return %c0_i32, %c0_i32_0 : i32, i32
  }
  func.func @transform_11(%arg0: i32) -> (i32, i32) {
    %c0_i32 = arith.constant 0 : i32
    %c0_i32_0 = arith.constant 0 : i32
    %c0_i32_1 = arith.constant 0 : i32
    return %c0_i32, %c0_i32_0 : i32, i32
  }
  func.func @transform_12(%arg0: i32) -> (i32, i32) {
    %c0_i32 = arith.constant 0 : i32
    %c0_i32_0 = arith.constant 0 : i32
    %c0_i32_1 = arith.constant 0 : i32
    return %c0_i32, %c0_i32_0 : i32, i32
  }
  func.func @transform_13(%arg0: i32) -> (i32, i32, i32) {
    %c0_i32 = arith.constant 0 : i32
    %c0_i32_0 = arith.constant 0 : i32
    %c0_i32_1 = arith.constant 0 : i32
    return %arg0, %c0_i32, %c0_i32_0 : i32, i32, i32
  }
  func.func @transform_14(%arg0: i32) -> (i32, i32, i32, i32) {
    %c0_i32 = arith.constant 0 : i32
    %c0_i32_0 = arith.constant 0 : i32
    %c0_i32_1 = arith.constant 0 : i32
    %c0_i32_2 = arith.constant 0 : i32
    return %arg0, %c0_i32, %c0_i32_0, %c0_i32_1 : i32, i32, i32, i32
  }
}

module attributes {stable_mosaic.version = 11 : i64} {
  func.func @block_kernel(%arg0: i32, %arg1: memref<2x8x32xf32, #tpu.memory_space<vmem>>, %arg2: memref<1x32xf32, #tpu.memory_space<vmem>>, %arg3: memref<1x32xf32, #tpu.memory_space<vmem>>, %arg4: memref<32x96xbf16, #tpu.memory_space<vmem>>, %arg5: memref<1x96xf32, #tpu.memory_space<vmem>>, %arg6: memref<4x8x32xbf16, #tpu.memory_space<vmem>>, %arg7: memref<1x32xf32, #tpu.memory_space<vmem>>, %arg8: memref<1x32xf32, #tpu.memory_space<vmem>>, %arg9: memref<1x32xf32, #tpu.memory_space<vmem>>, %arg10: memref<32x64xbf16, #tpu.memory_space<vmem>>, %arg11: memref<1x64xf32, #tpu.memory_space<vmem>>, %arg12: memref<64x32xbf16, #tpu.memory_space<vmem>>, %arg13: memref<1x32xf32, #tpu.memory_space<vmem>>, %arg14: memref<2x8x32xf32, #tpu.memory_space<vmem>>, %arg15: memref<2x4x8x8xf32, #tpu.memory_space<vmem>>) attributes {dimension_semantics = [#tpu.dimension_semantics<parallel>], iteration_bounds = array<i64: 1>, scalar_prefetch = 0 : i64, scratch_operands = 0 : i64, tpu.core_type = #tpu.core_type<tc>, window_params = [{transform_indices = @transform_0, window_bounds = array<i64: 2, 8, 32>}, {pipeline_mode = #tpu.pipeline_mode<synchronous>, transform_indices = @transform_1, window_bounds = array<i64: 1, 32>}, {pipeline_mode = #tpu.pipeline_mode<synchronous>, transform_indices = @transform_2, window_bounds = array<i64: 1, 32>}, {pipeline_mode = #tpu.pipeline_mode<synchronous>, transform_indices = @transform_3, window_bounds = array<i64: 32, 96>}, {pipeline_mode = #tpu.pipeline_mode<synchronous>, transform_indices = @transform_4, window_bounds = array<i64: 1, 96>}, {pipeline_mode = #tpu.pipeline_mode<synchronous>, transform_indices = @transform_5, window_bounds = array<i64: 4, 8, 32>}, {pipeline_mode = #tpu.pipeline_mode<synchronous>, transform_indices = @transform_6, window_bounds = array<i64: 1, 32>}, {pipeline_mode = #tpu.pipeline_mode<synchronous>, transform_indices = @transform_7, window_bounds = array<i64: 1, 32>}, {pipeline_mode = #tpu.pipeline_mode<synchronous>, transform_indices = @transform_8, window_bounds = array<i64: 1, 32>}, {pipeline_mode = #tpu.pipeline_mode<synchronous>, transform_indices = @transform_9, window_bounds = array<i64: 32, 64>}, {pipeline_mode = #tpu.pipeline_mode<synchronous>, transform_indices = @transform_10, window_bounds = array<i64: 1, 64>}, {pipeline_mode = #tpu.pipeline_mode<synchronous>, transform_indices = @transform_11, window_bounds = array<i64: 64, 32>}, {pipeline_mode = #tpu.pipeline_mode<synchronous>, transform_indices = @transform_12, window_bounds = array<i64: 1, 32>}, {transform_indices = @transform_13, window_bounds = array<i64: 2, 8, 32>}, {transform_indices = @transform_14, window_bounds = array<i64: 2, 4, 8, 8>}]} {
    %c0 = arith.constant 0 : index
    %c0_0 = arith.constant 0 : index
    %c0_1 = arith.constant 0 : index
    %0 = vector.load %arg1[%c0, %c0_0, %c0_1] : memref<2x8x32xf32, #tpu.memory_space<vmem>>, vector<2x8x32xf32>
    %1 = vector.shape_cast %0 : vector<2x8x32xf32> to vector<16x32xf32>
    %c0_2 = arith.constant 0 : index
    %c0_3 = arith.constant 0 : index
    %2 = vector.load %arg2[%c0_2, %c0_3] : memref<1x32xf32, #tpu.memory_space<vmem>>, vector<1x32xf32>
    %3 = vector.shape_cast %2 : vector<1x32xf32> to vector<32xf32>
    %c0_4 = arith.constant 0 : index
    %c0_5 = arith.constant 0 : index
    %4 = vector.load %arg3[%c0_4, %c0_5] : memref<1x32xf32, #tpu.memory_space<vmem>>, vector<1x32xf32>
    %5 = vector.shape_cast %4 : vector<1x32xf32> to vector<32xf32>
    %cst = arith.constant dense<0.000000e+00> : vector<16xf32>
    %6 = vector.multi_reduction <add>, %1, %cst [1] : vector<16x32xf32> to vector<16xf32>
    %7 = vector.shape_cast %6 : vector<16xf32> to vector<16x1xf32>
    %8 = arith.mulf %1, %1 : vector<16x32xf32>
    %cst_6 = arith.constant dense<0.000000e+00> : vector<16xf32>
    %9 = vector.multi_reduction <add>, %8, %cst_6 [1] : vector<16x32xf32> to vector<16xf32>
    %10 = vector.shape_cast %9 : vector<16xf32> to vector<16x1xf32>
    %cst_7 = arith.constant 3.125000e-02 : f32
    %11 = vector.broadcast %cst_7 : f32 to vector<16x1xf32>
    %12 = arith.mulf %7, %11 : vector<16x1xf32>
    %cst_8 = arith.constant 3.125000e-02 : f32
    %13 = vector.broadcast %cst_8 : f32 to vector<16x1xf32>
    %14 = arith.mulf %10, %13 : vector<16x1xf32>
    %15 = arith.mulf %12, %12 : vector<16x1xf32>
    %16 = arith.subf %14, %15 : vector<16x1xf32>
    %cst_9 = arith.constant 0.000000e+00 : f32
    %17 = vector.broadcast %cst_9 : f32 to vector<16x1xf32>
    %18 = arith.maximumf %16, %17 : vector<16x1xf32>
    %19 = vector.broadcast %12 : vector<16x1xf32> to vector<16x32xf32>
    %20 = arith.subf %1, %19 : vector<16x32xf32>
    %cst_10 = arith.constant 9.99999997E-7 : f32
    %21 = vector.broadcast %cst_10 : f32 to vector<16x1xf32>
    %22 = arith.addf %18, %21 : vector<16x1xf32>
    %23 = math.rsqrt %22 : vector<16x1xf32>
    %24 = vector.broadcast %23 : vector<16x1xf32> to vector<16x32xf32>
    %25 = arith.mulf %20, %24 : vector<16x32xf32>
    %26 = vector.shape_cast %3 : vector<32xf32> to vector<1x32xf32>
    %27 = vector.broadcast %26 : vector<1x32xf32> to vector<16x32xf32>
    %28 = arith.mulf %25, %27 : vector<16x32xf32>
    %29 = vector.shape_cast %5 : vector<32xf32> to vector<1x32xf32>
    %30 = vector.broadcast %29 : vector<1x32xf32> to vector<16x32xf32>
    %31 = arith.addf %28, %30 : vector<16x32xf32>
    %32 = arith.truncf %31 : vector<16x32xf32> to vector<16x32xbf16>
    %c0_11 = arith.constant 0 : index
    %c0_12 = arith.constant 0 : index
    %33 = vector.load %arg4[%c0_11, %c0_12] : memref<32x96xbf16, #tpu.memory_space<vmem>>, vector<32x96xbf16>
    %cst_13 = arith.constant dense<0.000000e+00> : vector<16x96xf32>
    %34 = tpu.matmul %32, %33, %cst_13 {dimension_numbers = #tpu.dot_dimension_numbers<[1], [0], [0], [1], [0, 0, 1, 1], [], []>} : vector<16x32xbf16>, vector<32x96xbf16>, vector<16x96xf32> -> vector<16x96xf32>
    %c0_14 = arith.constant 0 : index
    %c0_15 = arith.constant 0 : index
    %35 = vector.load %arg5[%c0_14, %c0_15] : memref<1x96xf32, #tpu.memory_space<vmem>>, vector<1x96xf32>
    %36 = vector.shape_cast %35 : vector<1x96xf32> to vector<96xf32>
    %37 = vector.shape_cast %36 : vector<96xf32> to vector<1x96xf32>
    %38 = vector.broadcast %37 : vector<1x96xf32> to vector<16x96xf32>
    %39 = arith.addf %34, %38 : vector<16x96xf32>
    %40 = vector.extract_strided_slice %39 {offsets = [0, 0], sizes = [16, 32], strides = [1, 1]} : vector<16x96xf32> to vector<16x32xf32>
    %41 = vector.extract_strided_slice %39 {offsets = [0, 32], sizes = [16, 32], strides = [1, 1]} : vector<16x96xf32> to vector<16x32xf32>
    %42 = vector.extract_strided_slice %39 {offsets = [0, 64], sizes = [16, 32], strides = [1, 1]} : vector<16x96xf32> to vector<16x32xf32>
    %43 = vector.shape_cast %40 : vector<16x32xf32> to vector<2x8x4x8xf32>
    %44 = tpu.transpose %43, [0, 2, 1, 3] : vector<2x8x4x8xf32> -> vector<2x4x8x8xf32>
    %45 = vector.shape_cast %44 : vector<2x4x8x8xf32> to vector<8x8x8xf32>
    %46 = arith.truncf %45 : vector<8x8x8xf32> to vector<8x8x8xbf16>
    %47 = vector.shape_cast %41 : vector<16x32xf32> to vector<2x8x4x8xf32>
    %48 = tpu.transpose %47, [0, 2, 1, 3] : vector<2x8x4x8xf32> -> vector<2x4x8x8xf32>
    %49 = vector.shape_cast %48 : vector<2x4x8x8xf32> to vector<8x8x8xf32>
    %50 = arith.truncf %49 : vector<8x8x8xf32> to vector<8x8x8xbf16>
    %51 = vector.shape_cast %42 : vector<16x32xf32> to vector<2x8x4x8xf32>
    %52 = tpu.transpose %51, [0, 2, 1, 3] : vector<2x8x4x8xf32> -> vector<2x4x8x8xf32>
    %53 = vector.shape_cast %52 : vector<2x4x8x8xf32> to vector<8x8x8xf32>
    %54 = arith.truncf %53 : vector<8x8x8xf32> to vector<8x8x8xbf16>
    "tpu.trace_start"() <{level = 10 : i32, message = "gqd,gkd->gqk"}> : () -> ()
    %cst_16 = arith.constant dense<0.000000e+00> : vector<8x8x8xf32>
    %55 = tpu.matmul %46, %50, %cst_16 {dimension_numbers = #tpu.dot_dimension_numbers<[2], [2], [1], [1], [0, 0, 0, 1, 1, 1], [0], [0]>} : vector<8x8x8xbf16>, vector<8x8x8xbf16>, vector<8x8x8xf32> -> vector<8x8x8xf32>
    "tpu.trace_stop"() : () -> ()
    %cst_17 = arith.constant dense<0xFF800000> : vector<8x8xf32>
    %56 = vector.multi_reduction <maximumf>, %55, %cst_17 [2] : vector<8x8x8xf32> to vector<8x8xf32>
    %57 = vector.shape_cast %56 : vector<8x8xf32> to vector<8x8x1xf32>
    %58 = vector.broadcast %57 : vector<8x8x1xf32> to vector<8x8x8xf32>
    %59 = arith.subf %55, %58 : vector<8x8x8xf32>
    %60 = math.exp %59 : vector<8x8x8xf32>
    %cst_18 = arith.constant dense<0.000000e+00> : vector<8x8xf32>
    %61 = vector.multi_reduction <add>, %60, %cst_18 [2] : vector<8x8x8xf32> to vector<8x8xf32>
    %62 = vector.shape_cast %61 : vector<8x8xf32> to vector<8x8x1xf32>
    %63 = tpu.reciprocal %62 {approx = true} : vector<8x8x1xf32> -> vector<8x8x1xf32>
    %64 = vector.broadcast %63 : vector<8x8x1xf32> to vector<8x8x8xf32>
    %65 = arith.mulf %60, %64 : vector<8x8x8xf32>
    %66 = vector.shape_cast %65 : vector<8x8x8xf32> to vector<2x4x8x8xf32>
    %c0_19 = arith.constant 0 : index
    %c0_20 = arith.constant 0 : index
    %c0_21 = arith.constant 0 : index
    %c0_22 = arith.constant 0 : index
    %67 = vector.load %arg15[%c0_19, %c0_20, %c0_21, %c0_22] : memref<2x4x8x8xf32, #tpu.memory_space<vmem>>, vector<2x4x8x8xf32>
    tpu.vector_store %arg15[%c0_19, %c0_20, %c0_21, %c0_22], %66 {strides = array<i32>} : memref<2x4x8x8xf32, #tpu.memory_space<vmem>>, vector<2x4x8x8xf32>,
    %68 = arith.truncf %65 : vector<8x8x8xf32> to vector<8x8x8xbf16>
    "tpu.trace_start"() <{level = 10 : i32, message = "gqk,gkd->gqd"}> : () -> ()
    %cst_23 = arith.constant dense<0.000000e+00> : vector<8x8x8xf32>
    %69 = tpu.matmul %68, %54, %cst_23 {dimension_numbers = #tpu.dot_dimension_numbers<[2], [1], [1], [2], [0, 0, 0, 1, 1, 2], [0], [0]>} : vector<8x8x8xbf16>, vector<8x8x8xbf16>, vector<8x8x8xf32> -> vector<8x8x8xf32>
    "tpu.trace_stop"() : () -> ()
    %70 = vector.shape_cast %69 : vector<8x8x8xf32> to vector<2x4x8x8xf32>
    %71 = vector.extract_strided_slice %70 {offsets = [0, 0, 0, 0], sizes = [2, 1, 8, 8], strides = [1, 1, 1, 1]} : vector<2x4x8x8xf32> to vector<2x1x8x8xf32>
    %72 = vector.shape_cast %71 : vector<2x1x8x8xf32> to vector<2x8x8xf32>
    %73 = vector.shape_cast %72 : vector<2x8x8xf32> to vector<16x8xf32>
    %74 = arith.truncf %73 : vector<16x8xf32> to vector<16x8xbf16>
    %c0_24 = arith.constant 0 : index
    %c0_25 = arith.constant 0 : index
    %c0_26 = arith.constant 0 : index
    %75 = vector.load %arg6[%c0_24, %c0_25, %c0_26] : memref<4x8x32xbf16, #tpu.memory_space<vmem>>, vector<1x8x32xbf16>
    %76 = vector.shape_cast %75 : vector<1x8x32xbf16> to vector<8x32xbf16>
    %cst_27 = arith.constant dense<0.000000e+00> : vector<16x32xf32>
    %77 = tpu.matmul %74, %76, %cst_27 {dimension_numbers = #tpu.dot_dimension_numbers<[1], [0], [0], [1], [0, 0, 1, 1], [], []>} : vector<16x8xbf16>, vector<8x32xbf16>, vector<16x32xf32> -> vector<16x32xf32>
    %78 = vector.extract_strided_slice %70 {offsets = [0, 1, 0, 0], sizes = [2, 1, 8, 8], strides = [1, 1, 1, 1]} : vector<2x4x8x8xf32> to vector<2x1x8x8xf32>
    %79 = vector.shape_cast %78 : vector<2x1x8x8xf32> to vector<2x8x8xf32>
    %80 = vector.shape_cast %79 : vector<2x8x8xf32> to vector<16x8xf32>
    %81 = arith.truncf %80 : vector<16x8xf32> to vector<16x8xbf16>
    %c1 = arith.constant 1 : index
    %c0_28 = arith.constant 0 : index
    %c0_29 = arith.constant 0 : index
    %82 = vector.load %arg6[%c1, %c0_28, %c0_29] : memref<4x8x32xbf16, #tpu.memory_space<vmem>>, vector<1x8x32xbf16>
    %83 = vector.shape_cast %82 : vector<1x8x32xbf16> to vector<8x32xbf16>
    %cst_30 = arith.constant dense<0.000000e+00> : vector<16x32xf32>
    %84 = tpu.matmul %81, %83, %cst_30 {dimension_numbers = #tpu.dot_dimension_numbers<[1], [0], [0], [1], [0, 0, 1, 1], [], []>} : vector<16x8xbf16>, vector<8x32xbf16>, vector<16x32xf32> -> vector<16x32xf32>
    %85 = arith.addf %77, %84 : vector<16x32xf32>
    %86 = vector.extract_strided_slice %70 {offsets = [0, 2, 0, 0], sizes = [2, 1, 8, 8], strides = [1, 1, 1, 1]} : vector<2x4x8x8xf32> to vector<2x1x8x8xf32>
    %87 = vector.shape_cast %86 : vector<2x1x8x8xf32> to vector<2x8x8xf32>
    %88 = vector.shape_cast %87 : vector<2x8x8xf32> to vector<16x8xf32>
    %89 = arith.truncf %88 : vector<16x8xf32> to vector<16x8xbf16>
    %c2 = arith.constant 2 : index
    %c0_31 = arith.constant 0 : index
    %c0_32 = arith.constant 0 : index
    %90 = vector.load %arg6[%c2, %c0_31, %c0_32] : memref<4x8x32xbf16, #tpu.memory_space<vmem>>, vector<1x8x32xbf16>
    %91 = vector.shape_cast %90 : vector<1x8x32xbf16> to vector<8x32xbf16>
    %cst_33 = arith.constant dense<0.000000e+00> : vector<16x32xf32>
    %92 = tpu.matmul %89, %91, %cst_33 {dimension_numbers = #tpu.dot_dimension_numbers<[1], [0], [0], [1], [0, 0, 1, 1], [], []>} : vector<16x8xbf16>, vector<8x32xbf16>, vector<16x32xf32> -> vector<16x32xf32>
    %93 = arith.addf %85, %92 : vector<16x32xf32>
    %94 = vector.extract_strided_slice %70 {offsets = [0, 3, 0, 0], sizes = [2, 1, 8, 8], strides = [1, 1, 1, 1]} : vector<2x4x8x8xf32> to vector<2x1x8x8xf32>
    %95 = vector.shape_cast %94 : vector<2x1x8x8xf32> to vector<2x8x8xf32>
    %96 = vector.shape_cast %95 : vector<2x8x8xf32> to vector<16x8xf32>
    %97 = arith.truncf %96 : vector<16x8xf32> to vector<16x8xbf16>
    %c3 = arith.constant 3 : index
    %c0_34 = arith.constant 0 : index
    %c0_35 = arith.constant 0 : index
    %98 = vector.load %arg6[%c3, %c0_34, %c0_35] : memref<4x8x32xbf16, #tpu.memory_space<vmem>>, vector<1x8x32xbf16>
    %99 = vector.shape_cast %98 : vector<1x8x32xbf16> to vector<8x32xbf16>
    %cst_36 = arith.constant dense<0.000000e+00> : vector<16x32xf32>
    %100 = tpu.matmul %97, %99, %cst_36 {dimension_numbers = #tpu.dot_dimension_numbers<[1], [0], [0], [1], [0, 0, 1, 1], [], []>} : vector<16x8xbf16>, vector<8x32xbf16>, vector<16x32xf32> -> vector<16x32xf32>
    %101 = arith.addf %93, %100 : vector<16x32xf32>
    %c0_37 = arith.constant 0 : index
    %c0_38 = arith.constant 0 : index
    %102 = vector.load %arg7[%c0_37, %c0_38] : memref<1x32xf32, #tpu.memory_space<vmem>>, vector<1x32xf32>
    %103 = vector.shape_cast %102 : vector<1x32xf32> to vector<32xf32>
    %104 = vector.shape_cast %103 : vector<32xf32> to vector<1x32xf32>
    %105 = vector.broadcast %104 : vector<1x32xf32> to vector<16x32xf32>
    %106 = arith.addf %101, %105 : vector<16x32xf32>
    %107 = arith.addf %106, %1 : vector<16x32xf32>
    %c0_39 = arith.constant 0 : index
    %c0_40 = arith.constant 0 : index
    %108 = vector.load %arg8[%c0_39, %c0_40] : memref<1x32xf32, #tpu.memory_space<vmem>>, vector<1x32xf32>
    %109 = vector.shape_cast %108 : vector<1x32xf32> to vector<32xf32>
    %c0_41 = arith.constant 0 : index
    %c0_42 = arith.constant 0 : index
    %110 = vector.load %arg9[%c0_41, %c0_42] : memref<1x32xf32, #tpu.memory_space<vmem>>, vector<1x32xf32>
    %111 = vector.shape_cast %110 : vector<1x32xf32> to vector<32xf32>
    %cst_43 = arith.constant dense<0.000000e+00> : vector<16xf32>
    %112 = vector.multi_reduction <add>, %107, %cst_43 [1] : vector<16x32xf32> to vector<16xf32>
    %113 = vector.shape_cast %112 : vector<16xf32> to vector<16x1xf32>
    %114 = arith.mulf %107, %107 : vector<16x32xf32>
    %cst_44 = arith.constant dense<0.000000e+00> : vector<16xf32>
    %115 = vector.multi_reduction <add>, %114, %cst_44 [1] : vector<16x32xf32> to vector<16xf32>
    %116 = vector.shape_cast %115 : vector<16xf32> to vector<16x1xf32>
    %cst_45 = arith.constant 3.125000e-02 : f32
    %117 = vector.broadcast %cst_45 : f32 to vector<16x1xf32>
    %118 = arith.mulf %113, %117 : vector<16x1xf32>
    %cst_46 = arith.constant 3.125000e-02 : f32
    %119 = vector.broadcast %cst_46 : f32 to vector<16x1xf32>
    %120 = arith.mulf %116, %119 : vector<16x1xf32>
    %121 = arith.mulf %118, %118 : vector<16x1xf32>
    %122 = arith.subf %120, %121 : vector<16x1xf32>
    %cst_47 = arith.constant 0.000000e+00 : f32
    %123 = vector.broadcast %cst_47 : f32 to vector<16x1xf32>
    %124 = arith.maximumf %122, %123 : vector<16x1xf32>
    %125 = vector.broadcast %118 : vector<16x1xf32> to vector<16x32xf32>
    %126 = arith.subf %107, %125 : vector<16x32xf32>
    %cst_48 = arith.constant 9.99999997E-7 : f32
    %127 = vector.broadcast %cst_48 : f32 to vector<16x1xf32>
    %128 = arith.addf %124, %127 : vector<16x1xf32>
    %129 = math.rsqrt %128 : vector<16x1xf32>
    %130 = vector.broadcast %129 : vector<16x1xf32> to vector<16x32xf32>
    %131 = arith.mulf %126, %130 : vector<16x32xf32>
    %132 = vector.shape_cast %109 : vector<32xf32> to vector<1x32xf32>
    %133 = vector.broadcast %132 : vector<1x32xf32> to vector<16x32xf32>
    %134 = arith.mulf %131, %133 : vector<16x32xf32>
    %135 = vector.shape_cast %111 : vector<32xf32> to vector<1x32xf32>
    %136 = vector.broadcast %135 : vector<1x32xf32> to vector<16x32xf32>
    %137 = arith.addf %134, %136 : vector<16x32xf32>
    %138 = arith.truncf %137 : vector<16x32xf32> to vector<16x32xbf16>
    %c0_49 = arith.constant 0 : index
    %c0_50 = arith.constant 0 : index
    %139 = vector.load %arg10[%c0_49, %c0_50] : memref<32x64xbf16, #tpu.memory_space<vmem>>, vector<32x64xbf16>
    %cst_51 = arith.constant dense<0.000000e+00> : vector<16x64xf32>
    %140 = tpu.matmul %138, %139, %cst_51 {dimension_numbers = #tpu.dot_dimension_numbers<[1], [0], [0], [1], [0, 0, 1, 1], [], []>} : vector<16x32xbf16>, vector<32x64xbf16>, vector<16x64xf32> -> vector<16x64xf32>
    %c0_52 = arith.constant 0 : index
    %c0_53 = arith.constant 0 : index
    %141 = vector.load %arg11[%c0_52, %c0_53] : memref<1x64xf32, #tpu.memory_space<vmem>>, vector<1x64xf32>
    %142 = vector.shape_cast %141 : vector<1x64xf32> to vector<64xf32>
    %143 = vector.shape_cast %142 : vector<64xf32> to vector<1x64xf32>
    %144 = vector.broadcast %143 : vector<1x64xf32> to vector<16x64xf32>
    %145 = arith.addf %140, %144 : vector<16x64xf32>
    %cst_54 = arith.constant 5.000000e-01 : f32
    %146 = vector.broadcast %cst_54 : f32 to vector<16x64xf32>
    %147 = arith.mulf %146, %145 : vector<16x64xf32>
    %cst_55 = arith.constant 0.707106769 : f32
    %148 = vector.broadcast %cst_55 : f32 to vector<16x64xf32>
    %149 = arith.mulf %145, %148 : vector<16x64xf32>
    %cst_56 = arith.constant 0.000000e+00 : f32
    %150 = vector.broadcast %cst_56 : f32 to vector<16x64xf32>
    %151 = arith.cmpf oge, %149, %150 : vector<16x64xf32>
    %cst_57 = arith.constant 1.000000e+00 : f32
    %cst_58 = arith.constant -1.000000e+00 : f32
    %152 = vector.broadcast %cst_57 : f32 to vector<16x64xf32>
    %153 = vector.broadcast %cst_58 : f32 to vector<16x64xf32>
    %154 = arith.select %151, %152, %153 : vector<16x64xi1>, vector<16x64xf32>
    %155 = math.absf %149 : vector<16x64xf32>
    %cst_59 = arith.constant 0.327591091 : f32
    %156 = vector.broadcast %cst_59 : f32 to vector<16x64xf32>
    %157 = arith.mulf %156, %155 : vector<16x64xf32>
    %cst_60 = arith.constant 1.000000e+00 : f32
    %158 = vector.broadcast %cst_60 : f32 to vector<16x64xf32>
    %159 = arith.addf %158, %157 : vector<16x64xf32>
    %cst_61 = arith.constant 1.000000e+00 : f32
    %160 = vector.broadcast %cst_61 : f32 to vector<16x64xf32>
    %161 = arith.divf %160, %159 : vector<16x64xf32>
    %cst_62 = arith.constant 1.06140542 : f32
    %162 = vector.broadcast %cst_62 : f32 to vector<16x64xf32>
    %163 = arith.mulf %162, %161 : vector<16x64xf32>
    %cst_63 = arith.constant -1.45315206 : f32
    %164 = vector.broadcast %cst_63 : f32 to vector<16x64xf32>
    %165 = arith.addf %163, %164 : vector<16x64xf32>
    %166 = arith.mulf %165, %161 : vector<16x64xf32>
    %cst_64 = arith.constant 1.42141378 : f32
    %167 = vector.broadcast %cst_64 : f32 to vector<16x64xf32>
    %168 = arith.addf %166, %167 : vector<16x64xf32>
    %169 = arith.mulf %168, %161 : vector<16x64xf32>
    %cst_65 = arith.constant -0.284496725 : f32
    %170 = vector.broadcast %cst_65 : f32 to vector<16x64xf32>
    %171 = arith.addf %169, %170 : vector<16x64xf32>
    %172 = arith.mulf %171, %161 : vector<16x64xf32>
    %cst_66 = arith.constant 0.254829586 : f32
    %173 = vector.broadcast %cst_66 : f32 to vector<16x64xf32>
    %174 = arith.addf %172, %173 : vector<16x64xf32>
    %175 = arith.mulf %174, %161 : vector<16x64xf32>
    %cst_67 = arith.constant 0.000000e+00 : f32
    %176 = vector.broadcast %cst_67 : f32 to vector<16x64xf32>
    %177 = arith.subf %176, %155 : vector<16x64xf32>
    %178 = arith.mulf %177, %155 : vector<16x64xf32>
    %179 = math.exp %178 : vector<16x64xf32>
    %180 = arith.mulf %175, %179 : vector<16x64xf32>
    %cst_68 = arith.constant 1.000000e+00 : f32
    %181 = vector.broadcast %cst_68 : f32 to vector<16x64xf32>
    %182 = arith.subf %181, %180 : vector<16x64xf32>
    %183 = arith.mulf %154, %182 : vector<16x64xf32>
    %cst_69 = arith.constant 1.000000e+00 : f32
    %184 = vector.broadcast %cst_69 : f32 to vector<16x64xf32>
    %185 = arith.addf %184, %183 : vector<16x64xf32>
    %186 = arith.mulf %147, %185 : vector<16x64xf32>
    %187 = arith.truncf %186 : vector<16x64xf32> to vector<16x64xbf16>
    %c0_70 = arith.constant 0 : index
    %c0_71 = arith.constant 0 : index
    %188 = vector.load %arg12[%c0_70, %c0_71] : memref<64x32xbf16, #tpu.memory_space<vmem>>, vector<64x32xbf16>
    %cst_72 = arith.constant dense<0.000000e+00> : vector<16x32xf32>
    %189 = tpu.matmul %187, %188, %cst_72 {dimension_numbers = #tpu.dot_dimension_numbers<[1], [0], [0], [1], [0, 0, 1, 1], [], []>} : vector<16x64xbf16>, vector<64x32xbf16>, vector<16x32xf32> -> vector<16x32xf32>
    %c0_73 = arith.constant 0 : index
    %c0_74 = arith.constant 0 : index
    %190 = vector.load %arg13[%c0_73, %c0_74] : memref<1x32xf32, #tpu.memory_space<vmem>>, vector<1x32xf32>
    %191 = vector.shape_cast %190 : vector<1x32xf32> to vector<32xf32>
    %192 = vector.shape_cast %191 : vector<32xf32> to vector<1x32xf32>
    %193 = vector.broadcast %192 : vector<1x32xf32> to vector<16x32xf32>
    %194 = arith.addf %189, %193 : vector<16x32xf32>
    %195 = arith.addf %194, %107 : vector<16x32xf32>
    %196 = vector.shape_cast %195 : vector<16x32xf32> to vector<2x8x32xf32>
    %c0_75 = arith.constant 0 : index
    %c0_76 = arith.constant 0 : index
    %c0_77 = arith.constant 0 : index
    %197 = vector.load %arg14[%c0_75, %c0_76, %c0_77] : memref<2x8x32xf32, #tpu.memory_space<vmem>>, vector<2x8x32xf32>
    tpu.vector_store %arg14[%c0_75, %c0_76, %c0_77], %196 {strides = array<i32>} : memref<2x8x32xf32, #tpu.memory_space<vmem>>, vector<2x8x32xf32>,
    return
  }
  func.func @transform_0(%arg0: i32) -> (i32, i32, i32) {
    %c0_i32 = arith.constant 0 : i32
    %c0_i32_0 = arith.constant 0 : i32
    %c0_i32_1 = arith.constant 0 : i32
    return %arg0, %c0_i32, %c0_i32_0 : i32, i32, i32
  }
  func.func @transform_1(%arg0: i32) -> (i32, i32) {
    %c0_i32 = arith.constant 0 : i32
    %c0_i32_0 = arith.constant 0 : i32
    %c0_i32_1 = arith.constant 0 : i32
    return %c0_i32, %c0_i32_0 : i32, i32
  }
  func.func @transform_2(%arg0: i32) -> (i32, i32) {
    %c0_i32 = arith.constant 0 : i32
    %c0_i32_0 = arith.constant 0 : i32
    %c0_i32_1 = arith.constant 0 : i32
    return %c0_i32, %c0_i32_0 : i32, i32
  }
  func.func @transform_3(%arg0: i32) -> (i32, i32) {
    %c0_i32 = arith.constant 0 : i32
    %c0_i32_0 = arith.constant 0 : i32
    %c0_i32_1 = arith.constant 0 : i32
    return %c0_i32, %c0_i32_0 : i32, i32
  }
  func.func @transform_4(%arg0: i32) -> (i32, i32) {
    %c0_i32 = arith.constant 0 : i32
    %c0_i32_0 = arith.constant 0 : i32
    %c0_i32_1 = arith.constant 0 : i32
    return %c0_i32, %c0_i32_0 : i32, i32
  }
  func.func @transform_5(%arg0: i32) -> (i32, i32, i32) {
    %c0_i32 = arith.constant 0 : i32
    %c0_i32_0 = arith.constant 0 : i32
    %c0_i32_1 = arith.constant 0 : i32
    %c0_i32_2 = arith.constant 0 : i32
    return %c0_i32, %c0_i32_0, %c0_i32_1 : i32, i32, i32
  }
  func.func @transform_6(%arg0: i32) -> (i32, i32) {
    %c0_i32 = arith.constant 0 : i32
    %c0_i32_0 = arith.constant 0 : i32
    %c0_i32_1 = arith.constant 0 : i32
    return %c0_i32, %c0_i32_0 : i32, i32
  }
  func.func @transform_7(%arg0: i32) -> (i32, i32) {
    %c0_i32 = arith.constant 0 : i32
    %c0_i32_0 = arith.constant 0 : i32
    %c0_i32_1 = arith.constant 0 : i32
    return %c0_i32, %c0_i32_0 : i32, i32
  }
  func.func @transform_8(%arg0: i32) -> (i32, i32) {
    %c0_i32 = arith.constant 0 : i32
    %c0_i32_0 = arith.constant 0 : i32
    %c0_i32_1 = arith.constant 0 : i32
    return %c0_i32, %c0_i32_0 : i32, i32
  }
  func.func @transform_9(%arg0: i32) -> (i32, i32) {
    %c0_i32 = arith.constant 0 : i32
    %c0_i32_0 = arith.constant 0 : i32
    %c0_i32_1 = arith.constant 0 : i32
    return %c0_i32, %c0_i32_0 : i32, i32
  }
  func.func @transform_10(%arg0: i32) -> (i32, i32) {
    %c0_i32 = arith.constant 0 : i32
    %c0_i32_0 = arith.constant 0 : i32
    %c0_i32_1 = arith.constant 0 : i32
    return %c0_i32, %c0_i32_0 : i32, i32
  }
  func.func @transform_11(%arg0: i32) -> (i32, i32) {
    %c0_i32 = arith.constant 0 : i32
    %c0_i32_0 = arith.constant 0 : i32
    %c0_i32_1 = arith.constant 0 : i32
    return %c0_i32, %c0_i32_0 : i32, i32
  }
  func.func @transform_12(%arg0: i32) -> (i32, i32) {
    %c0_i32 = arith.constant 0 : i32
    %c0_i32_0 = arith.constant 0 : i32
    %c0_i32_1 = arith.constant 0 : i32
    return %c0_i32, %c0_i32_0 : i32, i32
  }
  func.func @transform_13(%arg0: i32) -> (i32, i32, i32) {
    %c0_i32 = arith.constant 0 : i32
    %c0_i32_0 = arith.constant 0 : i32
    %c0_i32_1 = arith.constant 0 : i32
    return %arg0, %c0_i32, %c0_i32_0 : i32, i32, i32
  }
  func.func @transform_14(%arg0: i32) -> (i32, i32, i32, i32) {
    %c0_i32 = arith.constant 0 : i32
    %c0_i32_0 = arith.constant 0 : i32
    %c0_i32_1 = arith.constant 0 : i32
    %c0_i32_2 = arith.constant 0 : i32
    return %arg0, %c0_i32, %c0_i32_0, %c0_i32_1 : i32, i32, i32, i32
  }
}

</mosaic_0001>

<llo_original>
// kernel: tpu_custom_call.1
$region0: #{tpu_custom_call.1}
  #allocation0 [shape = 'u32[]', space=smem, size = 0x4, offset = 0x4, fixed_abs, tag = 'smem constant byte address 0x4 - core index']
  #allocation1 [shape = 'u32[144,128]{1,0:T(1,128)}', space=vmem, size = 0x12000, scoped, tag = 'internal scratch']
  %s0 = inlined_call_operand.vmem [shape: f32[2,8,32], index: 0, kind: input, shape index: {}]
  %s1 = inlined_call_operand.vmem [shape: f32[1,32], index: 1, kind: input, shape index: {}]
  %s2 = inlined_call_operand.vmem [shape: f32[1,32], index: 2, kind: input, shape index: {}]
  %s3 = inlined_call_operand.vmem [shape: bf16[32,96], index: 3, kind: input, shape index: {}]
  %s4 = inlined_call_operand.hbm [shape: f32[1,96], index: 4, kind: input, shape index: {}]
  %s5 = inlined_call_operand.vmem [shape: bf16[4,8,32], index: 5, kind: input, shape index: {}]
  %s6 = inlined_call_operand.hbm [shape: f32[1,32], index: 6, kind: input, shape index: {}]
  %s7 = inlined_call_operand.hbm [shape: f32[1,32], index: 7, kind: input, shape index: {}]
  %s8 = inlined_call_operand.hbm [shape: f32[1,32], index: 8, kind: input, shape index: {}]
  %s9 = inlined_call_operand.vmem [shape: bf16[32,64], index: 9, kind: input, shape index: {}]
  %s10 = inlined_call_operand.vmem [shape: f32[1,64], index: 10, kind: input, shape index: {}]
  %s11 = inlined_call_operand.vmem [shape: bf16[64,32], index: 11, kind: input, shape index: {}]
  %s12 = inlined_call_operand.vmem [shape: f32[1,32], index: 12, kind: input, shape index: {}]
  %s13 = inlined_call_operand.hbm [shape: f32[2,8,32], index: 13, kind: output, shape index: {0}]
  %s14 = inlined_call_operand.hbm [shape: f32[2,4,8,8], index: 14, kind: output, shape index: {1}]
  %15 = xla_tuple %s13, %s14
  %s16 = sld [smem:[#allocation0]]
  $region86: #{tpu_custom_call.1} parent=0
    _
  %s18 = ssub.s32 1, %s16
  %s19 = scalar_select 0, %s18, %s16
  $region1: #{tpu_custom_call.1} parent=0
    #allocation2 [shape = 'u8[512]{0}', space=vmem, size = 0x400, scoped, tag = 'input window, operand 4, single buffered']
    #allocation3 [shape = 's32[1]{0}', space=sflag, size = 0x4, scoped, tag = 'scoped memory for tpu_custom_call.1']
    #allocation4 [shape = 's32[1]{0}', space=sflag, size = 0x4, scoped, tag = 'scoped memory for tpu_custom_call.1']
    #allocation5 [shape = 'u8[512]{0}', space=vmem, size = 0x400, scoped, tag = 'input window, operand 6, single buffered']
    #allocation6 [shape = 's32[1]{0}', space=sflag, size = 0x4, scoped, tag = 'scoped memory for tpu_custom_call.1']
    #allocation7 [shape = 'u8[512]{0}', space=vmem, size = 0x400, scoped, tag = 'input window, operand 7, single buffered']
    #allocation8 [shape = 'u8[512]{0}', space=vmem, size = 0x400, scoped, tag = 'input window, operand 8, single buffered']
    #allocation9 [shape = 's32[1]{0}', space=sflag, size = 0x4, scoped, tag = 'scoped memory for tpu_custom_call.1']
    #allocation10 [shape = 'u8[8192]{0}', space=vmem, size = 0x2000, scoped, tag = 'output window, operand 0, single buffered']
    #allocation11 [shape = 'u8[32768]{0}', space=vmem, size = 0x8000, scoped, tag = 'output window, operand 1, single buffered']
    #allocation12 [shape = 's32[1]{0}', space=sflag, size = 0x4, scoped, tag = 'scoped memory for tpu_custom_call.1']
    %20 = vsyncpa [#allocation3], 0
    %21 = vsyncpa [#allocation6], 0
    %22 = vsyncpa [#allocation9], 0
    %23 = vsyncpa [#allocation4], 0
    %24 = vsyncpa [#allocation12], 0
    // Predicated region
    $region2: #{tpu_custom_call.1} parent=1 // pred_check
      _
    $region3: #{tpu_custom_call.1} parent=1 // pred_check_branch
      %26 = sbr.rel (0) target = $region5
    $region4: #{tpu_custom_call.1} parent=1 // pred_region
      _
    $region5: #{tpu_custom_call.1} parent=1 // pred_fallthru
      _
    // Predicated region
    $region6: #{tpu_custom_call.1} parent=1 // pred_check
      _
    $region7: #{tpu_custom_call.1} parent=1 // pred_check_branch
      %28 = sbr.rel (0) target = $region9
    $region8: #{tpu_custom_call.1} parent=1 // pred_region
      _
    $region9: #{tpu_custom_call.1} parent=1 // pred_fallthru
      _
    // Predicated region
    $region10: #{tpu_custom_call.1} parent=1 // pred_check
      _
    $region11: #{tpu_custom_call.1} parent=1 // pred_check_branch
      %30 = sbr.rel (0) target = $region13
    $region12: #{tpu_custom_call.1} parent=1 // pred_region
      _
    $region13: #{tpu_custom_call.1} parent=1 // pred_fallthru
      _
    // Predicated region
    $region14: #{tpu_custom_call.1} parent=1 // pred_check
      _
    $region15: #{tpu_custom_call.1} parent=1 // pred_check_branch
      %32 = sbr.rel (0) target = $region17
    $region16: #{tpu_custom_call.1} parent=1 // pred_region
      _
    $region17: #{tpu_custom_call.1} parent=1 // pred_fallthru
      _
    // Predicated region
    $region18: #{tpu_custom_call.1} parent=1 // pred_check
      _
    $region19: #{tpu_custom_call.1} parent=1 // pred_check_branch
      %34 = sbr.rel (0) target = $region21
    $region20: #{tpu_custom_call.1} parent=1 // pred_region
      %s36 = ssub.s32 16, 16
      %37 = vsyncadd [#allocation3], %s36
      %s39 = sshll.u32 [#allocation2], 4
      %s40 = int_to_ptr.vmem [resolvable:$true] %s39
      %42 = dma.hbm_to_vmem [thread:$0]  %s4, 16, %s40, [#allocation3]
    $region21: #{tpu_custom_call.1} parent=1 // pred_fallthru
      _
    // Predicated region
    $region22: #{tpu_custom_call.1} parent=1 // pred_check
      _
    $region23: #{tpu_custom_call.1} parent=1 // pred_check_branch
      %44 = sbr.rel (0) target = $region25
    $region24: #{tpu_custom_call.1} parent=1 // pred_region
      _
    $region25: #{tpu_custom_call.1} parent=1 // pred_fallthru
      _
    // Predicated region
    $region26: #{tpu_custom_call.1} parent=1 // pred_check
      _
    $region27: #{tpu_custom_call.1} parent=1 // pred_check_branch
      %46 = sbr.rel (0) target = $region29
    $region28: #{tpu_custom_call.1} parent=1 // pred_region
      %s48 = ssub.s32 16, 16
      %49 = vsyncadd [#allocation6], %s48
      %s51 = sshll.u32 [#allocation5], 4
      %s52 = int_to_ptr.vmem [resolvable:$true] %s51
      %54 = dma.hbm_to_vmem [thread:$0]  %s6, 16, %s52, [#allocation6]
    $region29: #{tpu_custom_call.1} parent=1 // pred_fallthru
      _
    // Predicated region
    $region30: #{tpu_custom_call.1} parent=1 // pred_check
      _
    $region31: #{tpu_custom_call.1} parent=1 // pred_check_branch
      %56 = sbr.rel (0) target = $region33
    $region32: #{tpu_custom_call.1} parent=1 // pred_region
      %s58 = ssub.s32 16, 16
      %59 = vsyncadd [#allocation6], %s58
      %s61 = sshll.u32 [#allocation7], 4
      %s62 = int_to_ptr.vmem [resolvable:$true] %s61
      %64 = dma.hbm_to_vmem [thread:$0]  %s7, 16, %s62, [#allocation6]
    $region33: #{tpu_custom_call.1} parent=1 // pred_fallthru
      _
    // Predicated region
    $region34: #{tpu_custom_call.1} parent=1 // pred_check
      _
    $region35: #{tpu_custom_call.1} parent=1 // pred_check_branch
      %66 = sbr.rel (0) target = $region37
    $region36: #{tpu_custom_call.1} parent=1 // pred_region
      %s68 = ssub.s32 16, 16
      %69 = vsyncadd [#allocation9], %s68
      %s71 = sshll.u32 [#allocation8], 4
      %s72 = int_to_ptr.vmem [resolvable:$true] %s71
      %74 = dma.hbm_to_vmem [thread:$0]  %s8, 16, %s72, [#allocation9]
    $region37: #{tpu_custom_call.1} parent=1 // pred_fallthru
      _
    // Predicated region
    $region38: #{tpu_custom_call.1} parent=1 // pred_check
      _
    $region39: #{tpu_custom_call.1} parent=1 // pred_check_branch
      %76 = sbr.rel (0) target = $region41
    $region40: #{tpu_custom_call.1} parent=1 // pred_region
      _
    $region41: #{tpu_custom_call.1} parent=1 // pred_fallthru
      _
    // Predicated region
    $region42: #{tpu_custom_call.1} parent=1 // pred_check
      _
    $region43: #{tpu_custom_call.1} parent=1 // pred_check_branch
      %78 = sbr.rel (0) target = $region45
    $region44: #{tpu_custom_call.1} parent=1 // pred_region
      _
    $region45: #{tpu_custom_call.1} parent=1 // pred_fallthru
      _
    // Predicated region
    $region46: #{tpu_custom_call.1} parent=1 // pred_check
      _
    $region47: #{tpu_custom_call.1} parent=1 // pred_check_branch
      %80 = sbr.rel (0) target = $region49
    $region48: #{tpu_custom_call.1} parent=1 // pred_region
      _
    $region49: #{tpu_custom_call.1} parent=1 // pred_fallthru
      _
    // Predicated region
    $region50: #{tpu_custom_call.1} parent=1 // pred_check
      _
    $region51: #{tpu_custom_call.1} parent=1 // pred_check_branch
      %82 = sbr.rel (0) target = $region53
    $region52: #{tpu_custom_call.1} parent=1 // pred_region
      _
    $region53: #{tpu_custom_call.1} parent=1 // pred_fallthru
      _
    // Predicated region
    $region54: #{tpu_custom_call.1} parent=1 // pred_check
      _
    $region55: #{tpu_custom_call.1} parent=1 // pred_check_branch
      %84 = sbr.rel (0) target = $region57
    $region56: #{tpu_custom_call.1} parent=1 // pred_region
      %85 = dma.done [#allocation3], 16
    $region57: #{tpu_custom_call.1} parent=1 // pred_fallthru
      _
    // Predicated region
    $region58: #{tpu_custom_call.1} parent=1 // pred_check
      _
    $region59: #{tpu_custom_call.1} parent=1 // pred_check_branch
      %87 = sbr.rel (0) target = $region61
    $region60: #{tpu_custom_call.1} parent=1 // pred_region
      %88 = dma.done [#allocation6], 16
    $region61: #{tpu_custom_call.1} parent=1 // pred_fallthru
      _
    // Predicated region
    $region62: #{tpu_custom_call.1} parent=1 // pred_check
      _
    $region63: #{tpu_custom_call.1} parent=1 // pred_check_branch
      %90 = sbr.rel (0) target = $region65
    $region64: #{tpu_custom_call.1} parent=1 // pred_region
      %91 = dma.done [#allocation6], 16
    $region65: #{tpu_custom_call.1} parent=1 // pred_fallthru
      _
    // Predicated region
    $region66: #{tpu_custom_call.1} parent=1 // pred_check
      _
    $region67: #{tpu_custom_call.1} parent=1 // pred_check_branch
      %93 = sbr.rel (0) target = $region69
    $region68: #{tpu_custom_call.1} parent=1 // pred_region
      %94 = dma.done [#allocation9], 16
    $region69: #{tpu_custom_call.1} parent=1 // pred_fallthru
      _
    %v96 = vld [vmem:[%s0] sm:$0xff]
    %v97 = vld [vmem:[%s0 + $0x8] sm:$0xff]
    %v98 = vld [vmem:[%s1] sm:$0x1]
    %v99 = vld [vmem:[%s2] sm:$0x1]
    %vm100 = vcmask 261120
    %v101 = vsel %vm100, %v96, 0.0
    %102 = vadd.xlane.f32.xlu0 %v101
    %v103 = vpop.xlane.xlu0 %102
    %v104 = vsel %vm100, %v97, 0.0
    %105 = vadd.xlane.f32.xlu0 %v104
    %v106 = vpop.xlane.xlu0 %105
    %v107 = vmul.f32 %v96, %v96
    %v108 = vmul.f32 %v97, %v97
    %v109 = vsel %vm100, %v107, 0.0
    %110 = vadd.xlane.f32.xlu0 %v109
    %v111 = vpop.xlane.xlu0 %110
    %v112 = vsel %vm100, %v108, 0.0
    %113 = vadd.xlane.f32.xlu0 %v112
    %v114 = vpop.xlane.xlu0 %113
    %v115 = vmul.f32 %v103, 0.03125
    %v116 = vmul.f32 %v106, 0.03125
    %v117 = vmul.f32 %v111, 0.03125
    %v118 = vmul.f32 %v114, 0.03125
    %v119 = vmul.f32 %v115, %v115
    %v120 = vmul.f32 %v116, %v116
    %v121 = vsub.f32 %v117, %v119
    %v122 = vsub.f32 %v118, %v120
    %v123 = vmax.f32 %v121, 0.0
    %v124 = vmax.f32 %v122, 0.0
    %v125 = vsub.f32 %v96, %v115
    %v126 = vsub.f32 %v97, %v116
    %v127 = vadd.f32 %v123, 1e-06
    %v128 = vadd.f32 %v124, 1e-06
    %v129 = vrsqrt.pop %v127
    %v130 = vrsqrt.pop %v128
    %v131 = vmul.f32 %v125, %v129
    %v132 = vmul.f32 %v126, %v130
    %v134 = vlaneseq
    %v135 = vshrl.u32 %v134, 7
    %v136 = vsub.s32 0, %v135
    %v137 = vrot.slane %v98, %v136
    %v139 = vmul.f32 %v131, %v137
    %v140 = vmul.f32 %v132, %v137
    %v142 = vlaneseq
    %v143 = vshrl.u32 %v142, 7
    %v144 = vsub.s32 0, %v143
    %v145 = vrot.slane %v99, %v144
    %v147 = vadd.f32 %v139, %v145
    %v148 = vadd.f32 %v140, %v145
    %v149 = vpack.c.bf16 %v148, %v147
    %v150 = vld [vmem:[%s3] sm:$0xf]
    %v151 = vld [vmem:[%s3 + $0x4] sm:$0xf]
    %v152 = vld [vmem:[%s3 + $0x8] sm:$0xf]
    %v153 = vld [vmem:[%s3 + $0xc] sm:$0xf]
    %v154 = vld [vmem:[#allocation2] sm:$0x1]
    %v156 = vlaneseq
    %v157 = vshrl.u32 %v156, 7
    %v158 = vsub.s32 0, %v157
    %v159 = vrot.slane %v154, %v158
    %v165 = vunpack.c.l.b16 %v150
    %v166 = vunpack.c.l.b16 %v151
    %v167 = vunpack.c.l.b16 %v152
    %v168 = vunpack.c.l.b16 %v153
    %v169 = vpack.c.b16 %v166, %v165
    %v170 = vpack.c.b16 %v168, %v167
    %v174 = vsel %vm100, %v149, 0
    %176 = vmatprep.subr.bf16.mxu0 0
    %177 = vmatpush1.bf16.msra.mxu0 %v169
    %178 = vmatprep.subr.bf16.mxu0 0
    %179 = vmatpush1.bf16.msra.mxu0 %v170
    %180 = vmatprep.subr.bf16.mxu0 0
    %181 = vmatpush1.bf16.msra.mxu0 0
    %182 = vmatprep.subr.bf16.mxu0 0
    %183 = vmatpush1.bf16.msra.mxu0 0
    %184 = vmatprep.subr.bf16.mxu0 0
    %185 = vmatpush1.bf16.msra.mxu0 0
    %186 = vmatprep.subr.bf16.mxu0 0
    %187 = vmatpush1.bf16.msra.mxu0 0
    %188 = vmatprep.subr.bf16.mxu0 0
    %189 = vmatpush1.bf16.msra.mxu0 0
    %190 = vmatprep.subr.bf16.mxu0 0
    %191 = vmatpush1.bf16.msra.mxu0 0
    %192 = vmatprep.subr.bf16.mxu0 0
    %193 = vmatpush1.bf16.msra.mxu0 0
    %194 = vmatprep.subr.bf16.mxu0 0
    %195 = vmatpush1.bf16.msra.mxu0 0
    %196 = vmatprep.subr.bf16.mxu0 0
    %197 = vmatpush1.bf16.msra.mxu0 0
    %198 = vmatprep.subr.bf16.mxu0 0
    %199 = vmatpush1.bf16.msra.mxu0 0
    %200 = vmatprep.subr.bf16.mxu0 0
    %201 = vmatpush1.bf16.msra.mxu0 0
    %202 = vmatprep.subr.bf16.mxu0 0
    %203 = vmatpush1.bf16.msra.mxu0 0
    %204 = vmatprep.subr.bf16.mxu0 0
    %205 = vmatpush1.bf16.msra.mxu0 0
    %206 = vmatprep.subr.bf16.mxu0 0
    %207 = vmatpush1.bf16.msra.mxu0 0
    %208 = vmatprep.mubr.bf16.mxu0 0
    %209 = vmatmul.mubr.bf16.gmra.mrb[0].mxu0 %v174
    %v210 = vpop.f32.mrb[0].mxu0
    %v211 = vadd.f32 %v159, %v210
    %v212 = vpop.f32.mrb[0].mxu0
    %v213 = vpop.f32.mrb[0].mxu0
    %v214 = vadd.f32 %v159, %v213
    %v215 = vpop.f32.mrb[0].mxu0
    %216 = vdwg.mxu0
    %219 = vrot.lane.b32.xlu0 %v211, 120
    %v220 = vpop.permute.xlu0 %219
    %221 = vrot.lane.b32.xlu0 %v214, 120
    %v222 = vpop.permute.xlu0 %221
    %225 = vrot.lane.b32.xlu0 %v211, 112
    %v226 = vpop.permute.xlu0 %225
    %227 = vrot.lane.b32.xlu0 %v214, 112
    %v228 = vpop.permute.xlu0 %227
    %231 = vrot.lane.b32.xlu0 %v211, 104
    %v232 = vpop.permute.xlu0 %231
    %233 = vrot.lane.b32.xlu0 %v214, 104
    %v234 = vpop.permute.xlu0 %233
    %v237 = vcombine.low %v211, %v226
    %v238 = vcombine.high %v211, %v226
    %v240 = vunpack.c.l.s4 1983009808
    %v241 = vunpack.c.0.s8 %v240
    %v242 = vlaneseq
    %v243 = vshrl.u32 %v242, 7
    %v244 = vsub.s32 %v241, %v243
    %v245 = vrot.slane %v237, %v244
    %v247 = vunpack.c.l.s4 1983009808
    %v248 = vunpack.c.0.s8 %v247
    %v249 = vlaneseq
    %v250 = vshrl.u32 %v249, 7
    %v251 = vsub.s32 %v248, %v250
    %v252 = vrot.slane %v238, %v251
    %v253 = vcombine.low %v220, %v232
    %v254 = vcombine.high %v220, %v232
    %v256 = vunpack.c.l.s4 1983009808
    %v257 = vunpack.c.0.s8 %v256
    %v258 = vlaneseq
    %v259 = vshrl.u32 %v258, 7
    %v260 = vsub.s32 %v257, %v259
    %v261 = vrot.slane %v253, %v260
    %v263 = vunpack.c.l.s4 1983009808
    %v264 = vunpack.c.0.s8 %v263
    %v265 = vlaneseq
    %v266 = vshrl.u32 %v265, 7
    %v267 = vsub.s32 %v264, %v266
    %v268 = vrot.slane %v254, %v267
    %v269 = vcombine.low %v245, %v261
    %v270 = vcombine.high %v245, %v261
    %v272 = vunpack.c.l.s4 1934713408
    %v273 = vunpack.c.0.s8 %v272
    %v274 = vlaneseq
    %v275 = vshrl.u32 %v274, 7
    %v276 = vsub.s32 %v273, %v275
    %v277 = vrot.slane %v269, %v276
    %v279 = vunpack.c.l.s4 1934713408
    %v280 = vunpack.c.0.s8 %v279
    %v281 = vlaneseq
    %v282 = vshrl.u32 %v281, 7
    %v283 = vsub.s32 %v280, %v282
    %v284 = vrot.slane %v270, %v283
    %v285 = vcombine.low %v252, %v268
    %v286 = vcombine.high %v252, %v268
    %v288 = vunpack.c.l.s4 1934713408
    %v289 = vunpack.c.0.s8 %v288
    %v290 = vlaneseq
    %v291 = vshrl.u32 %v290, 7
    %v292 = vsub.s32 %v289, %v291
    %v293 = vrot.slane %v285, %v292
    %v295 = vunpack.c.l.s4 1934713408
    %v296 = vunpack.c.0.s8 %v295
    %v297 = vlaneseq
    %v298 = vshrl.u32 %v297, 7
    %v299 = vsub.s32 %v296, %v298
    %v300 = vrot.slane %v286, %v299
    %v301 = vcombine.high %v277, 0.0
    %v302 = vcombine.high %v284, 0.0
    %v303 = vcombine.high %v293, 0.0
    %v304 = vcombine.high %v300, 0.0
    %v305 = vcombine.low %v214, %v228
    %v306 = vcombine.high %v214, %v228
    %v308 = vunpack.c.l.s4 1983009808
    %v309 = vunpack.c.0.s8 %v308
    %v310 = vlaneseq
    %v311 = vshrl.u32 %v310, 7
    %v312 = vsub.s32 %v309, %v311
    %v313 = vrot.slane %v305, %v312
    %v315 = vunpack.c.l.s4 1983009808
    %v316 = vunpack.c.0.s8 %v315
    %v317 = vlaneseq
    %v318 = vshrl.u32 %v317, 7
    %v319 = vsub.s32 %v316, %v318
    %v320 = vrot.slane %v306, %v319
    %v321 = vcombine.low %v222, %v234
    %v322 = vcombine.high %v222, %v234
    %v324 = vunpack.c.l.s4 1983009808
    %v325 = vunpack.c.0.s8 %v324
    %v326 = vlaneseq
    %v327 = vshrl.u32 %v326, 7
    %v328 = vsub.s32 %v325, %v327
    %v329 = vrot.slane %v321, %v328
    %v331 = vunpack.c.l.s4 1983009808
    %v332 = vunpack.c.0.s8 %v331
    %v333 = vlaneseq
    %v334 = vshrl.u32 %v333, 7
    %v335 = vsub.s32 %v332, %v334
    %v336 = vrot.slane %v322, %v335
    %v337 = vcombine.low %v313, %v329
    %v338 = vcombine.high %v313, %v329
    %v340 = vunpack.c.l.s4 1934713408
    %v341 = vunpack.c.0.s8 %v340
    %v342 = vlaneseq
    %v343 = vshrl.u32 %v342, 7
    %v344 = vsub.s32 %v341, %v343
    %v345 = vrot.slane %v337, %v344
    %v347 = vunpack.c.l.s4 1934713408
    %v348 = vunpack.c.0.s8 %v347
    %v349 = vlaneseq
    %v350 = vshrl.u32 %v349, 7
    %v351 = vsub.s32 %v348, %v350
    %v352 = vrot.slane %v338, %v351
    %v353 = vcombine.low %v320, %v336
    %v354 = vcombine.high %v320, %v336
    %v356 = vunpack.c.l.s4 1934713408
    %v357 = vunpack.c.0.s8 %v356
    %v358 = vlaneseq
    %v359 = vshrl.u32 %v358, 7
    %v360 = vsub.s32 %v357, %v359
    %v361 = vrot.slane %v353, %v360
    %v363 = vunpack.c.l.s4 1934713408
    %v364 = vunpack.c.0.s8 %v363
    %v365 = vlaneseq
    %v366 = vshrl.u32 %v365, 7
    %v367 = vsub.s32 %v364, %v366
    %v368 = vrot.slane %v354, %v367
    %v369 = vcombine.high %v345, 0.0
    %v370 = vcombine.high %v352, 0.0
    %v371 = vcombine.high %v361, 0.0
    %v372 = vcombine.high %v368, 0.0
    %v373 = vcombine.low %v277, %v284
    %v375 = vunpack.c.l.s4 1983009808
    %v376 = vunpack.c.0.s8 %v375
    %v377 = vlaneseq
    %v378 = vshrl.u32 %v377, 7
    %v379 = vsub.s32 %v376, %v378
    %v380 = vrot.slane %v373, %v379
    %v381 = vcombine.low %v301, %v302
    %v383 = vunpack.c.l.s4 1983009808
    %v384 = vunpack.c.0.s8 %v383
    %v385 = vlaneseq
    %v386 = vshrl.u32 %v385, 7
    %v387 = vsub.s32 %v384, %v386
    %v388 = vrot.slane %v381, %v387
    %v389 = vcombine.low %v293, %v300
    %v391 = vunpack.c.l.s4 1983009808
    %v392 = vunpack.c.0.s8 %v391
    %v393 = vlaneseq
    %v394 = vshrl.u32 %v393, 7
    %v395 = vsub.s32 %v392, %v394
    %v396 = vrot.slane %v389, %v395
    %v397 = vcombine.low %v303, %v304
    %v399 = vunpack.c.l.s4 1983009808
    %v400 = vunpack.c.0.s8 %v399
    %v401 = vlaneseq
    %v402 = vshrl.u32 %v401, 7
    %v403 = vsub.s32 %v400, %v402
    %v404 = vrot.slane %v397, %v403
    %v405 = vcombine.low %v380, %v388
    %v406 = vcombine.high %v380, %v388
    %v408 = vunpack.c.l.s4 1934713408
    %v409 = vunpack.c.0.s8 %v408
    %v410 = vlaneseq
    %v411 = vshrl.u32 %v410, 7
    %v412 = vsub.s32 %v409, %v411
    %v413 = vrot.slane %v405, %v412
    %v415 = vunpack.c.l.s4 1934713408
    %v416 = vunpack.c.0.s8 %v415
    %v417 = vlaneseq
    %v418 = vshrl.u32 %v417, 7
    %v419 = vsub.s32 %v416, %v418
    %v420 = vrot.slane %v406, %v419
    %v421 = vcombine.low %v396, %v404
    %v422 = vcombine.high %v396, %v404
    %v424 = vunpack.c.l.s4 1934713408
    %v425 = vunpack.c.0.s8 %v424
    %v426 = vlaneseq
    %v427 = vshrl.u32 %v426, 7
    %v428 = vsub.s32 %v425, %v427
    %v429 = vrot.slane %v421, %v428
    %v431 = vunpack.c.l.s4 1934713408
    %v432 = vunpack.c.0.s8 %v431
    %v433 = vlaneseq
    %v434 = vshrl.u32 %v433, 7
    %v435 = vsub.s32 %v432, %v434
    %v436 = vrot.slane %v422, %v435
    %v437 = vcombine.low %v413, %v429
    %v438 = vcombine.high %v413, %v429
    %v439 = vcombine.low %v420, %v436
    %v440 = vcombine.high %v420, %v436
    %v441 = vcombine.low %v345, %v352
    %v443 = vunpack.c.l.s4 1983009808
    %v444 = vunpack.c.0.s8 %v443
    %v445 = vlaneseq
    %v446 = vshrl.u32 %v445, 7
    %v447 = vsub.s32 %v444, %v446
    %v448 = vrot.slane %v441, %v447
    %v449 = vcombine.low %v369, %v370
    %v451 = vunpack.c.l.s4 1983009808
    %v452 = vunpack.c.0.s8 %v451
    %v453 = vlaneseq
    %v454 = vshrl.u32 %v453, 7
    %v455 = vsub.s32 %v452, %v454
    %v456 = vrot.slane %v449, %v455
    %v457 = vcombine.low %v361, %v368
    %v459 = vunpack.c.l.s4 1983009808
    %v460 = vunpack.c.0.s8 %v459
    %v461 = vlaneseq
    %v462 = vshrl.u32 %v461, 7
    %v463 = vsub.s32 %v460, %v462
    %v464 = vrot.slane %v457, %v463
    %v465 = vcombine.low %v371, %v372
    %v467 = vunpack.c.l.s4 1983009808
    %v468 = vunpack.c.0.s8 %v467
    %v469 = vlaneseq
    %v470 = vshrl.u32 %v469, 7
    %v471 = vsub.s32 %v468, %v470
    %v472 = vrot.slane %v465, %v471
    %v473 = vcombine.low %v448, %v456
    %v474 = vcombine.high %v448, %v456
    %v476 = vunpack.c.l.s4 1934713408
    %v477 = vunpack.c.0.s8 %v476
    %v478 = vlaneseq
    %v479 = vshrl.u32 %v478, 7
    %v480 = vsub.s32 %v477, %v479
    %v481 = vrot.slane %v473, %v480
    %v483 = vunpack.c.l.s4 1934713408
    %v484 = vunpack.c.0.s8 %v483
    %v485 = vlaneseq
    %v486 = vshrl.u32 %v485, 7
    %v487 = vsub.s32 %v484, %v486
    %v488 = vrot.slane %v474, %v487
    %v489 = vcombine.low %v464, %v472
    %v490 = vcombine.high %v464, %v472
    %v492 = vunpack.c.l.s4 1934713408
    %v493 = vunpack.c.0.s8 %v492
    %v494 = vlaneseq
    %v495 = vshrl.u32 %v494, 7
    %v496 = vsub.s32 %v493, %v495
    %v497 = vrot.slane %v489, %v496
    %v499 = vunpack.c.l.s4 1934713408
    %v500 = vunpack.c.0.s8 %v499
    %v501 = vlaneseq
    %v502 = vshrl.u32 %v501, 7
    %v503 = vsub.s32 %v500, %v502
    %v504 = vrot.slane %v490, %v503
    %v505 = vcombine.low %v481, %v497
    %v506 = vcombine.high %v481, %v497
    %v507 = vcombine.low %v488, %v504
    %v508 = vcombine.high %v488, %v504
    %v509 = vpack.c.bf16 %v437, %v437
    %v510 = vpack.c.bf16 %v438, %v438
    %v511 = vpack.c.bf16 %v439, %v439
    %v512 = vpack.c.bf16 %v440, %v440
    %v513 = vpack.c.bf16 %v505, %v505
    %v514 = vpack.c.bf16 %v506, %v506
    %v515 = vpack.c.bf16 %v507, %v507
    %v516 = vpack.c.bf16 %v508, %v508
    %517 = vrot.lane.b32.xlu0 %v211, 96
    %v518 = vpop.permute.xlu0 %517
    %519 = vrot.lane.b32.xlu0 %v214, 96
    %v520 = vpop.permute.xlu0 %519
    %521 = vrot.lane.b32.xlu0 %v220, 96
    %v522 = vpop.permute.xlu0 %521
    %523 = vrot.lane.b32.xlu0 %v222, 96
    %v524 = vpop.permute.xlu0 %523
    %525 = vrot.lane.b32.xlu0 %v226, 96
    %v526 = vpop.permute.xlu0 %525
    %527 = vrot.lane.b32.xlu0 %v228, 96
    %v528 = vpop.permute.xlu0 %527
    %529 = vrot.lane.b32.xlu0 %v232, 96
    %v530 = vpop.permute.xlu0 %529
    %531 = vrot.lane.b32.xlu0 %v234, 96
    %v532 = vpop.permute.xlu0 %531
    %v541 = vcombine.low %v518, %v526
    %v542 = vcombine.high %v518, %v526
    %v544 = vunpack.c.l.s4 1983009808
    %v545 = vunpack.c.0.s8 %v544
    %v546 = vlaneseq
    %v547 = vshrl.u32 %v546, 7
    %v548 = vsub.s32 %v545, %v547
    %v549 = vrot.slane %v541, %v548
    %v551 = vunpack.c.l.s4 1983009808
    %v552 = vunpack.c.0.s8 %v551
    %v553 = vlaneseq
    %v554 = vshrl.u32 %v553, 7
    %v555 = vsub.s32 %v552, %v554
    %v556 = vrot.slane %v542, %v555
    %v557 = vcombine.low %v522, %v530
    %v558 = vcombine.high %v522, %v530
    %v560 = vunpack.c.l.s4 1983009808
    %v561 = vunpack.c.0.s8 %v560
    %v562 = vlaneseq
    %v563 = vshrl.u32 %v562, 7
    %v564 = vsub.s32 %v561, %v563
    %v565 = vrot.slane %v557, %v564
    %v567 = vunpack.c.l.s4 1983009808
    %v568 = vunpack.c.0.s8 %v567
    %v569 = vlaneseq
    %v570 = vshrl.u32 %v569, 7
    %v571 = vsub.s32 %v568, %v570
    %v572 = vrot.slane %v558, %v571
    %v573 = vcombine.low %v549, %v565
    %v574 = vcombine.high %v549, %v565
    %v576 = vunpack.c.l.s4 1934713408
    %v577 = vunpack.c.0.s8 %v576
    %v578 = vlaneseq
    %v579 = vshrl.u32 %v578, 7
    %v580 = vsub.s32 %v577, %v579
    %v581 = vrot.slane %v573, %v580
    %v583 = vunpack.c.l.s4 1934713408
    %v584 = vunpack.c.0.s8 %v583
    %v585 = vlaneseq
    %v586 = vshrl.u32 %v585, 7
    %v587 = vsub.s32 %v584, %v586
    %v588 = vrot.slane %v574, %v587
    %v589 = vcombine.low %v556, %v572
    %v590 = vcombine.high %v556, %v572
    %v592 = vunpack.c.l.s4 1934713408
    %v593 = vunpack.c.0.s8 %v592
    %v594 = vlaneseq
    %v595 = vshrl.u32 %v594, 7
    %v596 = vsub.s32 %v593, %v595
    %v597 = vrot.slane %v589, %v596
    %v599 = vunpack.c.l.s4 1934713408
    %v600 = vunpack.c.0.s8 %v599
    %v601 = vlaneseq
    %v602 = vshrl.u32 %v601, 7
    %v603 = vsub.s32 %v600, %v602
    %v604 = vrot.slane %v590, %v603
    %v605 = vcombine.high %v581, 0.0
    %v606 = vcombine.high %v588, 0.0
    %v607 = vcombine.high %v597, 0.0
    %v608 = vcombine.high %v604, 0.0
    %v609 = vcombine.low %v520, %v528
    %v610 = vcombine.high %v520, %v528
    %v612 = vunpack.c.l.s4 1983009808
    %v613 = vunpack.c.0.s8 %v612
    %v614 = vlaneseq
    %v615 = vshrl.u32 %v614, 7
    %v616 = vsub.s32 %v613, %v615
    %v617 = vrot.slane %v609, %v616
    %v619 = vunpack.c.l.s4 1983009808
    %v620 = vunpack.c.0.s8 %v619
    %v621 = vlaneseq
    %v622 = vshrl.u32 %v621, 7
    %v623 = vsub.s32 %v620, %v622
    %v624 = vrot.slane %v610, %v623
    %v625 = vcombine.low %v524, %v532
    %v626 = vcombine.high %v524, %v532
    %v628 = vunpack.c.l.s4 1983009808
    %v629 = vunpack.c.0.s8 %v628
    %v630 = vlaneseq
    %v631 = vshrl.u32 %v630, 7
    %v632 = vsub.s32 %v629, %v631
    %v633 = vrot.slane %v625, %v632
    %v635 = vunpack.c.l.s4 1983009808
    %v636 = vunpack.c.0.s8 %v635
    %v637 = vlaneseq
    %v638 = vshrl.u32 %v637, 7
    %v639 = vsub.s32 %v636, %v638
    %v640 = vrot.slane %v626, %v639
    %v641 = vcombine.low %v617, %v633
    %v642 = vcombine.high %v617, %v633
    %v644 = vunpack.c.l.s4 1934713408
    %v645 = vunpack.c.0.s8 %v644
    %v646 = vlaneseq
    %v647 = vshrl.u32 %v646, 7
    %v648 = vsub.s32 %v645, %v647
    %v649 = vrot.slane %v641, %v648
    %v651 = vunpack.c.l.s4 1934713408
    %v652 = vunpack.c.0.s8 %v651
    %v653 = vlaneseq
    %v654 = vshrl.u32 %v653, 7
    %v655 = vsub.s32 %v652, %v654
    %v656 = vrot.slane %v642, %v655
    %v657 = vcombine.low %v624, %v640
    %v658 = vcombine.high %v624, %v640
    %v660 = vunpack.c.l.s4 1934713408
    %v661 = vunpack.c.0.s8 %v660
    %v662 = vlaneseq
    %v663 = vshrl.u32 %v662, 7
    %v664 = vsub.s32 %v661, %v663
    %v665 = vrot.slane %v657, %v664
    %v667 = vunpack.c.l.s4 1934713408
    %v668 = vunpack.c.0.s8 %v667
    %v669 = vlaneseq
    %v670 = vshrl.u32 %v669, 7
    %v671 = vsub.s32 %v668, %v670
    %v672 = vrot.slane %v658, %v671
    %v673 = vcombine.high %v649, 0.0
    %v674 = vcombine.high %v656, 0.0
    %v675 = vcombine.high %v665, 0.0
    %v676 = vcombine.high %v672, 0.0
    %v677 = vcombine.low %v581, %v588
    %v679 = vunpack.c.l.s4 1983009808
    %v680 = vunpack.c.0.s8 %v679
    %v681 = vlaneseq
    %v682 = vshrl.u32 %v681, 7
    %v683 = vsub.s32 %v680, %v682
    %v684 = vrot.slane %v677, %v683
    %v685 = vcombine.low %v605, %v606
    %v687 = vunpack.c.l.s4 1983009808
    %v688 = vunpack.c.0.s8 %v687
    %v689 = vlaneseq
    %v690 = vshrl.u32 %v689, 7
    %v691 = vsub.s32 %v688, %v690
    %v692 = vrot.slane %v685, %v691
    %v693 = vcombine.low %v597, %v604
    %v695 = vunpack.c.l.s4 1983009808
    %v696 = vunpack.c.0.s8 %v695
    %v697 = vlaneseq
    %v698 = vshrl.u32 %v697, 7
    %v699 = vsub.s32 %v696, %v698
    %v700 = vrot.slane %v693, %v699
    %v701 = vcombine.low %v607, %v608
    %v703 = vunpack.c.l.s4 1983009808
    %v704 = vunpack.c.0.s8 %v703
    %v705 = vlaneseq
    %v706 = vshrl.u32 %v705, 7
    %v707 = vsub.s32 %v704, %v706
    %v708 = vrot.slane %v701, %v707
    %v709 = vcombine.low %v684, %v692
    %v710 = vcombine.high %v684, %v692
    %v712 = vunpack.c.l.s4 1934713408
    %v713 = vunpack.c.0.s8 %v712
    %v714 = vlaneseq
    %v715 = vshrl.u32 %v714, 7
    %v716 = vsub.s32 %v713, %v715
    %v717 = vrot.slane %v709, %v716
    %v719 = vunpack.c.l.s4 1934713408
    %v720 = vunpack.c.0.s8 %v719
    %v721 = vlaneseq
    %v722 = vshrl.u32 %v721, 7
    %v723 = vsub.s32 %v720, %v722
    %v724 = vrot.slane %v710, %v723
    %v725 = vcombine.low %v700, %v708
    %v726 = vcombine.high %v700, %v708
    %v728 = vunpack.c.l.s4 1934713408
    %v729 = vunpack.c.0.s8 %v728
    %v730 = vlaneseq
    %v731 = vshrl.u32 %v730, 7
    %v732 = vsub.s32 %v729, %v731
    %v733 = vrot.slane %v725, %v732
    %v735 = vunpack.c.l.s4 1934713408
    %v736 = vunpack.c.0.s8 %v735
    %v737 = vlaneseq
    %v738 = vshrl.u32 %v737, 7
    %v739 = vsub.s32 %v736, %v738
    %v740 = vrot.slane %v726, %v739
    %v741 = vcombine.low %v717, %v733
    %v742 = vcombine.high %v717, %v733
    %v743 = vcombine.low %v724, %v740
    %v744 = vcombine.high %v724, %v740
    %v745 = vcombine.low %v649, %v656
    %v747 = vunpack.c.l.s4 1983009808
    %v748 = vunpack.c.0.s8 %v747
    %v749 = vlaneseq
    %v750 = vshrl.u32 %v749, 7
    %v751 = vsub.s32 %v748, %v750
    %v752 = vrot.slane %v745, %v751
    %v753 = vcombine.low %v673, %v674
    %v755 = vunpack.c.l.s4 1983009808
    %v756 = vunpack.c.0.s8 %v755
    %v757 = vlaneseq
    %v758 = vshrl.u32 %v757, 7
    %v759 = vsub.s32 %v756, %v758
    %v760 = vrot.slane %v753, %v759
    %v761 = vcombine.low %v665, %v672
    %v763 = vunpack.c.l.s4 1983009808
    %v764 = vunpack.c.0.s8 %v763
    %v765 = vlaneseq
    %v766 = vshrl.u32 %v765, 7
    %v767 = vsub.s32 %v764, %v766
    %v768 = vrot.slane %v761, %v767
    %v769 = vcombine.low %v675, %v676
    %v771 = vunpack.c.l.s4 1983009808
    %v772 = vunpack.c.0.s8 %v771
    %v773 = vlaneseq
    %v774 = vshrl.u32 %v773, 7
    %v775 = vsub.s32 %v772, %v774
    %v776 = vrot.slane %v769, %v775
    %v777 = vcombine.low %v752, %v760
    %v778 = vcombine.high %v752, %v760
    %v780 = vunpack.c.l.s4 1934713408
    %v781 = vunpack.c.0.s8 %v780
    %v782 = vlaneseq
    %v783 = vshrl.u32 %v782, 7
    %v784 = vsub.s32 %v781, %v783
    %v785 = vrot.slane %v777, %v784
    %v787 = vunpack.c.l.s4 1934713408
    %v788 = vunpack.c.0.s8 %v787
    %v789 = vlaneseq
    %v790 = vshrl.u32 %v789, 7
    %v791 = vsub.s32 %v788, %v790
    %v792 = vrot.slane %v778, %v791
    %v793 = vcombine.low %v768, %v776
    %v794 = vcombine.high %v768, %v776
    %v796 = vunpack.c.l.s4 1934713408
    %v797 = vunpack.c.0.s8 %v796
    %v798 = vlaneseq
    %v799 = vshrl.u32 %v798, 7
    %v800 = vsub.s32 %v797, %v799
    %v801 = vrot.slane %v793, %v800
    %v803 = vunpack.c.l.s4 1934713408
    %v804 = vunpack.c.0.s8 %v803
    %v805 = vlaneseq
    %v806 = vshrl.u32 %v805, 7
    %v807 = vsub.s32 %v804, %v806
    %v808 = vrot.slane %v794, %v807
    %v809 = vcombine.low %v785, %v801
    %v810 = vcombine.high %v785, %v801
    %v811 = vcombine.low %v792, %v808
    %v812 = vcombine.high %v792, %v808
    %v813 = vpack.c.bf16 %v741, %v741
    %v814 = vpack.c.bf16 %v742, %v742
    %v815 = vpack.c.bf16 %v743, %v743
    %v816 = vpack.c.bf16 %v744, %v744
    %v817 = vpack.c.bf16 %v809, %v809
    %v818 = vpack.c.bf16 %v810, %v810
    %v819 = vpack.c.bf16 %v811, %v811
    %v820 = vpack.c.bf16 %v812, %v812
    %821 = vrot.lane.b32.xlu0 %v211, 64
    %v822 = vpop.permute.xlu0 %821
    %823 = vrot.lane.b32.xlu0 %v214, 64
    %v824 = vpop.permute.xlu0 %823
    %825 = vrot.lane.b32.xlu0 %v220, 64
    %v826 = vpop.permute.xlu0 %825
    %827 = vrot.lane.b32.xlu0 %v222, 64
    %v828 = vpop.permute.xlu0 %827
    %829 = vrot.lane.b32.xlu0 %v226, 64
    %v830 = vpop.permute.xlu0 %829
    %831 = vrot.lane.b32.xlu0 %v228, 64
    %v832 = vpop.permute.xlu0 %831
    %833 = vrot.lane.b32.xlu0 %v232, 64
    %v834 = vpop.permute.xlu0 %833
    %835 = vrot.lane.b32.xlu0 %v234, 64
    %v836 = vpop.permute.xlu0 %835
    %v845 = vcombine.low %v822, %v830
    %v846 = vcombine.high %v822, %v830
    %v848 = vunpack.c.l.s4 1983009808
    %v849 = vunpack.c.0.s8 %v848
    %v850 = vlaneseq
    %v851 = vshrl.u32 %v850, 7
    %v852 = vsub.s32 %v849, %v851
    %v853 = vrot.slane %v845, %v852
    %v855 = vunpack.c.l.s4 1983009808
    %v856 = vunpack.c.0.s8 %v855
    %v857 = vlaneseq
    %v858 = vshrl.u32 %v857, 7
    %v859 = vsub.s32 %v856, %v858
    %v860 = vrot.slane %v846, %v859
    %v861 = vcombine.low %v826, %v834
    %v862 = vcombine.high %v826, %v834
    %v864 = vunpack.c.l.s4 1983009808
    %v865 = vunpack.c.0.s8 %v864
    %v866 = vlaneseq
    %v867 = vshrl.u32 %v866, 7
    %v868 = vsub.s32 %v865, %v867
    %v869 = vrot.slane %v861, %v868
    %v871 = vunpack.c.l.s4 1983009808
    %v872 = vunpack.c.0.s8 %v871
    %v873 = vlaneseq
    %v874 = vshrl.u32 %v873, 7
    %v875 = vsub.s32 %v872, %v874
    %v876 = vrot.slane %v862, %v875
    %v877 = vcombine.low %v853, %v869
    %v878 = vcombine.high %v853, %v869
    %v880 = vunpack.c.l.s4 1934713408
    %v881 = vunpack.c.0.s8 %v880
    %v882 = vlaneseq
    %v883 = vshrl.u32 %v882, 7
    %v884 = vsub.s32 %v881, %v883
    %v885 = vrot.slane %v877, %v884
    %v887 = vunpack.c.l.s4 1934713408
    %v888 = vunpack.c.0.s8 %v887
    %v889 = vlaneseq
    %v890 = vshrl.u32 %v889, 7
    %v891 = vsub.s32 %v888, %v890
    %v892 = vrot.slane %v878, %v891
    %v893 = vcombine.low %v860, %v876
    %v894 = vcombine.high %v860, %v876
    %v896 = vunpack.c.l.s4 1934713408
    %v897 = vunpack.c.0.s8 %v896
    %v898 = vlaneseq
    %v899 = vshrl.u32 %v898, 7
    %v900 = vsub.s32 %v897, %v899
    %v901 = vrot.slane %v893, %v900
    %v903 = vunpack.c.l.s4 1934713408
    %v904 = vunpack.c.0.s8 %v903
    %v905 = vlaneseq
    %v906 = vshrl.u32 %v905, 7
    %v907 = vsub.s32 %v904, %v906
    %v908 = vrot.slane %v894, %v907
    %v909 = vcombine.high %v885, 0.0
    %v910 = vcombine.high %v892, 0.0
    %v911 = vcombine.high %v901, 0.0
    %v912 = vcombine.high %v908, 0.0
    %v913 = vcombine.low %v824, %v832
    %v914 = vcombine.high %v824, %v832
    %v916 = vunpack.c.l.s4 1983009808
    %v917 = vunpack.c.0.s8 %v916
    %v918 = vlaneseq
    %v919 = vshrl.u32 %v918, 7
    %v920 = vsub.s32 %v917, %v919
    %v921 = vrot.slane %v913, %v920
    %v923 = vunpack.c.l.s4 1983009808
    %v924 = vunpack.c.0.s8 %v923
    %v925 = vlaneseq
    %v926 = vshrl.u32 %v925, 7
    %v927 = vsub.s32 %v924, %v926
    %v928 = vrot.slane %v914, %v927
    %v929 = vcombine.low %v828, %v836
    %v930 = vcombine.high %v828, %v836
    %v932 = vunpack.c.l.s4 1983009808
    %v933 = vunpack.c.0.s8 %v932
    %v934 = vlaneseq
    %v935 = vshrl.u32 %v934, 7
    %v936 = vsub.s32 %v933, %v935
    %v937 = vrot.slane %v929, %v936
    %v939 = vunpack.c.l.s4 1983009808
    %v940 = vunpack.c.0.s8 %v939
    %v941 = vlaneseq
    %v942 = vshrl.u32 %v941, 7
    %v943 = vsub.s32 %v940, %v942
    %v944 = vrot.slane %v930, %v943
    %v945 = vcombine.low %v921, %v937
    %v946 = vcombine.high %v921, %v937
    %v948 = vunpack.c.l.s4 1934713408
    %v949 = vunpack.c.0.s8 %v948
    %v950 = vlaneseq
    %v951 = vshrl.u32 %v950, 7
    %v952 = vsub.s32 %v949, %v951
    %v953 = vrot.slane %v945, %v952
    %v955 = vunpack.c.l.s4 1934713408
    %v956 = vunpack.c.0.s8 %v955
    %v957 = vlaneseq
    %v958 = vshrl.u32 %v957, 7
    %v959 = vsub.s32 %v956, %v958
    %v960 = vrot.slane %v946, %v959
    %v961 = vcombine.low %v928, %v944
    %v962 = vcombine.high %v928, %v944
    %v964 = vunpack.c.l.s4 1934713408
    %v965 = vunpack.c.0.s8 %v964
    %v966 = vlaneseq
    %v967 = vshrl.u32 %v966, 7
    %v968 = vsub.s32 %v965, %v967
    %v969 = vrot.slane %v961, %v968
    %v971 = vunpack.c.l.s4 1934713408
    %v972 = vunpack.c.0.s8 %v971
    %v973 = vlaneseq
    %v974 = vshrl.u32 %v973, 7
    %v975 = vsub.s32 %v972, %v974
    %v976 = vrot.slane %v962, %v975
    %v977 = vcombine.high %v953, 0.0
    %v978 = vcombine.high %v960, 0.0
    %v979 = vcombine.high %v969, 0.0
    %v980 = vcombine.high %v976, 0.0
    %v981 = vcombine.low %v885, %v892
    %v983 = vunpack.c.l.s4 1983009808
    %v984 = vunpack.c.0.s8 %v983
    %v985 = vlaneseq
    %v986 = vshrl.u32 %v985, 7
    %v987 = vsub.s32 %v984, %v986
    %v988 = vrot.slane %v981, %v987
    %v989 = vcombine.low %v909, %v910
    %v991 = vunpack.c.l.s4 1983009808
    %v992 = vunpack.c.0.s8 %v991
    %v993 = vlaneseq
    %v994 = vshrl.u32 %v993, 7
    %v995 = vsub.s32 %v992, %v994
    %v996 = vrot.slane %v989, %v995
    %v997 = vcombine.low %v901, %v908
    %v999 = vunpack.c.l.s4 1983009808
    %v1000 = vunpack.c.0.s8 %v999
    %v1001 = vlaneseq
    %v1002 = vshrl.u32 %v1001, 7
    %v1003 = vsub.s32 %v1000, %v1002
    %v1004 = vrot.slane %v997, %v1003
    %v1005 = vcombine.low %v911, %v912
    %v1007 = vunpack.c.l.s4 1983009808
    %v1008 = vunpack.c.0.s8 %v1007
    %v1009 = vlaneseq
    %v1010 = vshrl.u32 %v1009, 7
    %v1011 = vsub.s32 %v1008, %v1010
    %v1012 = vrot.slane %v1005, %v1011
    %v1013 = vcombine.low %v988, %v996
    %v1014 = vcombine.high %v988, %v996
    %v1016 = vunpack.c.l.s4 1934713408
    %v1017 = vunpack.c.0.s8 %v1016
    %v1018 = vlaneseq
    %v1019 = vshrl.u32 %v1018, 7
    %v1020 = vsub.s32 %v1017, %v1019
    %v1021 = vrot.slane %v1013, %v1020
    %v1023 = vunpack.c.l.s4 1934713408
    %v1024 = vunpack.c.0.s8 %v1023
    %v1025 = vlaneseq
    %v1026 = vshrl.u32 %v1025, 7
    %v1027 = vsub.s32 %v1024, %v1026
    %v1028 = vrot.slane %v1014, %v1027
    %v1029 = vcombine.low %v1004, %v1012
    %v1030 = vcombine.high %v1004, %v1012
    %v1032 = vunpack.c.l.s4 1934713408
    %v1033 = vunpack.c.0.s8 %v1032
    %v1034 = vlaneseq
    %v1035 = vshrl.u32 %v1034, 7
    %v1036 = vsub.s32 %v1033, %v1035
    %v1037 = vrot.slane %v1029, %v1036
    %v1039 = vunpack.c.l.s4 1934713408
    %v1040 = vunpack.c.0.s8 %v1039
    %v1041 = vlaneseq
    %v1042 = vshrl.u32 %v1041, 7
    %v1043 = vsub.s32 %v1040, %v1042
    %v1044 = vrot.slane %v1030, %v1043
    %v1045 = vcombine.low %v1021, %v1037
    %v1046 = vcombine.high %v1021, %v1037
    %v1047 = vcombine.low %v1028, %v1044
    %v1048 = vcombine.high %v1028, %v1044
    %v1049 = vcombine.low %v953, %v960
    %v1051 = vunpack.c.l.s4 1983009808
    %v1052 = vunpack.c.0.s8 %v1051
    %v1053 = vlaneseq
    %v1054 = vshrl.u32 %v1053, 7
    %v1055 = vsub.s32 %v1052, %v1054
    %v1056 = vrot.slane %v1049, %v1055
    %v1057 = vcombine.low %v977, %v978
    %v1059 = vunpack.c.l.s4 1983009808
    %v1060 = vunpack.c.0.s8 %v1059
    %v1061 = vlaneseq
    %v1062 = vshrl.u32 %v1061, 7
    %v1063 = vsub.s32 %v1060, %v1062
    %v1064 = vrot.slane %v1057, %v1063
    %v1065 = vcombine.low %v969, %v976
    %v1067 = vunpack.c.l.s4 1983009808
    %v1068 = vunpack.c.0.s8 %v1067
    %v1069 = vlaneseq
    %v1070 = vshrl.u32 %v1069, 7
    %v1071 = vsub.s32 %v1068, %v1070
    %v1072 = vrot.slane %v1065, %v1071
    %v1073 = vcombine.low %v979, %v980
    %v1075 = vunpack.c.l.s4 1983009808
    %v1076 = vunpack.c.0.s8 %v1075
    %v1077 = vlaneseq
    %v1078 = vshrl.u32 %v1077, 7
    %v1079 = vsub.s32 %v1076, %v1078
    %v1080 = vrot.slane %v1073, %v1079
    %v1081 = vcombine.low %v1056, %v1064
    %v1082 = vcombine.high %v1056, %v1064
    %v1084 = vunpack.c.l.s4 1934713408
    %v1085 = vunpack.c.0.s8 %v1084
    %v1086 = vlaneseq
    %v1087 = vshrl.u32 %v1086, 7
    %v1088 = vsub.s32 %v1085, %v1087
    %v1089 = vrot.slane %v1081, %v1088
    %v1091 = vunpack.c.l.s4 1934713408
    %v1092 = vunpack.c.0.s8 %v1091
    %v1093 = vlaneseq
    %v1094 = vshrl.u32 %v1093, 7
    %v1095 = vsub.s32 %v1092, %v1094
    %v1096 = vrot.slane %v1082, %v1095
    %v1097 = vcombine.low %v1072, %v1080
    %v1098 = vcombine.high %v1072, %v1080
    %v1100 = vunpack.c.l.s4 1934713408
    %v1101 = vunpack.c.0.s8 %v1100
    %v1102 = vlaneseq
    %v1103 = vshrl.u32 %v1102, 7
    %v1104 = vsub.s32 %v1101, %v1103
    %v1105 = vrot.slane %v1097, %v1104
    %v1107 = vunpack.c.l.s4 1934713408
    %v1108 = vunpack.c.0.s8 %v1107
    %v1109 = vlaneseq
    %v1110 = vshrl.u32 %v1109, 7
    %v1111 = vsub.s32 %v1108, %v1110
    %v1112 = vrot.slane %v1098, %v1111
    %v1113 = vcombine.low %v1089, %v1105
    %v1114 = vcombine.high %v1089, %v1105
    %v1115 = vcombine.low %v1096, %v1112
    %v1116 = vcombine.high %v1096, %v1112
    %v1117 = vpack.c.bf16 %v1045, %v1045
    %v1118 = vpack.c.bf16 %v1046, %v1046
    %v1119 = vpack.c.bf16 %v1047, %v1047
    %v1120 = vpack.c.bf16 %v1048, %v1048
    %v1121 = vpack.c.bf16 %v1113, %v1113
    %v1122 = vpack.c.bf16 %v1114, %v1114
    %v1123 = vpack.c.bf16 %v1115, %v1115
    %v1124 = vpack.c.bf16 %v1116, %v1116
    %vm1125 = vcmask 64512
    %v1127 = vsel %vm1125, %v509, 0
    %v1130 = vsel %vm1125, %v813, 0
    %1132 = vmatprep.subr.bf16.mxu0 0
    %1133 = vmatpush1.bf16.xpose.msra.mxu0 %v1130
    %1134 = vmatprep.subr.bf16.mxu0 0
    %1135 = vmatpush1.bf16.xpose.msra.mxu0 0
    %1136 = vmatprep.subr.bf16.mxu0 0
    %1137 = vmatpush1.bf16.xpose.msra.mxu0 0
    %1138 = vmatprep.subr.bf16.mxu0 0
    %1139 = vmatpush1.bf16.xpose.msra.mxu0 0
    %1140 = vmatprep.subr.bf16.mxu0 0
    %1141 = vmatpush1.bf16.xpose.msra.mxu0 0
    %1142 = vmatprep.subr.bf16.mxu0 0
    %1143 = vmatpush1.bf16.xpose.msra.mxu0 0
    %1144 = vmatprep.subr.bf16.mxu0 0
    %1145 = vmatpush1.bf16.xpose.msra.mxu0 0
    %1146 = vmatprep.subr.bf16.mxu0 0
    %1147 = vmatpush1.bf16.xpose.msra.mxu0 0
    %1148 = vmatprep.subr.bf16.mxu0 0
    %1149 = vmatpush1.bf16.xpose.msra.mxu0 0
    %1150 = vmatprep.subr.bf16.mxu0 0
    %1151 = vmatpush1.bf16.xpose.msra.mxu0 0
    %1152 = vmatprep.subr.bf16.mxu0 0
    %1153 = vmatpush1.bf16.xpose.msra.mxu0 0
    %1154 = vmatprep.subr.bf16.mxu0 0
    %1155 = vmatpush1.bf16.xpose.msra.mxu0 0
    %1156 = vmatprep.subr.bf16.mxu0 0
    %1157 = vmatpush1.bf16.xpose.msra.mxu0 0
    %1158 = vmatprep.subr.bf16.mxu0 0
    %1159 = vmatpush1.bf16.xpose.msra.mxu0 0
    %1160 = vmatprep.subr.bf16.mxu0 0
    %1161 = vmatpush1.bf16.xpose.msra.mxu0 0
    %1162 = vmatprep.subr.bf16.mxu0 0
    %1163 = vmatpush1.bf16.xpose.msra.mxu0 0
    %1164 = vmatprep.mubr.bf16.mxu0 0
    %1165 = vmatmul.mubr.bf16.gmra.mrb[0].mxu0 %v1127
    %v1166 = vpop.f32.mrb[0].mxu0
    %v1167 = vadd.f32 0.0, %v1166
    %v1168 = vpop.f32.mrb[0].mxu0
    %v1169 = vpop.f32.mrb[0].mxu0
    %v1170 = vpop.f32.mrb[0].mxu0
    %1171 = vdwg.mxu0
    %v1173 = vsel %vm1125, %v510, 0
    %v1176 = vsel %vm1125, %v814, 0
    %1178 = vmatprep.subr.bf16.mxu0 0
    %1179 = vmatpush1.bf16.xpose.msra.mxu0 %v1176
    %1180 = vmatprep.subr.bf16.mxu0 0
    %1181 = vmatpush1.bf16.xpose.msra.mxu0 0
    %1182 = vmatprep.subr.bf16.mxu0 0
    %1183 = vmatpush1.bf16.xpose.msra.mxu0 0
    %1184 = vmatprep.subr.bf16.mxu0 0
    %1185 = vmatpush1.bf16.xpose.msra.mxu0 0
    %1186 = vmatprep.subr.bf16.mxu0 0
    %1187 = vmatpush1.bf16.xpose.msra.mxu0 0
    %1188 = vmatprep.subr.bf16.mxu0 0
    %1189 = vmatpush1.bf16.xpose.msra.mxu0 0
    %1190 = vmatprep.subr.bf16.mxu0 0
    %1191 = vmatpush1.bf16.xpose.msra.mxu0 0
    %1192 = vmatprep.subr.bf16.mxu0 0
    %1193 = vmatpush1.bf16.xpose.msra.mxu0 0
    %1194 = vmatprep.subr.bf16.mxu0 0
    %1195 = vmatpush1.bf16.xpose.msra.mxu0 0
    %1196 = vmatprep.subr.bf16.mxu0 0
    %1197 = vmatpush1.bf16.xpose.msra.mxu0 0
    %1198 = vmatprep.subr.bf16.mxu0 0
    %1199 = vmatpush1.bf16.xpose.msra.mxu0 0
    %1200 = vmatprep.subr.bf16.mxu0 0
    %1201 = vmatpush1.bf16.xpose.msra.mxu0 0
    %1202 = vmatprep.subr.bf16.mxu0 0
    %1203 = vmatpush1.bf16.xpose.msra.mxu0 0
    %1204 = vmatprep.subr.bf16.mxu0 0
    %1205 = vmatpush1.bf16.xpose.msra.mxu0 0
    %1206 = vmatprep.subr.bf16.mxu0 0
    %1207 = vmatpush1.bf16.xpose.msra.mxu0 0
    %1208 = vmatprep.subr.bf16.mxu0 0
    %1209 = vmatpush1.bf16.xpose.msra.mxu0 0
    %1210 = vmatprep.mubr.bf16.mxu0 0
    %1211 = vmatmul.mubr.bf16.gmra.mrb[0].mxu0 %v1173
    %v1212 = vpop.f32.mrb[0].mxu0
    %v1213 = vadd.f32 0.0, %v1212
    %v1214 = vpop.f32.mrb[0].mxu0
    %v1215 = vpop.f32.mrb[0].mxu0
    %v1216 = vpop.f32.mrb[0].mxu0
    %1217 = vdwg.mxu0
    %v1219 = vsel %vm1125, %v511, 0
    %v1222 = vsel %vm1125, %v815, 0
    %1224 = vmatprep.subr.bf16.mxu0 0
    %1225 = vmatpush1.bf16.xpose.msra.mxu0 %v1222
    %1226 = vmatprep.subr.bf16.mxu0 0
    %1227 = vmatpush1.bf16.xpose.msra.mxu0 0
    %1228 = vmatprep.subr.bf16.mxu0 0
    %1229 = vmatpush1.bf16.xpose.msra.mxu0 0
    %1230 = vmatprep.subr.bf16.mxu0 0
    %1231 = vmatpush1.bf16.xpose.msra.mxu0 0
    %1232 = vmatprep.subr.bf16.mxu0 0
    %1233 = vmatpush1.bf16.xpose.msra.mxu0 0
    %1234 = vmatprep.subr.bf16.mxu0 0
    %1235 = vmatpush1.bf16.xpose.msra.mxu0 0
    %1236 = vmatprep.subr.bf16.mxu0 0
    %1237 = vmatpush1.bf16.xpose.msra.mxu0 0
    %1238 = vmatprep.subr.bf16.mxu0 0
    %1239 = vmatpush1.bf16.xpose.msra.mxu0 0
    %1240 = vmatprep.subr.bf16.mxu0 0
    %1241 = vmatpush1.bf16.xpose.msra.mxu0 0
    %1242 = vmatprep.subr.bf16.mxu0 0
    %1243 = vmatpush1.bf16.xpose.msra.mxu0 0
    %1244 = vmatprep.subr.bf16.mxu0 0
    %1245 = vmatpush1.bf16.xpose.msra.mxu0 0
    %1246 = vmatprep.subr.bf16.mxu0 0
    %1247 = vmatpush1.bf16.xpose.msra.mxu0 0
    %1248 = vmatprep.subr.bf16.mxu0 0
    %1249 = vmatpush1.bf16.xpose.msra.mxu0 0
    %1250 = vmatprep.subr.bf16.mxu0 0
    %1251 = vmatpush1.bf16.xpose.msra.mxu0 0
    %1252 = vmatprep.subr.bf16.mxu0 0
    %1253 = vmatpush1.bf16.xpose.msra.mxu0 0
    %1254 = vmatprep.subr.bf16.mxu0 0
    %1255 = vmatpush1.bf16.xpose.msra.mxu0 0
    %1256 = vmatprep.mubr.bf16.mxu0 0
    %1257 = vmatmul.mubr.bf16.gmra.mrb[0].mxu0 %v1219
    %v1258 = vpop.f32.mrb[0].mxu0
    %v1259 = vadd.f32 0.0, %v1258
    %v1260 = vpop.f32.mrb[0].mxu0
    %v1261 = vpop.f32.mrb[0].mxu0
    %v1262 = vpop.f32.mrb[0].mxu0
    %1263 = vdwg.mxu0
    %v1265 = vsel %vm1125, %v512, 0
    %v1268 = vsel %vm1125, %v816, 0
    %1270 = vmatprep.subr.bf16.mxu0 0
    %1271 = vmatpush1.bf16.xpose.msra.mxu0 %v1268
    %1272 = vmatprep.subr.bf16.mxu0 0
    %1273 = vmatpush1.bf16.xpose.msra.mxu0 0
    %1274 = vmatprep.subr.bf16.mxu0 0
    %1275 = vmatpush1.bf16.xpose.msra.mxu0 0
    %1276 = vmatprep.subr.bf16.mxu0 0
    %1277 = vmatpush1.bf16.xpose.msra.mxu0 0
    %1278 = vmatprep.subr.bf16.mxu0 0
    %1279 = vmatpush1.bf16.xpose.msra.mxu0 0
    %1280 = vmatprep.subr.bf16.mxu0 0
    %1281 = vmatpush1.bf16.xpose.msra.mxu0 0
    %1282 = vmatprep.subr.bf16.mxu0 0
    %1283 = vmatpush1.bf16.xpose.msra.mxu0 0
    %1284 = vmatprep.subr.bf16.mxu0 0
    %1285 = vmatpush1.bf16.xpose.msra.mxu0 0
    %1286 = vmatprep.subr.bf16.mxu0 0
    %1287 = vmatpush1.bf16.xpose.msra.mxu0 0
    %1288 = vmatprep.subr.bf16.mxu0 0
    %1289 = vmatpush1.bf16.xpose.msra.mxu0 0
    %1290 = vmatprep.subr.bf16.mxu0 0
    %1291 = vmatpush1.bf16.xpose.msra.mxu0 0
    %1292 = vmatprep.subr.bf16.mxu0 0
    %1293 = vmatpush1.bf16.xpose.msra.mxu0 0
    %1294 = vmatprep.subr.bf16.mxu0 0
    %1295 = vmatpush1.bf16.xpose.msra.mxu0 0
    %1296 = vmatprep.subr.bf16.mxu0 0
    %1297 = vmatpush1.bf16.xpose.msra.mxu0 0
    %1298 = vmatprep.subr.bf16.mxu0 0
    %1299 = vmatpush1.bf16.xpose.msra.mxu0 0
    %1300 = vmatprep.subr.bf16.mxu0 0
    %1301 = vmatpush1.bf16.xpose.msra.mxu0 0
    %1302 = vmatprep.mubr.bf16.mxu0 0
    %1303 = vmatmul.mubr.bf16.gmra.mrb[0].mxu0 %v1265
    %v1304 = vpop.f32.mrb[0].mxu0
    %v1305 = vadd.f32 0.0, %v1304
    %v1306 = vpop.f32.mrb[0].mxu0
    %v1307 = vpop.f32.mrb[0].mxu0
    %v1308 = vpop.f32.mrb[0].mxu0
    %1309 = vdwg.mxu0
    %v1311 = vsel %vm1125, %v513, 0
    %v1314 = vsel %vm1125, %v817, 0
    %1316 = vmatprep.subr.bf16.mxu0 0
    %1317 = vmatpush1.bf16.xpose.msra.mxu0 %v1314
    %1318 = vmatprep.subr.bf16.mxu0 0
    %1319 = vmatpush1.bf16.xpose.msra.mxu0 0
    %1320 = vmatprep.subr.bf16.mxu0 0
    %1321 = vmatpush1.bf16.xpose.msra.mxu0 0
    %1322 = vmatprep.subr.bf16.mxu0 0
    %1323 = vmatpush1.bf16.xpose.msra.mxu0 0
    %1324 = vmatprep.subr.bf16.mxu0 0
    %1325 = vmatpush1.bf16.xpose.msra.mxu0 0
    %1326 = vmatprep.subr.bf16.mxu0 0
    %1327 = vmatpush1.bf16.xpose.msra.mxu0 0
    %1328 = vmatprep.subr.bf16.mxu0 0
    %1329 = vmatpush1.bf16.xpose.msra.mxu0 0
    %1330 = vmatprep.subr.bf16.mxu0 0
    %1331 = vmatpush1.bf16.xpose.msra.mxu0 0
    %1332 = vmatprep.subr.bf16.mxu0 0
    %1333 = vmatpush1.bf16.xpose.msra.mxu0 0
    %1334 = vmatprep.subr.bf16.mxu0 0
    %1335 = vmatpush1.bf16.xpose.msra.mxu0 0
    %1336 = vmatprep.subr.bf16.mxu0 0
    %1337 = vmatpush1.bf16.xpose.msra.mxu0 0
    %1338 = vmatprep.subr.bf16.mxu0 0
    %1339 = vmatpush1.bf16.xpose.msra.mxu0 0
    %1340 = vmatprep.subr.bf16.mxu0 0
    %1341 = vmatpush1.bf16.xpose.msra.mxu0 0
    %1342 = vmatprep.subr.bf16.mxu0 0
    %1343 = vmatpush1.bf16.xpose.msra.mxu0 0
    %1344 = vmatprep.subr.bf16.mxu0 0
    %1345 = vmatpush1.bf16.xpose.msra.mxu0 0
    %1346 = vmatprep.subr.bf16.mxu0 0
    %1347 = vmatpush1.bf16.xpose.msra.mxu0 0
    %1348 = vmatprep.mubr.bf16.mxu0 0
    %1349 = vmatmul.mubr.bf16.gmra.mrb[0].mxu0 %v1311
    %v1350 = vpop.f32.mrb[0].mxu0
    %v1351 = vadd.f32 0.0, %v1350
    %v1352 = vpop.f32.mrb[0].mxu0
    %v1353 = vpop.f32.mrb[0].mxu0
    %v1354 = vpop.f32.mrb[0].mxu0
    %1355 = vdwg.mxu0
    %v1357 = vsel %vm1125, %v514, 0
    %v1360 = vsel %vm1125, %v818, 0
    %1362 = vmatprep.subr.bf16.mxu0 0
    %1363 = vmatpush1.bf16.xpose.msra.mxu0 %v1360
    %1364 = vmatprep.subr.bf16.mxu0 0
    %1365 = vmatpush1.bf16.xpose.msra.mxu0 0
    %1366 = vmatprep.subr.bf16.mxu0 0
    %1367 = vmatpush1.bf16.xpose.msra.mxu0 0
    %1368 = vmatprep.subr.bf16.mxu0 0
    %1369 = vmatpush1.bf16.xpose.msra.mxu0 0
    %1370 = vmatprep.subr.bf16.mxu0 0
    %1371 = vmatpush1.bf16.xpose.msra.mxu0 0
    %1372 = vmatprep.subr.bf16.mxu0 0
    %1373 = vmatpush1.bf16.xpose.msra.mxu0 0
    %1374 = vmatprep.subr.bf16.mxu0 0
    %1375 = vmatpush1.bf16.xpose.msra.mxu0 0
    %1376 = vmatprep.subr.bf16.mxu0 0
    %1377 = vmatpush1.bf16.xpose.msra.mxu0 0
    %1378 = vmatprep.subr.bf16.mxu0 0
    %1379 = vmatpush1.bf16.xpose.msra.mxu0 0
    %1380 = vmatprep.subr.bf16.mxu0 0
    %1381 = vmatpush1.bf16.xpose.msra.mxu0 0
    %1382 = vmatprep.subr.bf16.mxu0 0
    %1383 = vmatpush1.bf16.xpose.msra.mxu0 0
    %1384 = vmatprep.subr.bf16.mxu0 0
    %1385 = vmatpush1.bf16.xpose.msra.mxu0 0
    %1386 = vmatprep.subr.bf16.mxu0 0
    %1387 = vmatpush1.bf16.xpose.msra.mxu0 0
    %1388 = vmatprep.subr.bf16.mxu0 0
    %1389 = vmatpush1.bf16.xpose.msra.mxu0 0
    %1390 = vmatprep.subr.bf16.mxu0 0
    %1391 = vmatpush1.bf16.xpose.msra.mxu0 0
    %1392 = vmatprep.subr.bf16.mxu0 0
    %1393 = vmatpush1.bf16.xpose.msra.mxu0 0
    %1394 = vmatprep.mubr.bf16.mxu0 0
    %1395 = vmatmul.mubr.bf16.gmra.mrb[0].mxu0 %v1357
    %v1396 = vpop.f32.mrb[0].mxu0
    %v1397 = vadd.f32 0.0, %v1396
    %v1398 = vpop.f32.mrb[0].mxu0
    %v1399 = vpop.f32.mrb[0].mxu0
    %v1400 = vpop.f32.mrb[0].mxu0
    %1401 = vdwg.mxu0
    %v1403 = vsel %vm1125, %v515, 0
    %v1406 = vsel %vm1125, %v819, 0
    %1408 = vmatprep.subr.bf16.mxu0 0
    %1409 = vmatpush1.bf16.xpose.msra.mxu0 %v1406
    %1410 = vmatprep.subr.bf16.mxu0 0
    %1411 = vmatpush1.bf16.xpose.msra.mxu0 0
    %1412 = vmatprep.subr.bf16.mxu0 0
    %1413 = vmatpush1.bf16.xpose.msra.mxu0 0
    %1414 = vmatprep.subr.bf16.mxu0 0
    %1415 = vmatpush1.bf16.xpose.msra.mxu0 0
    %1416 = vmatprep.subr.bf16.mxu0 0
    %1417 = vmatpush1.bf16.xpose.msra.mxu0 0
    %1418 = vmatprep.subr.bf16.mxu0 0
    %1419 = vmatpush1.bf16.xpose.msra.mxu0 0
    %1420 = vmatprep.subr.bf16.mxu0 0
    %1421 = vmatpush1.bf16.xpose.msra.mxu0 0
    %1422 = vmatprep.subr.bf16.mxu0 0
    %1423 = vmatpush1.bf16.xpose.msra.mxu0 0
    %1424 = vmatprep.subr.bf16.mxu0 0
    %1425 = vmatpush1.bf16.xpose.msra.mxu0 0
    %1426 = vmatprep.subr.bf16.mxu0 0
    %1427 = vmatpush1.bf16.xpose.msra.mxu0 0
    %1428 = vmatprep.subr.bf16.mxu0 0
    %1429 = vmatpush1.bf16.xpose.msra.mxu0 0
    %1430 = vmatprep.subr.bf16.mxu0 0
    %1431 = vmatpush1.bf16.xpose.msra.mxu0 0
    %1432 = vmatprep.subr.bf16.mxu0 0
    %1433 = vmatpush1.bf16.xpose.msra.mxu0 0
    %1434 = vmatprep.subr.bf16.mxu0 0
    %1435 = vmatpush1.bf16.xpose.msra.mxu0 0
    %1436 = vmatprep.subr.bf16.mxu0 0
    %1437 = vmatpush1.bf16.xpose.msra.mxu0 0
    %1438 = vmatprep.subr.bf16.mxu0 0
    %1439 = vmatpush1.bf16.xpose.msra.mxu0 0
    %1440 = vmatprep.mubr.bf16.mxu0 0
    %1441 = vmatmul.mubr.bf16.gmra.mrb[0].mxu0 %v1403
    %v1442 = vpop.f32.mrb[0].mxu0
    %v1443 = vadd.f32 0.0, %v1442
    %v1444 = vpop.f32.mrb[0].mxu0
    %v1445 = vpop.f32.mrb[0].mxu0
    %v1446 = vpop.f32.mrb[0].mxu0
    %1447 = vdwg.mxu0
    %v1449 = vsel %vm1125, %v516, 0
    %v1452 = vsel %vm1125, %v820, 0
    %1454 = vmatprep.subr.bf16.mxu0 0
    %1455 = vmatpush1.bf16.xpose.msra.mxu0 %v1452
    %1456 = vmatprep.subr.bf16.mxu0 0
    %1457 = vmatpush1.bf16.xpose.msra.mxu0 0
    %1458 = vmatprep.subr.bf16.mxu0 0
    %1459 = vmatpush1.bf16.xpose.msra.mxu0 0
    %1460 = vmatprep.subr.bf16.mxu0 0
    %1461 = vmatpush1.bf16.xpose.msra.mxu0 0
    %1462 = vmatprep.subr.bf16.mxu0 0
    %1463 = vmatpush1.bf16.xpose.msra.mxu0 0
    %1464 = vmatprep.subr.bf16.mxu0 0
    %1465 = vmatpush1.bf16.xpose.msra.mxu0 0
    %1466 = vmatprep.subr.bf16.mxu0 0
    %1467 = vmatpush1.bf16.xpose.msra.mxu0 0
    %1468 = vmatprep.subr.bf16.mxu0 0
    %1469 = vmatpush1.bf16.xpose.msra.mxu0 0
    %1470 = vmatprep.subr.bf16.mxu0 0
    %1471 = vmatpush1.bf16.xpose.msra.mxu0 0
    %1472 = vmatprep.subr.bf16.mxu0 0
    %1473 = vmatpush1.bf16.xpose.msra.mxu0 0
    %1474 = vmatprep.subr.bf16.mxu0 0
    %1475 = vmatpush1.bf16.xpose.msra.mxu0 0
    %1476 = vmatprep.subr.bf16.mxu0 0
    %1477 = vmatpush1.bf16.xpose.msra.mxu0 0
    %1478 = vmatprep.subr.bf16.mxu0 0
    %1479 = vmatpush1.bf16.xpose.msra.mxu0 0
    %1480 = vmatprep.subr.bf16.mxu0 0
    %1481 = vmatpush1.bf16.xpose.msra.mxu0 0
    %1482 = vmatprep.subr.bf16.mxu0 0
    %1483 = vmatpush1.bf16.xpose.msra.mxu0 0
    %1484 = vmatprep.subr.bf16.mxu0 0
    %1485 = vmatpush1.bf16.xpose.msra.mxu0 0
    %1486 = vmatprep.mubr.bf16.mxu0 0
    %1487 = vmatmul.mubr.bf16.gmra.mrb[0].mxu0 %v1449
    %v1488 = vpop.f32.mrb[0].mxu0
    %v1489 = vadd.f32 0.0, %v1488
    %v1490 = vpop.f32.mrb[0].mxu0
    %v1491 = vpop.f32.mrb[0].mxu0
    %v1492 = vpop.f32.mrb[0].mxu0
    %1493 = vdwg.mxu0
    %v1494 = vsel %vm1125, %v1167, -inf
    %1495 = vmax.xlane.f32.xlu0 %v1494
    %v1496 = vpop.xlane.xlu0 %1495
    %v1497 = vsel %vm1125, %v1213, -inf
    %1498 = vmax.xlane.f32.xlu0 %v1497
    %v1499 = vpop.xlane.xlu0 %1498
    %v1500 = vsel %vm1125, %v1259, -inf
    %1501 = vmax.xlane.f32.xlu0 %v1500
    %v1502 = vpop.xlane.xlu0 %1501
    %v1503 = vsel %vm1125, %v1305, -inf
    %1504 = vmax.xlane.f32.xlu0 %v1503
    %v1505 = vpop.xlane.xlu0 %1504
    %v1506 = vsel %vm1125, %v1351, -inf
    %1507 = vmax.xlane.f32.xlu0 %v1506
    %v1508 = vpop.xlane.xlu0 %1507
    %v1509 = vsel %vm1125, %v1397, -inf
    %1510 = vmax.xlane.f32.xlu0 %v1509
    %v1511 = vpop.xlane.xlu0 %1510
    %v1512 = vsel %vm1125, %v1443, -inf
    %1513 = vmax.xlane.f32.xlu0 %v1512
    %v1514 = vpop.xlane.xlu0 %1513
    %v1515 = vsel %vm1125, %v1489, -inf
    %1516 = vmax.xlane.f32.xlu0 %v1515
    %v1517 = vpop.xlane.xlu0 %1516
    %v1518 = vsub.f32 %v1167, %v1496
    %v1519 = vsub.f32 %v1213, %v1499
    %v1520 = vsub.f32 %v1259, %v1502
    %v1521 = vsub.f32 %v1305, %v1505
    %v1522 = vsub.f32 %v1351, %v1508
    %v1523 = vsub.f32 %v1397, %v1511
    %v1524 = vsub.f32 %v1443, %v1514
    %v1525 = vsub.f32 %v1489, %v1517
    %v1526 = vmul.f32 %v1518, 1.442695
    %v1527 = vpow.pop %v1526
    %v1528 = vmul.f32 %v1519, 1.442695
    %v1529 = vpow.pop %v1528
    %v1530 = vmul.f32 %v1520, 1.442695
    %v1531 = vpow.pop %v1530
    %v1532 = vmul.f32 %v1521, 1.442695
    %v1533 = vpow.pop %v1532
    %v1534 = vmul.f32 %v1522, 1.442695
    %v1535 = vpow.pop %v1534
    %v1536 = vmul.f32 %v1523, 1.442695
    %v1537 = vpow.pop %v1536
    %v1538 = vmul.f32 %v1524, 1.442695
    %v1539 = vpow.pop %v1538
    %v1540 = vmul.f32 %v1525, 1.442695
    %v1541 = vpow.pop %v1540
    %v1542 = vsel %vm1125, %v1527, 0.0
    %1543 = vadd.xlane.f32.xlu0 %v1542
    %v1544 = vpop.xlane.xlu0 %1543
    %v1545 = vsel %vm1125, %v1529, 0.0
    %1546 = vadd.xlane.f32.xlu0 %v1545
    %v1547 = vpop.xlane.xlu0 %1546
    %v1548 = vsel %vm1125, %v1531, 0.0
    %1549 = vadd.xlane.f32.xlu0 %v1548
    %v1550 = vpop.xlane.xlu0 %1549
    %v1551 = vsel %vm1125, %v1533, 0.0
    %1552 = vadd.xlane.f32.xlu0 %v1551
    %v1553 = vpop.xlane.xlu0 %1552
    %v1554 = vsel %vm1125, %v1535, 0.0
    %1555 = vadd.xlane.f32.xlu0 %v1554
    %v1556 = vpop.xlane.xlu0 %1555
    %v1557 = vsel %vm1125, %v1537, 0.0
    %1558 = vadd.xlane.f32.xlu0 %v1557
    %v1559 = vpop.xlane.xlu0 %1558
    %v1560 = vsel %vm1125, %v1539, 0.0
    %1561 = vadd.xlane.f32.xlu0 %v1560
    %v1562 = vpop.xlane.xlu0 %1561
    %v1563 = vsel %vm1125, %v1541, 0.0
    %1564 = vadd.xlane.f32.xlu0 %v1563
    %v1565 = vpop.xlane.xlu0 %1564
    %v1566 = vrcp.pop %v1544
    %v1567 = vrcp.pop %v1547
    %v1568 = vrcp.pop %v1550
    %v1569 = vrcp.pop %v1553
    %v1570 = vrcp.pop %v1556
    %v1571 = vrcp.pop %v1559
    %v1572 = vrcp.pop %v1562
    %v1573 = vrcp.pop %v1565
    %v1574 = vmul.f32 %v1527, %v1566
    %v1575 = vmul.f32 %v1529, %v1567
    %v1576 = vmul.f32 %v1531, %v1568
    %v1577 = vmul.f32 %v1533, %v1569
    %v1578 = vmul.f32 %v1535, %v1570
    %v1579 = vmul.f32 %v1537, %v1571
    %v1580 = vmul.f32 %v1539, %v1572
    %v1581 = vmul.f32 %v1541, %v1573
    %1582 = vst.msk [vmem:[#allocation11] sm:$0xff] %vm1125, %v1574
    %1583 = vst.msk [vmem:[#allocation11 + $0x8] sm:$0xff] %vm1125, %v1575
    %1584 = vst.msk [vmem:[#allocation11 + $0x10] sm:$0xff] %vm1125, %v1576
    %1585 = vst.msk [vmem:[#allocation11 + $0x18] sm:$0xff] %vm1125, %v1577
    %1586 = vst.msk [vmem:[#allocation11 + $0x20] sm:$0xff] %vm1125, %v1578
    %1587 = vst.msk [vmem:[#allocation11 + $0x28] sm:$0xff] %vm1125, %v1579
    %1588 = vst.msk [vmem:[#allocation11 + $0x30] sm:$0xff] %vm1125, %v1580
    %1589 = vst.msk [vmem:[#allocation11 + $0x38] sm:$0xff] %vm1125, %v1581
    %v1590 = vpack.c.bf16 %v1574, %v1574
    %v1591 = vpack.c.bf16 %v1575, %v1575
    %v1592 = vpack.c.bf16 %v1576, %v1576
    %v1593 = vpack.c.bf16 %v1577, %v1577
    %v1594 = vpack.c.bf16 %v1578, %v1578
    %v1595 = vpack.c.bf16 %v1579, %v1579
    %v1596 = vpack.c.bf16 %v1580, %v1580
    %v1597 = vpack.c.bf16 %v1581, %v1581
    %v1599 = vsel %vm1125, %v1590, 0
    %vm1601 = vcmask 1043456
    %v1603 = vsel %vm1601, %v1117, 0
    %1605 = vmatprep.subr.bf16.mxu0 0
    %1606 = vmatpush1.bf16.msra.mxu0 %v1603
    %1607 = vmatprep.subr.bf16.mxu0 0
    %1608 = vmatpush1.bf16.msra.mxu0 0
    %1609 = vmatprep.subr.bf16.mxu0 0
    %1610 = vmatpush1.bf16.msra.mxu0 0
    %1611 = vmatprep.subr.bf16.mxu0 0
    %1612 = vmatpush1.bf16.msra.mxu0 0
    %1613 = vmatprep.subr.bf16.mxu0 0
    %1614 = vmatpush1.bf16.msra.mxu0 0
    %1615 = vmatprep.subr.bf16.mxu0 0
    %1616 = vmatpush1.bf16.msra.mxu0 0
    %1617 = vmatprep.subr.bf16.mxu0 0
    %1618 = vmatpush1.bf16.msra.mxu0 0
    %1619 = vmatprep.subr.bf16.mxu0 0
    %1620 = vmatpush1.bf16.msra.mxu0 0
    %1621 = vmatprep.subr.bf16.mxu0 0
    %1622 = vmatpush1.bf16.msra.mxu0 0
    %1623 = vmatprep.subr.bf16.mxu0 0
    %1624 = vmatpush1.bf16.msra.mxu0 0
    %1625 = vmatprep.subr.bf16.mxu0 0
    %1626 = vmatpush1.bf16.msra.mxu0 0
    %1627 = vmatprep.subr.bf16.mxu0 0
    %1628 = vmatpush1.bf16.msra.mxu0 0
    %1629 = vmatprep.subr.bf16.mxu0 0
    %1630 = vmatpush1.bf16.msra.mxu0 0
    %1631 = vmatprep.subr.bf16.mxu0 0
    %1632 = vmatpush1.bf16.msra.mxu0 0
    %1633 = vmatprep.subr.bf16.mxu0 0
    %1634 = vmatpush1.bf16.msra.mxu0 0
    %1635 = vmatprep.subr.bf16.mxu0 0
    %1636 = vmatpush1.bf16.msra.mxu0 0
    %1637 = vmatprep.mubr.bf16.mxu0 0
    %1638 = vmatmul.mubr.bf16.gmra.mrb[0].mxu0 %v1599
    %v1639 = vpop.f32.mrb[0].mxu0
    %v1640 = vadd.f32 0.0, %v1639
    %v1641 = vpop.f32.mrb[0].mxu0
    %v1642 = vpop.f32.mrb[0].mxu0
    %v1643 = vpop.f32.mrb[0].mxu0
    %1644 = vdwg.mxu0
    %v1646 = vsel %vm1125, %v1591, 0
    %v1649 = vsel %vm1601, %v1118, 0
    %1651 = vmatprep.subr.bf16.mxu0 0
    %1652 = vmatpush1.bf16.msra.mxu0 %v1649
    %1653 = vmatprep.subr.bf16.mxu0 0
    %1654 = vmatpush1.bf16.msra.mxu0 0
    %1655 = vmatprep.subr.bf16.mxu0 0
    %1656 = vmatpush1.bf16.msra.mxu0 0
    %1657 = vmatprep.subr.bf16.mxu0 0
    %1658 = vmatpush1.bf16.msra.mxu0 0
    %1659 = vmatprep.subr.bf16.mxu0 0
    %1660 = vmatpush1.bf16.msra.mxu0 0
    %1661 = vmatprep.subr.bf16.mxu0 0
    %1662 = vmatpush1.bf16.msra.mxu0 0
    %1663 = vmatprep.subr.bf16.mxu0 0
    %1664 = vmatpush1.bf16.msra.mxu0 0
    %1665 = vmatprep.subr.bf16.mxu0 0
    %1666 = vmatpush1.bf16.msra.mxu0 0
    %1667 = vmatprep.subr.bf16.mxu0 0
    %1668 = vmatpush1.bf16.msra.mxu0 0
    %1669 = vmatprep.subr.bf16.mxu0 0
    %1670 = vmatpush1.bf16.msra.mxu0 0
    %1671 = vmatprep.subr.bf16.mxu0 0
    %1672 = vmatpush1.bf16.msra.mxu0 0
    %1673 = vmatprep.subr.bf16.mxu0 0
    %1674 = vmatpush1.bf16.msra.mxu0 0
    %1675 = vmatprep.subr.bf16.mxu0 0
    %1676 = vmatpush1.bf16.msra.mxu0 0
    %1677 = vmatprep.subr.bf16.mxu0 0
    %1678 = vmatpush1.bf16.msra.mxu0 0
    %1679 = vmatprep.subr.bf16.mxu0 0
    %1680 = vmatpush1.bf16.msra.mxu0 0
    %1681 = vmatprep.subr.bf16.mxu0 0
    %1682 = vmatpush1.bf16.msra.mxu0 0
    %1683 = vmatprep.mubr.bf16.mxu0 0
    %1684 = vmatmul.mubr.bf16.gmra.mrb[0].mxu0 %v1646
    %v1685 = vpop.f32.mrb[0].mxu0
    %v1686 = vadd.f32 0.0, %v1685
    %v1687 = vpop.f32.mrb[0].mxu0
    %v1688 = vpop.f32.mrb[0].mxu0
    %v1689 = vpop.f32.mrb[0].mxu0
    %1690 = vdwg.mxu0
    %v1692 = vsel %vm1125, %v1592, 0
    %v1695 = vsel %vm1601, %v1119, 0
    %1697 = vmatprep.subr.bf16.mxu0 0
    %1698 = vmatpush1.bf16.msra.mxu0 %v1695
    %1699 = vmatprep.subr.bf16.mxu0 0
    %1700 = vmatpush1.bf16.msra.mxu0 0
    %1701 = vmatprep.subr.bf16.mxu0 0
    %1702 = vmatpush1.bf16.msra.mxu0 0
    %1703 = vmatprep.subr.bf16.mxu0 0
    %1704 = vmatpush1.bf16.msra.mxu0 0
    %1705 = vmatprep.subr.bf16.mxu0 0
    %1706 = vmatpush1.bf16.msra.mxu0 0
    %1707 = vmatprep.subr.bf16.mxu0 0
    %1708 = vmatpush1.bf16.msra.mxu0 0
    %1709 = vmatprep.subr.bf16.mxu0 0
    %1710 = vmatpush1.bf16.msra.mxu0 0
    %1711 = vmatprep.subr.bf16.mxu0 0
    %1712 = vmatpush1.bf16.msra.mxu0 0
    %1713 = vmatprep.subr.bf16.mxu0 0
    %1714 = vmatpush1.bf16.msra.mxu0 0
    %1715 = vmatprep.subr.bf16.mxu0 0
    %1716 = vmatpush1.bf16.msra.mxu0 0
    %1717 = vmatprep.subr.bf16.mxu0 0
    %1718 = vmatpush1.bf16.msra.mxu0 0
    %1719 = vmatprep.subr.bf16.mxu0 0
    %1720 = vmatpush1.bf16.msra.mxu0 0
    %1721 = vmatprep.subr.bf16.mxu0 0
    %1722 = vmatpush1.bf16.msra.mxu0 0
    %1723 = vmatprep.subr.bf16.mxu0 0
    %1724 = vmatpush1.bf16.msra.mxu0 0
    %1725 = vmatprep.subr.bf16.mxu0 0
    %1726 = vmatpush1.bf16.msra.mxu0 0
    %1727 = vmatprep.subr.bf16.mxu0 0
    %1728 = vmatpush1.bf16.msra.mxu0 0
    %1729 = vmatprep.mubr.bf16.mxu0 0
    %1730 = vmatmul.mubr.bf16.gmra.mrb[0].mxu0 %v1692
    %v1731 = vpop.f32.mrb[0].mxu0
    %v1732 = vadd.f32 0.0, %v1731
    %v1733 = vpop.f32.mrb[0].mxu0
    %v1734 = vpop.f32.mrb[0].mxu0
    %v1735 = vpop.f32.mrb[0].mxu0
    %1736 = vdwg.mxu0
    %v1738 = vsel %vm1125, %v1593, 0
    %v1741 = vsel %vm1601, %v1120, 0
    %1743 = vmatprep.subr.bf16.mxu0 0
    %1744 = vmatpush1.bf16.msra.mxu0 %v1741
    %1745 = vmatprep.subr.bf16.mxu0 0
    %1746 = vmatpush1.bf16.msra.mxu0 0
    %1747 = vmatprep.subr.bf16.mxu0 0
    %1748 = vmatpush1.bf16.msra.mxu0 0
    %1749 = vmatprep.subr.bf16.mxu0 0
    %1750 = vmatpush1.bf16.msra.mxu0 0
    %1751 = vmatprep.subr.bf16.mxu0 0
    %1752 = vmatpush1.bf16.msra.mxu0 0
    %1753 = vmatprep.subr.bf16.mxu0 0
    %1754 = vmatpush1.bf16.msra.mxu0 0
    %1755 = vmatprep.subr.bf16.mxu0 0
    %1756 = vmatpush1.bf16.msra.mxu0 0
    %1757 = vmatprep.subr.bf16.mxu0 0
    %1758 = vmatpush1.bf16.msra.mxu0 0
    %1759 = vmatprep.subr.bf16.mxu0 0
    %1760 = vmatpush1.bf16.msra.mxu0 0
    %1761 = vmatprep.subr.bf16.mxu0 0
    %1762 = vmatpush1.bf16.msra.mxu0 0
    %1763 = vmatprep.subr.bf16.mxu0 0
    %1764 = vmatpush1.bf16.msra.mxu0 0
    %1765 = vmatprep.subr.bf16.mxu0 0
    %1766 = vmatpush1.bf16.msra.mxu0 0
    %1767 = vmatprep.subr.bf16.mxu0 0
    %1768 = vmatpush1.bf16.msra.mxu0 0
    %1769 = vmatprep.subr.bf16.mxu0 0
    %1770 = vmatpush1.bf16.msra.mxu0 0
    %1771 = vmatprep.subr.bf16.mxu0 0
    %1772 = vmatpush1.bf16.msra.mxu0 0
    %1773 = vmatprep.subr.bf16.mxu0 0
    %1774 = vmatpush1.bf16.msra.mxu0 0
    %1775 = vmatprep.mubr.bf16.mxu0 0
    %1776 = vmatmul.mubr.bf16.gmra.mrb[0].mxu0 %v1738
    %v1777 = vpop.f32.mrb[0].mxu0
    %v1778 = vadd.f32 0.0, %v1777
    %v1779 = vpop.f32.mrb[0].mxu0
    %v1780 = vpop.f32.mrb[0].mxu0
    %v1781 = vpop.f32.mrb[0].mxu0
    %1782 = vdwg.mxu0
    %v1784 = vsel %vm1125, %v1594, 0
    %v1787 = vsel %vm1601, %v1121, 0
    %1789 = vmatprep.subr.bf16.mxu0 0
    %1790 = vmatpush1.bf16.msra.mxu0 %v1787
    %1791 = vmatprep.subr.bf16.mxu0 0
    %1792 = vmatpush1.bf16.msra.mxu0 0
    %1793 = vmatprep.subr.bf16.mxu0 0
    %1794 = vmatpush1.bf16.msra.mxu0 0
    %1795 = vmatprep.subr.bf16.mxu0 0
    %1796 = vmatpush1.bf16.msra.mxu0 0
    %1797 = vmatprep.subr.bf16.mxu0 0
    %1798 = vmatpush1.bf16.msra.mxu0 0
    %1799 = vmatprep.subr.bf16.mxu0 0
    %1800 = vmatpush1.bf16.msra.mxu0 0
    %1801 = vmatprep.subr.bf16.mxu0 0
    %1802 = vmatpush1.bf16.msra.mxu0 0
    %1803 = vmatprep.subr.bf16.mxu0 0
    %1804 = vmatpush1.bf16.msra.mxu0 0
    %1805 = vmatprep.subr.bf16.mxu0 0
    %1806 = vmatpush1.bf16.msra.mxu0 0
    %1807 = vmatprep.subr.bf16.mxu0 0
    %1808 = vmatpush1.bf16.msra.mxu0 0
    %1809 = vmatprep.subr.bf16.mxu0 0
    %1810 = vmatpush1.bf16.msra.mxu0 0
    %1811 = vmatprep.subr.bf16.mxu0 0
    %1812 = vmatpush1.bf16.msra.mxu0 0
    %1813 = vmatprep.subr.bf16.mxu0 0
    %1814 = vmatpush1.bf16.msra.mxu0 0
    %1815 = vmatprep.subr.bf16.mxu0 0
    %1816 = vmatpush1.bf16.msra.mxu0 0
    %1817 = vmatprep.subr.bf16.mxu0 0
    %1818 = vmatpush1.bf16.msra.mxu0 0
    %1819 = vmatprep.subr.bf16.mxu0 0
    %1820 = vmatpush1.bf16.msra.mxu0 0
    %1821 = vmatprep.mubr.bf16.mxu0 0
    %1822 = vmatmul.mubr.bf16.gmra.mrb[0].mxu0 %v1784
    %v1823 = vpop.f32.mrb[0].mxu0
    %v1824 = vadd.f32 0.0, %v1823
    %v1825 = vpop.f32.mrb[0].mxu0
    %v1826 = vpop.f32.mrb[0].mxu0
    %v1827 = vpop.f32.mrb[0].mxu0
    %1828 = vdwg.mxu0
    %v1830 = vsel %vm1125, %v1595, 0
    %v1833 = vsel %vm1601, %v1122, 0
    %1835 = vmatprep.subr.bf16.mxu0 0
    %1836 = vmatpush1.bf16.msra.mxu0 %v1833
    %1837 = vmatprep.subr.bf16.mxu0 0
    %1838 = vmatpush1.bf16.msra.mxu0 0
    %1839 = vmatprep.subr.bf16.mxu0 0
    %1840 = vmatpush1.bf16.msra.mxu0 0
    %1841 = vmatprep.subr.bf16.mxu0 0
    %1842 = vmatpush1.bf16.msra.mxu0 0
    %1843 = vmatprep.subr.bf16.mxu0 0
    %1844 = vmatpush1.bf16.msra.mxu0 0
    %1845 = vmatprep.subr.bf16.mxu0 0
    %1846 = vmatpush1.bf16.msra.mxu0 0
    %1847 = vmatprep.subr.bf16.mxu0 0
    %1848 = vmatpush1.bf16.msra.mxu0 0
    %1849 = vmatprep.subr.bf16.mxu0 0
    %1850 = vmatpush1.bf16.msra.mxu0 0
    %1851 = vmatprep.subr.bf16.mxu0 0
    %1852 = vmatpush1.bf16.msra.mxu0 0
    %1853 = vmatprep.subr.bf16.mxu0 0
    %1854 = vmatpush1.bf16.msra.mxu0 0
    %1855 = vmatprep.subr.bf16.mxu0 0
    %1856 = vmatpush1.bf16.msra.mxu0 0
    %1857 = vmatprep.subr.bf16.mxu0 0
    %1858 = vmatpush1.bf16.msra.mxu0 0
    %1859 = vmatprep.subr.bf16.mxu0 0
    %1860 = vmatpush1.bf16.msra.mxu0 0
    %1861 = vmatprep.subr.bf16.mxu0 0
    %1862 = vmatpush1.bf16.msra.mxu0 0
    %1863 = vmatprep.subr.bf16.mxu0 0
    %1864 = vmatpush1.bf16.msra.mxu0 0
    %1865 = vmatprep.subr.bf16.mxu0 0
    %1866 = vmatpush1.bf16.msra.mxu0 0
    %1867 = vmatprep.mubr.bf16.mxu0 0
    %1868 = vmatmul.mubr.bf16.gmra.mrb[0].mxu0 %v1830
    %v1869 = vpop.f32.mrb[0].mxu0
    %v1870 = vadd.f32 0.0, %v1869
    %v1871 = vpop.f32.mrb[0].mxu0
    %v1872 = vpop.f32.mrb[0].mxu0
    %v1873 = vpop.f32.mrb[0].mxu0
    %1874 = vdwg.mxu0
    %v1876 = vsel %vm1125, %v1596, 0
    %v1879 = vsel %vm1601, %v1123, 0
    %1881 = vmatprep.subr.bf16.mxu0 0
    %1882 = vmatpush1.bf16.msra.mxu0 %v1879
    %1883 = vmatprep.subr.bf16.mxu0 0
    %1884 = vmatpush1.bf16.msra.mxu0 0
    %1885 = vmatprep.subr.bf16.mxu0 0
    %1886 = vmatpush1.bf16.msra.mxu0 0
    %1887 = vmatprep.subr.bf16.mxu0 0
    %1888 = vmatpush1.bf16.msra.mxu0 0
    %1889 = vmatprep.subr.bf16.mxu0 0
    %1890 = vmatpush1.bf16.msra.mxu0 0
    %1891 = vmatprep.subr.bf16.mxu0 0
    %1892 = vmatpush1.bf16.msra.mxu0 0
    %1893 = vmatprep.subr.bf16.mxu0 0
    %1894 = vmatpush1.bf16.msra.mxu0 0
    %1895 = vmatprep.subr.bf16.mxu0 0
    %1896 = vmatpush1.bf16.msra.mxu0 0
    %1897 = vmatprep.subr.bf16.mxu0 0
    %1898 = vmatpush1.bf16.msra.mxu0 0
    %1899 = vmatprep.subr.bf16.mxu0 0
    %1900 = vmatpush1.bf16.msra.mxu0 0
    %1901 = vmatprep.subr.bf16.mxu0 0
    %1902 = vmatpush1.bf16.msra.mxu0 0
    %1903 = vmatprep.subr.bf16.mxu0 0
    %1904 = vmatpush1.bf16.msra.mxu0 0
    %1905 = vmatprep.subr.bf16.mxu0 0
    %1906 = vmatpush1.bf16.msra.mxu0 0
    %1907 = vmatprep.subr.bf16.mxu0 0
    %1908 = vmatpush1.bf16.msra.mxu0 0
    %1909 = vmatprep.subr.bf16.mxu0 0
    %1910 = vmatpush1.bf16.msra.mxu0 0
    %1911 = vmatprep.subr.bf16.mxu0 0
    %1912 = vmatpush1.bf16.msra.mxu0 0
    %1913 = vmatprep.mubr.bf16.mxu0 0
    %1914 = vmatmul.mubr.bf16.gmra.mrb[0].mxu0 %v1876
    %v1915 = vpop.f32.mrb[0].mxu0
    %v1916 = vadd.f32 0.0, %v1915
    %v1917 = vpop.f32.mrb[0].mxu0
    %v1918 = vpop.f32.mrb[0].mxu0
    %v1919 = vpop.f32.mrb[0].mxu0
    %1920 = vdwg.mxu0
    %v1922 = vsel %vm1125, %v1597, 0
    %v1925 = vsel %vm1601, %v1124, 0
    %1927 = vmatprep.subr.bf16.mxu0 0
    %1928 = vmatpush1.bf16.msra.mxu0 %v1925
    %1929 = vmatprep.subr.bf16.mxu0 0
    %1930 = vmatpush1.bf16.msra.mxu0 0
    %1931 = vmatprep.subr.bf16.mxu0 0
    %1932 = vmatpush1.bf16.msra.mxu0 0
    %1933 = vmatprep.subr.bf16.mxu0 0
    %1934 = vmatpush1.bf16.msra.mxu0 0
    %1935 = vmatprep.subr.bf16.mxu0 0
    %1936 = vmatpush1.bf16.msra.mxu0 0
    %1937 = vmatprep.subr.bf16.mxu0 0
    %1938 = vmatpush1.bf16.msra.mxu0 0
    %1939 = vmatprep.subr.bf16.mxu0 0
    %1940 = vmatpush1.bf16.msra.mxu0 0
    %1941 = vmatprep.subr.bf16.mxu0 0
    %1942 = vmatpush1.bf16.msra.mxu0 0
    %1943 = vmatprep.subr.bf16.mxu0 0
    %1944 = vmatpush1.bf16.msra.mxu0 0
    %1945 = vmatprep.subr.bf16.mxu0 0
    %1946 = vmatpush1.bf16.msra.mxu0 0
    %1947 = vmatprep.subr.bf16.mxu0 0
    %1948 = vmatpush1.bf16.msra.mxu0 0
    %1949 = vmatprep.subr.bf16.mxu0 0
    %1950 = vmatpush1.bf16.msra.mxu0 0
    %1951 = vmatprep.subr.bf16.mxu0 0
    %1952 = vmatpush1.bf16.msra.mxu0 0
    %1953 = vmatprep.subr.bf16.mxu0 0
    %1954 = vmatpush1.bf16.msra.mxu0 0
    %1955 = vmatprep.subr.bf16.mxu0 0
    %1956 = vmatpush1.bf16.msra.mxu0 0
    %1957 = vmatprep.subr.bf16.mxu0 0
    %1958 = vmatpush1.bf16.msra.mxu0 0
    %1959 = vmatprep.mubr.bf16.mxu0 0
    %1960 = vmatmul.mubr.bf16.gmra.mrb[0].mxu0 %v1922
    %v1961 = vpop.f32.mrb[0].mxu0
    %v1962 = vadd.f32 0.0, %v1961
    %v1963 = vpop.f32.mrb[0].mxu0
    %v1964 = vpop.f32.mrb[0].mxu0
    %v1965 = vpop.f32.mrb[0].mxu0
    %1966 = vdwg.mxu0
    %v1967 = vpack.c.bf16 %v1824, %v1640
    %v1968 = vld [vmem:[%s5] sm:$0xf]
    %v1969 = vpack.c.bf16 %v1870, %v1686
    %s1970 = scalar_lea.vmem %s5, 4
    %v1971 = vld [vmem:[%s1970] sm:$0xf]
    %v1973 = vsel %vm1125, %v1969, 0
    %v1976 = vsel %vm1601, %v1971, 0
    %1978 = vmatprep.subr.bf16.mxu0 0
    %1979 = vmatpush1.bf16.msra.mxu0 %v1976
    %1980 = vmatprep.subr.bf16.mxu0 0
    %1981 = vmatpush1.bf16.msra.mxu0 0
    %1982 = vmatprep.subr.bf16.mxu0 0
    %1983 = vmatpush1.bf16.msra.mxu0 0
    %1984 = vmatprep.subr.bf16.mxu0 0
    %1985 = vmatpush1.bf16.msra.mxu0 0
    %1986 = vmatprep.subr.bf16.mxu0 0
    %1987 = vmatpush1.bf16.msra.mxu0 0
    %1988 = vmatprep.subr.bf16.mxu0 0
    %1989 = vmatpush1.bf16.msra.mxu0 0
    %1990 = vmatprep.subr.bf16.mxu0 0
    %1991 = vmatpush1.bf16.msra.mxu0 0
    %1992 = vmatprep.subr.bf16.mxu0 0
    %1993 = vmatpush1.bf16.msra.mxu0 0
    %1994 = vmatprep.subr.bf16.mxu0 0
    %1995 = vmatpush1.bf16.msra.mxu0 0
    %1996 = vmatprep.subr.bf16.mxu0 0
    %1997 = vmatpush1.bf16.msra.mxu0 0
    %1998 = vmatprep.subr.bf16.mxu0 0
    %1999 = vmatpush1.bf16.msra.mxu0 0
    %2000 = vmatprep.subr.bf16.mxu0 0
    %2001 = vmatpush1.bf16.msra.mxu0 0
    %2002 = vmatprep.subr.bf16.mxu0 0
    %2003 = vmatpush1.bf16.msra.mxu0 0
    %2004 = vmatprep.subr.bf16.mxu0 0
    %2005 = vmatpush1.bf16.msra.mxu0 0
    %2006 = vmatprep.subr.bf16.mxu0 0
    %2007 = vmatpush1.bf16.msra.mxu0 0
    %2008 = vmatprep.subr.bf16.mxu0 0
    %2009 = vmatpush1.bf16.msra.mxu0 0
    %2010 = vmatprep.mubr.bf16.mxu0 0
    %2011 = vmatmul.mubr.bf16.gmra.mrb[0].mxu0 %v1973
    %v2012 = vpop.f32.mrb[0].mxu0
    %v2013 = vadd.f32 0.0, %v2012
    %v2014 = vpop.f32.mrb[0].mxu0
    %v2015 = vpop.f32.mrb[0].mxu0
    %v2016 = vadd.f32 0.0, %v2015
    %v2017 = vpop.f32.mrb[0].mxu0
    %2018 = vdwg.mxu0
    %v2020 = vsel %vm1125, %v1967, 0
    %v2023 = vsel %vm1601, %v1968, 0
    %2025 = vmatprep.subr.bf16.mxu0 0
    %2026 = vmatpush1.bf16.msra.mxu0 %v2023
    %2027 = vmatprep.subr.bf16.mxu0 0
    %2028 = vmatpush1.bf16.msra.mxu0 0
    %2029 = vmatprep.subr.bf16.mxu0 0
    %2030 = vmatpush1.bf16.msra.mxu0 0
    %2031 = vmatprep.subr.bf16.mxu0 0
    %2032 = vmatpush1.bf16.msra.mxu0 0
    %2033 = vmatprep.subr.bf16.mxu0 0
    %2034 = vmatpush1.bf16.msra.mxu0 0
    %2035 = vmatprep.subr.bf16.mxu0 0
    %2036 = vmatpush1.bf16.msra.mxu0 0
    %2037 = vmatprep.subr.bf16.mxu0 0
    %2038 = vmatpush1.bf16.msra.mxu0 0
    %2039 = vmatprep.subr.bf16.mxu0 0
    %2040 = vmatpush1.bf16.msra.mxu0 0
    %2041 = vmatprep.subr.bf16.mxu0 0
    %2042 = vmatpush1.bf16.msra.mxu0 0
    %2043 = vmatprep.subr.bf16.mxu0 0
    %2044 = vmatpush1.bf16.msra.mxu0 0
    %2045 = vmatprep.subr.bf16.mxu0 0
    %2046 = vmatpush1.bf16.msra.mxu0 0
    %2047 = vmatprep.subr.bf16.mxu0 0
    %2048 = vmatpush1.bf16.msra.mxu0 0
    %2049 = vmatprep.subr.bf16.mxu0 0
    %2050 = vmatpush1.bf16.msra.mxu0 0
    %2051 = vmatprep.subr.bf16.mxu0 0
    %2052 = vmatpush1.bf16.msra.mxu0 0
    %2053 = vmatprep.subr.bf16.mxu0 0
    %2054 = vmatpush1.bf16.msra.mxu0 0
    %2055 = vmatprep.subr.bf16.mxu0 0
    %2056 = vmatpush1.bf16.msra.mxu0 0
    %2057 = vmatprep.mubr.bf16.mxu0 0
    %2058 = vmatmul.mubr.bf16.gmra.mrb[0].mxu0 %v2020
    %v2059 = vpop.f32.mrb[0].mxu0
    %v2060 = vadd.f32 %v2013, %v2059
    %v2061 = vpop.f32.mrb[0].mxu0
    %v2062 = vpop.f32.mrb[0].mxu0
    %v2063 = vadd.f32 %v2016, %v2062
    %v2064 = vpop.f32.mrb[0].mxu0
    %2065 = vdwg.mxu0
    %v2066 = vpack.c.bf16 %v1916, %v1732
    %s2067 = scalar_lea.vmem %s5, 8
    %v2068 = vld [vmem:[%s2067] sm:$0xf]
    %v2070 = vsel %vm1125, %v2066, 0
    %v2073 = vsel %vm1601, %v2068, 0
    %2075 = vmatprep.subr.bf16.mxu0 0
    %2076 = vmatpush1.bf16.msra.mxu0 %v2073
    %2077 = vmatprep.subr.bf16.mxu0 0
    %2078 = vmatpush1.bf16.msra.mxu0 0
    %2079 = vmatprep.subr.bf16.mxu0 0
    %2080 = vmatpush1.bf16.msra.mxu0 0
    %2081 = vmatprep.subr.bf16.mxu0 0
    %2082 = vmatpush1.bf16.msra.mxu0 0
    %2083 = vmatprep.subr.bf16.mxu0 0
    %2084 = vmatpush1.bf16.msra.mxu0 0
    %2085 = vmatprep.subr.bf16.mxu0 0
    %2086 = vmatpush1.bf16.msra.mxu0 0
    %2087 = vmatprep.subr.bf16.mxu0 0
    %2088 = vmatpush1.bf16.msra.mxu0 0
    %2089 = vmatprep.subr.bf16.mxu0 0
    %2090 = vmatpush1.bf16.msra.mxu0 0
    %2091 = vmatprep.subr.bf16.mxu0 0
    %2092 = vmatpush1.bf16.msra.mxu0 0
    %2093 = vmatprep.subr.bf16.mxu0 0
    %2094 = vmatpush1.bf16.msra.mxu0 0
    %2095 = vmatprep.subr.bf16.mxu0 0
    %2096 = vmatpush1.bf16.msra.mxu0 0
    %2097 = vmatprep.subr.bf16.mxu0 0
    %2098 = vmatpush1.bf16.msra.mxu0 0
    %2099 = vmatprep.subr.bf16.mxu0 0
    %2100 = vmatpush1.bf16.msra.mxu0 0
    %2101 = vmatprep.subr.bf16.mxu0 0
    %2102 = vmatpush1.bf16.msra.mxu0 0
    %2103 = vmatprep.subr.bf16.mxu0 0
    %2104 = vmatpush1.bf16.msra.mxu0 0
    %2105 = vmatprep.subr.bf16.mxu0 0
    %2106 = vmatpush1.bf16.msra.mxu0 0
    %2107 = vmatprep.mubr.bf16.mxu0 0
    %2108 = vmatmul.mubr.bf16.gmra.mrb[0].mxu0 %v2070
    %v2109 = vpop.f32.mrb[0].mxu0
    %v2110 = vadd.f32 0.0, %v2109
    %v2111 = vpop.f32.mrb[0].mxu0
    %v2112 = vpop.f32.mrb[0].mxu0
    %v2113 = vadd.f32 0.0, %v2112
    %v2114 = vpop.f32.mrb[0].mxu0
    %2115 = vdwg.mxu0
    %v2116 = vadd.f32 %v2060, %v2110
    %v2117 = vadd.f32 %v2063, %v2113
    %v2118 = vpack.c.bf16 %v1962, %v1778
    %s2119 = scalar_lea.vmem %s5, 12
    %v2120 = vld [vmem:[%s2119] sm:$0xf]
    %v2122 = vsel %vm1125, %v2118, 0
    %v2125 = vsel %vm1601, %v2120, 0
    %2127 = vmatprep.subr.bf16.mxu0 0
    %2128 = vmatpush1.bf16.msra.mxu0 %v2125
    %2129 = vmatprep.subr.bf16.mxu0 0
    %2130 = vmatpush1.bf16.msra.mxu0 0
    %2131 = vmatprep.subr.bf16.mxu0 0
    %2132 = vmatpush1.bf16.msra.mxu0 0
    %2133 = vmatprep.subr.bf16.mxu0 0
    %2134 = vmatpush1.bf16.msra.mxu0 0
    %2135 = vmatprep.subr.bf16.mxu0 0
    %2136 = vmatpush1.bf16.msra.mxu0 0
    %2137 = vmatprep.subr.bf16.mxu0 0
    %2138 = vmatpush1.bf16.msra.mxu0 0
    %2139 = vmatprep.subr.bf16.mxu0 0
    %2140 = vmatpush1.bf16.msra.mxu0 0
    %2141 = vmatprep.subr.bf16.mxu0 0
    %2142 = vmatpush1.bf16.msra.mxu0 0
    %2143 = vmatprep.subr.bf16.mxu0 0
    %2144 = vmatpush1.bf16.msra.mxu0 0
    %2145 = vmatprep.subr.bf16.mxu0 0
    %2146 = vmatpush1.bf16.msra.mxu0 0
    %2147 = vmatprep.subr.bf16.mxu0 0
    %2148 = vmatpush1.bf16.msra.mxu0 0
    %2149 = vmatprep.subr.bf16.mxu0 0
    %2150 = vmatpush1.bf16.msra.mxu0 0
    %2151 = vmatprep.subr.bf16.mxu0 0
    %2152 = vmatpush1.bf16.msra.mxu0 0
    %2153 = vmatprep.subr.bf16.mxu0 0
    %2154 = vmatpush1.bf16.msra.mxu0 0
    %2155 = vmatprep.subr.bf16.mxu0 0
    %2156 = vmatpush1.bf16.msra.mxu0 0
    %2157 = vmatprep.subr.bf16.mxu0 0
    %2158 = vmatpush1.bf16.msra.mxu0 0
    %2159 = vmatprep.mubr.bf16.mxu0 0
    %2160 = vmatmul.mubr.bf16.gmra.mrb[0].mxu0 %v2122
    %v2161 = vpop.f32.mrb[0].mxu0
    %v2162 = vadd.f32 0.0, %v2161
    %v2163 = vpop.f32.mrb[0].mxu0
    %v2164 = vpop.f32.mrb[0].mxu0
    %v2165 = vadd.f32 0.0, %v2164
    %v2166 = vpop.f32.mrb[0].mxu0
    %2167 = vdwg.mxu0
    %v2168 = vadd.f32 %v2116, %v2162
    %v2169 = vadd.f32 %v2117, %v2165
    %v2170 = vld [vmem:[#allocation5] sm:$0x1]
    %v2172 = vlaneseq
    %v2173 = vshrl.u32 %v2172, 7
    %v2174 = vsub.s32 0, %v2173
    %v2175 = vrot.slane %v2170, %v2174
    %v2177 = vadd.f32 %v2168, %v2175
    %v2178 = vadd.f32 %v2169, %v2175
    %v2179 = vadd.f32 %v2177, %v96
    %v2180 = vadd.f32 %v2178, %v97
    %v2181 = vld [vmem:[#allocation7] sm:$0x1]
    %v2182 = vld [vmem:[#allocation8] sm:$0x1]
    %v2183 = vsel %vm100, %v2179, 0.0
    %2184 = vadd.xlane.f32.xlu0 %v2183
    %v2185 = vpop.xlane.xlu0 %2184
    %v2186 = vsel %vm100, %v2180, 0.0
    %2187 = vadd.xlane.f32.xlu0 %v2186
    %v2188 = vpop.xlane.xlu0 %2187
    %v2189 = vmul.f32 %v2179, %v2179
    %v2190 = vmul.f32 %v2180, %v2180
    %v2191 = vsel %vm100, %v2189, 0.0
    %2192 = vadd.xlane.f32.xlu0 %v2191
    %v2193 = vpop.xlane.xlu0 %2192
    %v2194 = vsel %vm100, %v2190, 0.0
    %2195 = vadd.xlane.f32.xlu0 %v2194
    %v2196 = vpop.xlane.xlu0 %2195
    %v2197 = vmul.f32 %v2185, 0.03125
    %v2198 = vmul.f32 %v2188, 0.03125
    %v2199 = vmul.f32 %v2193, 0.03125
    %v2200 = vmul.f32 %v2196, 0.03125
    %v2201 = vmul.f32 %v2197, %v2197
    %v2202 = vmul.f32 %v2198, %v2198
    %v2203 = vsub.f32 %v2199, %v2201
    %v2204 = vsub.f32 %v2200, %v2202
    %v2205 = vmax.f32 %v2203, 0.0
    %v2206 = vmax.f32 %v2204, 0.0
    %v2207 = vsub.f32 %v2179, %v2197
    %v2208 = vsub.f32 %v2180, %v2198
    %v2209 = vadd.f32 %v2205, 1e-06
    %v2210 = vadd.f32 %v2206, 1e-06
    %v2211 = vrsqrt.pop %v2209
    %v2212 = vrsqrt.pop %v2210
    %v2213 = vmul.f32 %v2207, %v2211
    %v2214 = vmul.f32 %v2208, %v2212
    %v2216 = vlaneseq
    %v2217 = vshrl.u32 %v2216, 7
    %v2218 = vsub.s32 0, %v2217
    %v2219 = vrot.slane %v2181, %v2218
    %v2221 = vmul.f32 %v2213, %v2219
    %v2222 = vmul.f32 %v2214, %v2219
    %v2224 = vlaneseq
    %v2225 = vshrl.u32 %v2224, 7
    %v2226 = vsub.s32 0, %v2225
    %v2227 = vrot.slane %v2182, %v2226
    %v2229 = vadd.f32 %v2221, %v2227
    %v2230 = vadd.f32 %v2222, %v2227
    %v2231 = vpack.c.bf16 %v2230, %v2229
    %v2232 = vld [vmem:[%s9] sm:$0xf]
    %v2233 = vld [vmem:[%s9 + $0x4] sm:$0xf]
    %v2234 = vld [vmem:[%s9 + $0x8] sm:$0xf]
    %v2235 = vld [vmem:[%s9 + $0xc] sm:$0xf]
    %v2236 = vld [vmem:[%s10] sm:$0x1]
    %v2238 = vlaneseq
    %v2239 = vshrl.u32 %v2238, 7
    %v2240 = vsub.s32 0, %v2239
    %v2241 = vrot.slane %v2236, %v2240
    %v2247 = vunpack.c.l.b16 %v2232
    %v2248 = vunpack.c.l.b16 %v2233
    %v2249 = vunpack.c.l.b16 %v2234
    %v2250 = vunpack.c.l.b16 %v2235
    %v2251 = vpack.c.b16 %v2248, %v2247
    %v2252 = vpack.c.b16 %v2250, %v2249
    %v2256 = vsel %vm100, %v2231, 0
    %2258 = vmatprep.subr.bf16.mxu0 0
    %2259 = vmatpush1.bf16.msra.mxu0 %v2251
    %2260 = vmatprep.subr.bf16.mxu0 0
    %2261 = vmatpush1.bf16.msra.mxu0 %v2252
    %2262 = vmatprep.subr.bf16.mxu0 0
    %2263 = vmatpush1.bf16.msra.mxu0 0
    %2264 = vmatprep.subr.bf16.mxu0 0
    %2265 = vmatpush1.bf16.msra.mxu0 0
    %2266 = vmatprep.subr.bf16.mxu0 0
    %2267 = vmatpush1.bf16.msra.mxu0 0
    %2268 = vmatprep.subr.bf16.mxu0 0
    %2269 = vmatpush1.bf16.msra.mxu0 0
    %2270 = vmatprep.subr.bf16.mxu0 0
    %2271 = vmatpush1.bf16.msra.mxu0 0
    %2272 = vmatprep.subr.bf16.mxu0 0
    %2273 = vmatpush1.bf16.msra.mxu0 0
    %2274 = vmatprep.subr.bf16.mxu0 0
    %2275 = vmatpush1.bf16.msra.mxu0 0
    %2276 = vmatprep.subr.bf16.mxu0 0
    %2277 = vmatpush1.bf16.msra.mxu0 0
    %2278 = vmatprep.subr.bf16.mxu0 0
    %2279 = vmatpush1.bf16.msra.mxu0 0
    %2280 = vmatprep.subr.bf16.mxu0 0
    %2281 = vmatpush1.bf16.msra.mxu0 0
    %2282 = vmatprep.subr.bf16.mxu0 0
    %2283 = vmatpush1.bf16.msra.mxu0 0
    %2284 = vmatprep.subr.bf16.mxu0 0
    %2285 = vmatpush1.bf16.msra.mxu0 0
    %2286 = vmatprep.subr.bf16.mxu0 0
    %2287 = vmatpush1.bf16.msra.mxu0 0
    %2288 = vmatprep.subr.bf16.mxu0 0
    %2289 = vmatpush1.bf16.msra.mxu0 0
    %2290 = vmatprep.mubr.bf16.mxu0 0
    %2291 = vmatmul.mubr.bf16.gmra.mrb[0].mxu0 %v2256
    %v2292 = vpop.f32.mrb[0].mxu0
    %v2293 = vadd.f32 %v2241, %v2292
    %v2294 = vpop.f32.mrb[0].mxu0
    %v2295 = vpop.f32.mrb[0].mxu0
    %v2296 = vadd.f32 %v2241, %v2295
    %v2297 = vpop.f32.mrb[0].mxu0
    %2298 = vdwg.mxu0
    %v2299 = vmul.f32 %v2293, 0.5
    %v2300 = vmul.f32 %v2296, 0.5
    %v2301 = vmul.f32 %v2293, 0.70710677
    %v2302 = vmul.f32 %v2296, 0.70710677
    %vm2303 = vcmp.ge.f32.partialorder %v2301, 0.0
    %vm2304 = vcmp.ge.f32.partialorder %v2302, 0.0
    %v2305 = vsel %vm2303, 1.0, -1.0
    %v2306 = vsel %vm2304, 1.0, -1.0
    %v2307 = vand.u32 2147483647, %v2301
    %v2308 = vand.u32 2147483647, %v2302
    %v2309 = vmul.f32 %v2307, 0.3275911
    %v2310 = vmul.f32 %v2308, 0.3275911
    %v2311 = vadd.f32 %v2309, 1.0
    %v2312 = vadd.f32 %v2310, 1.0
    %v2313 = vrcp.pop %v2311
    %v2314 = vmul.f32 1.0, %v2313
    %v2315 = vrcp.pop %v2312
    %v2316 = vmul.f32 1.0, %v2315
    %v2317 = vmul.f32 %v2314, 1.0614054
    %v2318 = vmul.f32 %v2316, 1.0614054
    %v2319 = vadd.f32 %v2317, -1.4531521
    %v2320 = vadd.f32 %v2318, -1.4531521
    %v2321 = vmul.f32 %v2319, %v2314
    %v2322 = vmul.f32 %v2320, %v2316
    %v2323 = vadd.f32 %v2321, 1.4214138
    %v2324 = vadd.f32 %v2322, 1.4214138
    %v2325 = vmul.f32 %v2323, %v2314
    %v2326 = vmul.f32 %v2324, %v2316
    %v2327 = vadd.f32 %v2325, -0.28449672
    %v2328 = vadd.f32 %v2326, -0.28449672
    %v2329 = vmul.f32 %v2327, %v2314
    %v2330 = vmul.f32 %v2328, %v2316
    %v2331 = vadd.f32 %v2329, 0.2548296
    %v2332 = vadd.f32 %v2330, 0.2548296
    %v2333 = vmul.f32 %v2331, %v2314
    %v2334 = vmul.f32 %v2332, %v2316
    %v2335 = vsub.f32 0.0, %v2307
    %v2336 = vsub.f32 0.0, %v2308
    %v2337 = vmul.f32 %v2335, %v2307
    %v2338 = vmul.f32 %v2336, %v2308
    %v2339 = vmul.f32 %v2337, 1.442695
    %v2340 = vpow.pop %v2339
    %v2341 = vmul.f32 %v2338, 1.442695
    %v2342 = vpow.pop %v2341
    %v2343 = vmul.f32 %v2333, %v2340
    %v2344 = vmul.f32 %v2334, %v2342
    %v2345 = vsub.f32 1.0, %v2343
    %v2346 = vsub.f32 1.0, %v2344
    %v2347 = vmul.f32 %v2305, %v2345
    %v2348 = vmul.f32 %v2306, %v2346
    %v2349 = vadd.f32 %v2347, 1.0
    %v2350 = vadd.f32 %v2348, 1.0
    %v2351 = vmul.f32 %v2299, %v2349
    %v2352 = vmul.f32 %v2300, %v2350
    %v2353 = vpack.c.bf16 %v2352, %v2351
    %v2354 = vld [vmem:[%s11] sm:$0xf]
    %v2355 = vld [vmem:[%s11 + $0x4] sm:$0xf]
    %v2356 = vld [vmem:[%s11 + $0x8] sm:$0xf]
    %v2357 = vld [vmem:[%s11 + $0xc] sm:$0xf]
    %v2358 = vld [vmem:[%s11 + $0x10] sm:$0xf]
    %v2359 = vld [vmem:[%s11 + $0x14] sm:$0xf]
    %v2360 = vld [vmem:[%s11 + $0x18] sm:$0xf]
    %v2361 = vld [vmem:[%s11 + $0x1c] sm:$0xf]
    %v2362 = vld [vmem:[%s12] sm:$0x1]
    %v2364 = vlaneseq
    %v2365 = vshrl.u32 %v2364, 7
    %v2366 = vsub.s32 0, %v2365
    %v2367 = vrot.slane %v2362, %v2366
    %v2377 = vunpack.c.l.b16 %v2354
    %v2378 = vunpack.c.l.b16 %v2355
    %v2379 = vunpack.c.l.b16 %v2356
    %v2380 = vunpack.c.l.b16 %v2357
    %v2381 = vunpack.c.l.b16 %v2358
    %v2382 = vunpack.c.l.b16 %v2359
    %v2383 = vunpack.c.l.b16 %v2360
    %v2384 = vunpack.c.l.b16 %v2361
    %v2385 = vpack.c.b16 %v2378, %v2377
    %v2386 = vpack.c.b16 %v2380, %v2379
    %v2387 = vpack.c.b16 %v2382, %v2381
    %v2388 = vpack.c.b16 %v2384, %v2383
    %vm2393 = vcmask 523264
    %v2395 = vsel %vm2393, %v2353, 0
    %2397 = vmatprep.subr.bf16.mxu0 0
    %2398 = vmatpush1.bf16.msra.mxu0 %v2385
    %2399 = vmatprep.subr.bf16.mxu0 0
    %2400 = vmatpush1.bf16.msra.mxu0 %v2386
    %2401 = vmatprep.subr.bf16.mxu0 0
    %2402 = vmatpush1.bf16.msra.mxu0 %v2387
    %2403 = vmatprep.subr.bf16.mxu0 0
    %2404 = vmatpush1.bf16.msra.mxu0 %v2388
    %2405 = vmatprep.subr.bf16.mxu0 0
    %2406 = vmatpush1.bf16.msra.mxu0 0
    %2407 = vmatprep.subr.bf16.mxu0 0
    %2408 = vmatpush1.bf16.msra.mxu0 0
    %2409 = vmatprep.subr.bf16.mxu0 0
    %2410 = vmatpush1.bf16.msra.mxu0 0
    %2411 = vmatprep.subr.bf16.mxu0 0
    %2412 = vmatpush1.bf16.msra.mxu0 0
    %2413 = vmatprep.subr.bf16.mxu0 0
    %2414 = vmatpush1.bf16.msra.mxu0 0
    %2415 = vmatprep.subr.bf16.mxu0 0
    %2416 = vmatpush1.bf16.msra.mxu0 0
    %2417 = vmatprep.subr.bf16.mxu0 0
    %2418 = vmatpush1.bf16.msra.mxu0 0
    %2419 = vmatprep.subr.bf16.mxu0 0
    %2420 = vmatpush1.bf16.msra.mxu0 0
    %2421 = vmatprep.subr.bf16.mxu0 0
    %2422 = vmatpush1.bf16.msra.mxu0 0
    %2423 = vmatprep.subr.bf16.mxu0 0
    %2424 = vmatpush1.bf16.msra.mxu0 0
    %2425 = vmatprep.subr.bf16.mxu0 0
    %2426 = vmatpush1.bf16.msra.mxu0 0
    %2427 = vmatprep.subr.bf16.mxu0 0
    %2428 = vmatpush1.bf16.msra.mxu0 0
    %2429 = vmatprep.mubr.bf16.mxu0 0
    %2430 = vmatmul.mubr.bf16.gmra.mrb[0].mxu0 %v2395
    %v2431 = vpop.f32.mrb[0].mxu0
    %v2432 = vadd.f32 %v2367, %v2431
    %v2433 = vpop.f32.mrb[0].mxu0
    %v2434 = vpop.f32.mrb[0].mxu0
    %v2435 = vadd.f32 %v2367, %v2434
    %v2436 = vpop.f32.mrb[0].mxu0
    %2437 = vdwg.mxu0
    %v2438 = vadd.f32 %v2432, %v2179
    %v2439 = vadd.f32 %v2435, %v2180
    %2440 = vst.msk [vmem:[#allocation10] sm:$0xff] %vm100, %v2438
    %2441 = vst.msk [vmem:[#allocation10 + $0x8] sm:$0xff] %vm100, %v2439
    // Predicated region
    $region70: #{tpu_custom_call.1} parent=1 // pred_check
      _
    $region71: #{tpu_custom_call.1} parent=1 // pred_check_branch
      %2443 = sbr.rel (0) target = $region73
    $region72: #{tpu_custom_call.1} parent=1 // pred_region
      %s2445 = ssub.s32 256, 256
      %2446 = vsyncadd [#allocation4], %s2445
      %s2447 = sshll.u32 [#allocation10], 4
      %s2448 = int_to_ptr.vmem [resolvable:$true] %s2447
      %2453 = dma.vmem_to_hbm [thread:$0]  %s2448, 256, %s13, [#allocation4], 128, 128, 8
    $region73: #{tpu_custom_call.1} parent=1 // pred_fallthru
      _
    // Predicated region
    $region74: #{tpu_custom_call.1} parent=1 // pred_check
      _
    $region75: #{tpu_custom_call.1} parent=1 // pred_check_branch
      %2455 = sbr.rel (0) target = $region77
    $region76: #{tpu_custom_call.1} parent=1 // pred_region
      %s2457 = ssub.s32 1024, 1024
      %2458 = vsyncadd [#allocation12], %s2457
      %s2459 = sshll.u32 [#allocation11], 4
      %s2460 = int_to_ptr.vmem [resolvable:$true] %s2459
      %2465 = dma.vmem_to_hbm [thread:$0]  %s2460, 1024, %s14, [#allocation12], 128, 128, 8
    $region77: #{tpu_custom_call.1} parent=1 // pred_fallthru
      _
    // Predicated region
    $region78: #{tpu_custom_call.1} parent=1 // pred_check
      _
    $region79: #{tpu_custom_call.1} parent=1 // pred_check_branch
      %2467 = sbr.rel (0) target = $region81
    $region80: #{tpu_custom_call.1} parent=1 // pred_region
      %2468 = dma.done [#allocation4], 256
    $region81: #{tpu_custom_call.1} parent=1 // pred_fallthru
      _
    // Predicated region
    $region82: #{tpu_custom_call.1} parent=1 // pred_check
      _
    $region83: #{tpu_custom_call.1} parent=1 // pred_check_branch
      %2470 = sbr.rel (0) target = $region85
    $region84: #{tpu_custom_call.1} parent=1 // pred_region
      %2471 = dma.done [#allocation12], 1024
    $region85: #{tpu_custom_call.1} parent=1 // pred_fallthru
      _
    %2472 = vsyncpa [#allocation3], 1
    %2473 = vsyncpa [#allocation6], 1
    %2474 = vsyncpa [#allocation9], 1
    %2475 = vsyncpa [#allocation4], 1
    %2476 = vsyncpa [#allocation12], 1

// kernel: tpu_custom_call.1
$region0: #{tpu_custom_call.1}
  #allocation0 [shape = 'u32[]', space=smem, size = 0x4, offset = 0x4, fixed_abs, tag = 'smem constant byte address 0x4 - core index']
  #allocation1 [shape = 'u32[144,128]{1,0:T(1,128)}', space=vmem, size = 0x12000, scoped, tag = 'internal scratch']
  %s0 = inlined_call_operand.vmem [shape: f32[2,8,32], index: 0, kind: input, shape index: {}]
  %s1 = inlined_call_operand.vmem [shape: f32[1,32], index: 1, kind: input, shape index: {}]
  %s2 = inlined_call_operand.vmem [shape: f32[1,32], index: 2, kind: input, shape index: {}]
  %s3 = inlined_call_operand.vmem [shape: bf16[32,96], index: 3, kind: input, shape index: {}]
  %s4 = inlined_call_operand.hbm [shape: f32[1,96], index: 4, kind: input, shape index: {}]
  %s5 = inlined_call_operand.vmem [shape: bf16[4,8,32], index: 5, kind: input, shape index: {}]
  %s6 = inlined_call_operand.hbm [shape: f32[1,32], index: 6, kind: input, shape index: {}]
  %s7 = inlined_call_operand.hbm [shape: f32[1,32], index: 7, kind: input, shape index: {}]
  %s8 = inlined_call_operand.hbm [shape: f32[1,32], index: 8, kind: input, shape index: {}]
  %s9 = inlined_call_operand.vmem [shape: bf16[32,64], index: 9, kind: input, shape index: {}]
  %s10 = inlined_call_operand.vmem [shape: f32[1,64], index: 10, kind: input, shape index: {}]
  %s11 = inlined_call_operand.vmem [shape: bf16[64,32], index: 11, kind: input, shape index: {}]
  %s12 = inlined_call_operand.vmem [shape: f32[1,32], index: 12, kind: input, shape index: {}]
  %s13 = inlined_call_operand.hbm [shape: f32[2,8,32], index: 13, kind: output, shape index: {0}]
  %s14 = inlined_call_operand.hbm [shape: f32[2,4,8,8], index: 14, kind: output, shape index: {1}]
  %15 = xla_tuple %s13, %s14
  %s16 = sld [smem:[#allocation0]]
  $region86: #{tpu_custom_call.1} parent=0
    _
  %s18 = ssub.s32 1, %s16
  %s19 = scalar_select 0, %s18, %s16
  $region1: #{tpu_custom_call.1} parent=0
    #allocation2 [shape = 'u8[512]{0}', space=vmem, size = 0x400, scoped, tag = 'input window, operand 4, single buffered']
    #allocation3 [shape = 's32[1]{0}', space=sflag, size = 0x4, scoped, tag = 'scoped memory for tpu_custom_call.1']
    #allocation4 [shape = 's32[1]{0}', space=sflag, size = 0x4, scoped, tag = 'scoped memory for tpu_custom_call.1']
    #allocation5 [shape = 'u8[512]{0}', space=vmem, size = 0x400, scoped, tag = 'input window, operand 6, single buffered']
    #allocation6 [shape = 's32[1]{0}', space=sflag, size = 0x4, scoped, tag = 'scoped memory for tpu_custom_call.1']
    #allocation7 [shape = 'u8[512]{0}', space=vmem, size = 0x400, scoped, tag = 'input window, operand 7, single buffered']
    #allocation8 [shape = 'u8[512]{0}', space=vmem, size = 0x400, scoped, tag = 'input window, operand 8, single buffered']
    #allocation9 [shape = 's32[1]{0}', space=sflag, size = 0x4, scoped, tag = 'scoped memory for tpu_custom_call.1']
    #allocation10 [shape = 'u8[8192]{0}', space=vmem, size = 0x2000, scoped, tag = 'output window, operand 0, single buffered']
    #allocation11 [shape = 'u8[32768]{0}', space=vmem, size = 0x8000, scoped, tag = 'output window, operand 1, single buffered']
    #allocation12 [shape = 's32[1]{0}', space=sflag, size = 0x4, scoped, tag = 'scoped memory for tpu_custom_call.1']
    %20 = vsyncpa [#allocation3], 0
    %21 = vsyncpa [#allocation6], 0
    %22 = vsyncpa [#allocation9], 0
    %23 = vsyncpa [#allocation4], 0
    %24 = vsyncpa [#allocation12], 0
    // Predicated region
    $region2: #{tpu_custom_call.1} parent=1 // pred_check
      _
    $region3: #{tpu_custom_call.1} parent=1 // pred_check_branch
      %26 = sbr.rel (0) target = $region5
    $region4: #{tpu_custom_call.1} parent=1 // pred_region
      _
    $region5: #{tpu_custom_call.1} parent=1 // pred_fallthru
      _
    // Predicated region
    $region6: #{tpu_custom_call.1} parent=1 // pred_check
      _
    $region7: #{tpu_custom_call.1} parent=1 // pred_check_branch
      %28 = sbr.rel (0) target = $region9
    $region8: #{tpu_custom_call.1} parent=1 // pred_region
      _
    $region9: #{tpu_custom_call.1} parent=1 // pred_fallthru
      _
    // Predicated region
    $region10: #{tpu_custom_call.1} parent=1 // pred_check
      _
    $region11: #{tpu_custom_call.1} parent=1 // pred_check_branch
      %30 = sbr.rel (0) target = $region13
    $region12: #{tpu_custom_call.1} parent=1 // pred_region
      _
    $region13: #{tpu_custom_call.1} parent=1 // pred_fallthru
      _
    // Predicated region
    $region14: #{tpu_custom_call.1} parent=1 // pred_check
      _
    $region15: #{tpu_custom_call.1} parent=1 // pred_check_branch
      %32 = sbr.rel (0) target = $region17
    $region16: #{tpu_custom_call.1} parent=1 // pred_region
      _
    $region17: #{tpu_custom_call.1} parent=1 // pred_fallthru
      _
    // Predicated region
    $region18: #{tpu_custom_call.1} parent=1 // pred_check
      _
    $region19: #{tpu_custom_call.1} parent=1 // pred_check_branch
      %34 = sbr.rel (0) target = $region21
    $region20: #{tpu_custom_call.1} parent=1 // pred_region
      %s36 = ssub.s32 16, 16
      %37 = vsyncadd [#allocation3], %s36
      %s39 = sshll.u32 [#allocation2], 4
      %s40 = int_to_ptr.vmem [resolvable:$true] %s39
      %42 = dma.hbm_to_vmem [thread:$0]  %s4, 16, %s40, [#allocation3]
    $region21: #{tpu_custom_call.1} parent=1 // pred_fallthru
      _
    // Predicated region
    $region22: #{tpu_custom_call.1} parent=1 // pred_check
      _
    $region23: #{tpu_custom_call.1} parent=1 // pred_check_branch
      %44 = sbr.rel (0) target = $region25
    $region24: #{tpu_custom_call.1} parent=1 // pred_region
      _
    $region25: #{tpu_custom_call.1} parent=1 // pred_fallthru
      _
    // Predicated region
    $region26: #{tpu_custom_call.1} parent=1 // pred_check
      _
    $region27: #{tpu_custom_call.1} parent=1 // pred_check_branch
      %46 = sbr.rel (0) target = $region29
    $region28: #{tpu_custom_call.1} parent=1 // pred_region
      %s48 = ssub.s32 16, 16
      %49 = vsyncadd [#allocation6], %s48
      %s51 = sshll.u32 [#allocation5], 4
      %s52 = int_to_ptr.vmem [resolvable:$true] %s51
      %54 = dma.hbm_to_vmem [thread:$0]  %s6, 16, %s52, [#allocation6]
    $region29: #{tpu_custom_call.1} parent=1 // pred_fallthru
      _
    // Predicated region
    $region30: #{tpu_custom_call.1} parent=1 // pred_check
      _
    $region31: #{tpu_custom_call.1} parent=1 // pred_check_branch
      %56 = sbr.rel (0) target = $region33
    $region32: #{tpu_custom_call.1} parent=1 // pred_region
      %s58 = ssub.s32 16, 16
      %59 = vsyncadd [#allocation6], %s58
      %s61 = sshll.u32 [#allocation7], 4
      %s62 = int_to_ptr.vmem [resolvable:$true] %s61
      %64 = dma.hbm_to_vmem [thread:$0]  %s7, 16, %s62, [#allocation6]
    $region33: #{tpu_custom_call.1} parent=1 // pred_fallthru
      _
    // Predicated region
    $region34: #{tpu_custom_call.1} parent=1 // pred_check
      _
    $region35: #{tpu_custom_call.1} parent=1 // pred_check_branch
      %66 = sbr.rel (0) target = $region37
    $region36: #{tpu_custom_call.1} parent=1 // pred_region
      %s68 = ssub.s32 16, 16
      %69 = vsyncadd [#allocation9], %s68
      %s71 = sshll.u32 [#allocation8], 4
      %s72 = int_to_ptr.vmem [resolvable:$true] %s71
      %74 = dma.hbm_to_vmem [thread:$0]  %s8, 16, %s72, [#allocation9]
    $region37: #{tpu_custom_call.1} parent=1 // pred_fallthru
      _
    // Predicated region
    $region38: #{tpu_custom_call.1} parent=1 // pred_check
      _
    $region39: #{tpu_custom_call.1} parent=1 // pred_check_branch
      %76 = sbr.rel (0) target = $region41
    $region40: #{tpu_custom_call.1} parent=1 // pred_region
      _
    $region41: #{tpu_custom_call.1} parent=1 // pred_fallthru
      _
    // Predicated region
    $region42: #{tpu_custom_call.1} parent=1 // pred_check
      _
    $region43: #{tpu_custom_call.1} parent=1 // pred_check_branch
      %78 = sbr.rel (0) target = $region45
    $region44: #{tpu_custom_call.1} parent=1 // pred_region
      _
    $region45: #{tpu_custom_call.1} parent=1 // pred_fallthru
      _
    // Predicated region
    $region46: #{tpu_custom_call.1} parent=1 // pred_check
      _
    $region47: #{tpu_custom_call.1} parent=1 // pred_check_branch
      %80 = sbr.rel (0) target = $region49
    $region48: #{tpu_custom_call.1} parent=1 // pred_region
      _
    $region49: #{tpu_custom_call.1} parent=1 // pred_fallthru
      _
    // Predicated region
    $region50: #{tpu_custom_call.1} parent=1 // pred_check
      _
    $region51: #{tpu_custom_call.1} parent=1 // pred_check_branch
      %82 = sbr.rel (0) target = $region53
    $region52: #{tpu_custom_call.1} parent=1 // pred_region
      _
    $region53: #{tpu_custom_call.1} parent=1 // pred_fallthru
      _
    // Predicated region
    $region54: #{tpu_custom_call.1} parent=1 // pred_check
      _
    $region55: #{tpu_custom_call.1} parent=1 // pred_check_branch
      %84 = sbr.rel (0) target = $region57
    $region56: #{tpu_custom_call.1} parent=1 // pred_region
      %85 = dma.done [#allocation3], 16
    $region57: #{tpu_custom_call.1} parent=1 // pred_fallthru
      _
    // Predicated region
    $region58: #{tpu_custom_call.1} parent=1 // pred_check
      _
    $region59: #{tpu_custom_call.1} parent=1 // pred_check_branch
      %87 = sbr.rel (0) target = $region61
    $region60: #{tpu_custom_call.1} parent=1 // pred_region
      %88 = dma.done [#allocation6], 16
    $region61: #{tpu_custom_call.1} parent=1 // pred_fallthru
      _
    // Predicated region
    $region62: #{tpu_custom_call.1} parent=1 // pred_check
      _
    $region63: #{tpu_custom_call.1} parent=1 // pred_check_branch
      %90 = sbr.rel (0) target = $region65
    $region64: #{tpu_custom_call.1} parent=1 // pred_region
      %91 = dma.done [#allocation6], 16
    $region65: #{tpu_custom_call.1} parent=1 // pred_fallthru
      _
    // Predicated region
    $region66: #{tpu_custom_call.1} parent=1 // pred_check
      _
    $region67: #{tpu_custom_call.1} parent=1 // pred_check_branch
      %93 = sbr.rel (0) target = $region69
    $region68: #{tpu_custom_call.1} parent=1 // pred_region
      %94 = dma.done [#allocation9], 16
    $region69: #{tpu_custom_call.1} parent=1 // pred_fallthru
      _
    %v96 = vld [vmem:[%s0] sm:$0xff]
    %v97 = vld [vmem:[%s0 + $0x8] sm:$0xff]
    %v98 = vld [vmem:[%s1] sm:$0x1]
    %v99 = vld [vmem:[%s2] sm:$0x1]
    %vm100 = vcmask 261120
    %v101 = vsel %vm100, %v96, 0.0
    %102 = vadd.xlane.f32.xlu0 %v101
    %v103 = vpop.xlane.xlu0 %102
    %v104 = vsel %vm100, %v97, 0.0
    %105 = vadd.xlane.f32.xlu0 %v104
    %v106 = vpop.xlane.xlu0 %105
    %v107 = vmul.f32 %v96, %v96
    %v108 = vmul.f32 %v97, %v97
    %v109 = vsel %vm100, %v107, 0.0
    %110 = vadd.xlane.f32.xlu0 %v109
    %v111 = vpop.xlane.xlu0 %110
    %v112 = vsel %vm100, %v108, 0.0
    %113 = vadd.xlane.f32.xlu0 %v112
    %v114 = vpop.xlane.xlu0 %113
    %v115 = vmul.f32 %v103, 0.03125
    %v116 = vmul.f32 %v106, 0.03125
    %v117 = vmul.f32 %v111, 0.03125
    %v118 = vmul.f32 %v114, 0.03125
    %v119 = vmul.f32 %v115, %v115
    %v120 = vmul.f32 %v116, %v116
    %v121 = vsub.f32 %v117, %v119
    %v122 = vsub.f32 %v118, %v120
    %v123 = vmax.f32 %v121, 0.0
    %v124 = vmax.f32 %v122, 0.0
    %v125 = vsub.f32 %v96, %v115
    %v126 = vsub.f32 %v97, %v116
    %v127 = vadd.f32 %v123, 1e-06
    %v128 = vadd.f32 %v124, 1e-06
    %v129 = vrsqrt.pop %v127
    %v130 = vrsqrt.pop %v128
    %v131 = vmul.f32 %v125, %v129
    %v132 = vmul.f32 %v126, %v130
    %v134 = vlaneseq
    %v135 = vshrl.u32 %v134, 7
    %v136 = vsub.s32 0, %v135
    %v137 = vrot.slane %v98, %v136
    %v139 = vmul.f32 %v131, %v137
    %v140 = vmul.f32 %v132, %v137
    %v142 = vlaneseq
    %v143 = vshrl.u32 %v142, 7
    %v144 = vsub.s32 0, %v143
    %v145 = vrot.slane %v99, %v144
    %v147 = vadd.f32 %v139, %v145
    %v148 = vadd.f32 %v140, %v145
    %v149 = vpack.c.bf16 %v148, %v147
    %v150 = vld [vmem:[%s3] sm:$0xf]
    %v151 = vld [vmem:[%s3 + $0x4] sm:$0xf]
    %v152 = vld [vmem:[%s3 + $0x8] sm:$0xf]
    %v153 = vld [vmem:[%s3 + $0xc] sm:$0xf]
    %v154 = vld [vmem:[#allocation2] sm:$0x1]
    %v156 = vlaneseq
    %v157 = vshrl.u32 %v156, 7
    %v158 = vsub.s32 0, %v157
    %v159 = vrot.slane %v154, %v158
    %v165 = vunpack.c.l.b16 %v150
    %v166 = vunpack.c.l.b16 %v151
    %v167 = vunpack.c.l.b16 %v152
    %v168 = vunpack.c.l.b16 %v153
    %v169 = vpack.c.b16 %v166, %v165
    %v170 = vpack.c.b16 %v168, %v167
    %v174 = vsel %vm100, %v149, 0
    %176 = vmatprep.subr.bf16.mxu0 0
    %177 = vmatpush1.bf16.msra.mxu0 %v169
    %178 = vmatprep.subr.bf16.mxu0 0
    %179 = vmatpush1.bf16.msra.mxu0 %v170
    %180 = vmatprep.subr.bf16.mxu0 0
    %181 = vmatpush1.bf16.msra.mxu0 0
    %182 = vmatprep.subr.bf16.mxu0 0
    %183 = vmatpush1.bf16.msra.mxu0 0
    %184 = vmatprep.subr.bf16.mxu0 0
    %185 = vmatpush1.bf16.msra.mxu0 0
    %186 = vmatprep.subr.bf16.mxu0 0
    %187 = vmatpush1.bf16.msra.mxu0 0
    %188 = vmatprep.subr.bf16.mxu0 0
    %189 = vmatpush1.bf16.msra.mxu0 0
    %190 = vmatprep.subr.bf16.mxu0 0
    %191 = vmatpush1.bf16.msra.mxu0 0
    %192 = vmatprep.subr.bf16.mxu0 0
    %193 = vmatpush1.bf16.msra.mxu0 0
    %194 = vmatprep.subr.bf16.mxu0 0
    %195 = vmatpush1.bf16.msra.mxu0 0
    %196 = vmatprep.subr.bf16.mxu0 0
    %197 = vmatpush1.bf16.msra.mxu0 0
    %198 = vmatprep.subr.bf16.mxu0 0
    %199 = vmatpush1.bf16.msra.mxu0 0
    %200 = vmatprep.subr.bf16.mxu0 0
    %201 = vmatpush1.bf16.msra.mxu0 0
    %202 = vmatprep.subr.bf16.mxu0 0
    %203 = vmatpush1.bf16.msra.mxu0 0
    %204 = vmatprep.subr.bf16.mxu0 0
    %205 = vmatpush1.bf16.msra.mxu0 0
    %206 = vmatprep.subr.bf16.mxu0 0
    %207 = vmatpush1.bf16.msra.mxu0 0
    %208 = vmatprep.mubr.bf16.mxu0 0
    %209 = vmatmul.mubr.bf16.gmra.mrb[0].mxu0 %v174
    %v210 = vpop.f32.mrb[0].mxu0
    %v211 = vadd.f32 %v159, %v210
    %v212 = vpop.f32.mrb[0].mxu0
    %v213 = vpop.f32.mrb[0].mxu0
    %v214 = vadd.f32 %v159, %v213
    %v215 = vpop.f32.mrb[0].mxu0
    %216 = vdwg.mxu0
    %219 = vrot.lane.b32.xlu0 %v211, 120
    %v220 = vpop.permute.xlu0 %219
    %221 = vrot.lane.b32.xlu0 %v214, 120
    %v222 = vpop.permute.xlu0 %221
    %225 = vrot.lane.b32.xlu0 %v211, 112
    %v226 = vpop.permute.xlu0 %225
    %227 = vrot.lane.b32.xlu0 %v214, 112
    %v228 = vpop.permute.xlu0 %227
    %231 = vrot.lane.b32.xlu0 %v211, 104
    %v232 = vpop.permute.xlu0 %231
    %233 = vrot.lane.b32.xlu0 %v214, 104
    %v234 = vpop.permute.xlu0 %233
    %v237 = vcombine.low %v211, %v226
    %v238 = vcombine.high %v211, %v226
    %v240 = vunpack.c.l.s4 1983009808
    %v241 = vunpack.c.0.s8 %v240
    %v242 = vlaneseq
    %v243 = vshrl.u32 %v242, 7
    %v244 = vsub.s32 %v241, %v243
    %v245 = vrot.slane %v237, %v244
    %v247 = vunpack.c.l.s4 1983009808
    %v248 = vunpack.c.0.s8 %v247
    %v249 = vlaneseq
    %v250 = vshrl.u32 %v249, 7
    %v251 = vsub.s32 %v248, %v250
    %v252 = vrot.slane %v238, %v251
    %v253 = vcombine.low %v220, %v232
    %v254 = vcombine.high %v220, %v232
    %v256 = vunpack.c.l.s4 1983009808
    %v257 = vunpack.c.0.s8 %v256
    %v258 = vlaneseq
    %v259 = vshrl.u32 %v258, 7
    %v260 = vsub.s32 %v257, %v259
    %v261 = vrot.slane %v253, %v260
    %v263 = vunpack.c.l.s4 1983009808
    %v264 = vunpack.c.0.s8 %v263
    %v265 = vlaneseq
    %v266 = vshrl.u32 %v265, 7
    %v267 = vsub.s32 %v264, %v266
    %v268 = vrot.slane %v254, %v267
    %v269 = vcombine.low %v245, %v261
    %v270 = vcombine.high %v245, %v261
    %v272 = vunpack.c.l.s4 1934713408
    %v273 = vunpack.c.0.s8 %v272
    %v274 = vlaneseq
    %v275 = vshrl.u32 %v274, 7
    %v276 = vsub.s32 %v273, %v275
    %v277 = vrot.slane %v269, %v276
    %v279 = vunpack.c.l.s4 1934713408
    %v280 = vunpack.c.0.s8 %v279
    %v281 = vlaneseq
    %v282 = vshrl.u32 %v281, 7
    %v283 = vsub.s32 %v280, %v282
    %v284 = vrot.slane %v270, %v283
    %v285 = vcombine.low %v252, %v268
    %v286 = vcombine.high %v252, %v268
    %v288 = vunpack.c.l.s4 1934713408
    %v289 = vunpack.c.0.s8 %v288
    %v290 = vlaneseq
    %v291 = vshrl.u32 %v290, 7
    %v292 = vsub.s32 %v289, %v291
    %v293 = vrot.slane %v285, %v292
    %v295 = vunpack.c.l.s4 1934713408
    %v296 = vunpack.c.0.s8 %v295
    %v297 = vlaneseq
    %v298 = vshrl.u32 %v297, 7
    %v299 = vsub.s32 %v296, %v298
    %v300 = vrot.slane %v286, %v299
    %v301 = vcombine.high %v277, 0.0
    %v302 = vcombine.high %v284, 0.0
    %v303 = vcombine.high %v293, 0.0
    %v304 = vcombine.high %v300, 0.0
    %v305 = vcombine.low %v214, %v228
    %v306 = vcombine.high %v214, %v228
    %v308 = vunpack.c.l.s4 1983009808
    %v309 = vunpack.c.0.s8 %v308
    %v310 = vlaneseq
    %v311 = vshrl.u32 %v310, 7
    %v312 = vsub.s32 %v309, %v311
    %v313 = vrot.slane %v305, %v312
    %v315 = vunpack.c.l.s4 1983009808
    %v316 = vunpack.c.0.s8 %v315
    %v317 = vlaneseq
    %v318 = vshrl.u32 %v317, 7
    %v319 = vsub.s32 %v316, %v318
    %v320 = vrot.slane %v306, %v319
    %v321 = vcombine.low %v222, %v234
    %v322 = vcombine.high %v222, %v234
    %v324 = vunpack.c.l.s4 1983009808
    %v325 = vunpack.c.0.s8 %v324
    %v326 = vlaneseq
    %v327 = vshrl.u32 %v326, 7
    %v328 = vsub.s32 %v325, %v327
    %v329 = vrot.slane %v321, %v328
    %v331 = vunpack.c.l.s4 1983009808
    %v332 = vunpack.c.0.s8 %v331
    %v333 = vlaneseq
    %v334 = vshrl.u32 %v333, 7
    %v335 = vsub.s32 %v332, %v334
    %v336 = vrot.slane %v322, %v335
    %v337 = vcombine.low %v313, %v329
    %v338 = vcombine.high %v313, %v329
    %v340 = vunpack.c.l.s4 1934713408
    %v341 = vunpack.c.0.s8 %v340
    %v342 = vlaneseq
    %v343 = vshrl.u32 %v342, 7
    %v344 = vsub.s32 %v341, %v343
    %v345 = vrot.slane %v337, %v344
    %v347 = vunpack.c.l.s4 1934713408
    %v348 = vunpack.c.0.s8 %v347
    %v349 = vlaneseq
    %v350 = vshrl.u32 %v349, 7
    %v351 = vsub.s32 %v348, %v350
    %v352 = vrot.slane %v338, %v351
    %v353 = vcombine.low %v320, %v336
    %v354 = vcombine.high %v320, %v336
    %v356 = vunpack.c.l.s4 1934713408
    %v357 = vunpack.c.0.s8 %v356
    %v358 = vlaneseq
    %v359 = vshrl.u32 %v358, 7
    %v360 = vsub.s32 %v357, %v359
    %v361 = vrot.slane %v353, %v360
    %v363 = vunpack.c.l.s4 1934713408
    %v364 = vunpack.c.0.s8 %v363
    %v365 = vlaneseq
    %v366 = vshrl.u32 %v365, 7
    %v367 = vsub.s32 %v364, %v366
    %v368 = vrot.slane %v354, %v367
    %v369 = vcombine.high %v345, 0.0
    %v370 = vcombine.high %v352, 0.0
    %v371 = vcombine.high %v361, 0.0
    %v372 = vcombine.high %v368, 0.0
    %v373 = vcombine.low %v277, %v284
    %v375 = vunpack.c.l.s4 1983009808
    %v376 = vunpack.c.0.s8 %v375
    %v377 = vlaneseq
    %v378 = vshrl.u32 %v377, 7
    %v379 = vsub.s32 %v376, %v378
    %v380 = vrot.slane %v373, %v379
    %v381 = vcombine.low %v301, %v302
    %v383 = vunpack.c.l.s4 1983009808
    %v384 = vunpack.c.0.s8 %v383
    %v385 = vlaneseq
    %v386 = vshrl.u32 %v385, 7
    %v387 = vsub.s32 %v384, %v386
    %v388 = vrot.slane %v381, %v387
    %v389 = vcombine.low %v293, %v300
    %v391 = vunpack.c.l.s4 1983009808
    %v392 = vunpack.c.0.s8 %v391
    %v393 = vlaneseq
    %v394 = vshrl.u32 %v393, 7
    %v395 = vsub.s32 %v392, %v394
    %v396 = vrot.slane %v389, %v395
    %v397 = vcombine.low %v303, %v304
    %v399 = vunpack.c.l.s4 1983009808
    %v400 = vunpack.c.0.s8 %v399
    %v401 = vlaneseq
    %v402 = vshrl.u32 %v401, 7
    %v403 = vsub.s32 %v400, %v402
    %v404 = vrot.slane %v397, %v403
    %v405 = vcombine.low %v380, %v388
    %v406 = vcombine.high %v380, %v388
    %v408 = vunpack.c.l.s4 1934713408
    %v409 = vunpack.c.0.s8 %v408
    %v410 = vlaneseq
    %v411 = vshrl.u32 %v410, 7
    %v412 = vsub.s32 %v409, %v411
    %v413 = vrot.slane %v405, %v412
    %v415 = vunpack.c.l.s4 1934713408
    %v416 = vunpack.c.0.s8 %v415
    %v417 = vlaneseq
    %v418 = vshrl.u32 %v417, 7
    %v419 = vsub.s32 %v416, %v418
    %v420 = vrot.slane %v406, %v419
    %v421 = vcombine.low %v396, %v404
    %v422 = vcombine.high %v396, %v404
    %v424 = vunpack.c.l.s4 1934713408
    %v425 = vunpack.c.0.s8 %v424
    %v426 = vlaneseq
    %v427 = vshrl.u32 %v426, 7
    %v428 = vsub.s32 %v425, %v427
    %v429 = vrot.slane %v421, %v428
    %v431 = vunpack.c.l.s4 1934713408
    %v432 = vunpack.c.0.s8 %v431
    %v433 = vlaneseq
    %v434 = vshrl.u32 %v433, 7
    %v435 = vsub.s32 %v432, %v434
    %v436 = vrot.slane %v422, %v435
    %v437 = vcombine.low %v413, %v429
    %v438 = vcombine.high %v413, %v429
    %v439 = vcombine.low %v420, %v436
    %v440 = vcombine.high %v420, %v436
    %v441 = vcombine.low %v345, %v352
    %v443 = vunpack.c.l.s4 1983009808
    %v444 = vunpack.c.0.s8 %v443
    %v445 = vlaneseq
    %v446 = vshrl.u32 %v445, 7
    %v447 = vsub.s32 %v444, %v446
    %v448 = vrot.slane %v441, %v447
    %v449 = vcombine.low %v369, %v370
    %v451 = vunpack.c.l.s4 1983009808
    %v452 = vunpack.c.0.s8 %v451
    %v453 = vlaneseq
    %v454 = vshrl.u32 %v453, 7
    %v455 = vsub.s32 %v452, %v454
    %v456 = vrot.slane %v449, %v455
    %v457 = vcombine.low %v361, %v368
    %v459 = vunpack.c.l.s4 1983009808
    %v460 = vunpack.c.0.s8 %v459
    %v461 = vlaneseq
    %v462 = vshrl.u32 %v461, 7
    %v463 = vsub.s32 %v460, %v462
    %v464 = vrot.slane %v457, %v463
    %v465 = vcombine.low %v371, %v372
    %v467 = vunpack.c.l.s4 1983009808
    %v468 = vunpack.c.0.s8 %v467
    %v469 = vlaneseq
    %v470 = vshrl.u32 %v469, 7
    %v471 = vsub.s32 %v468, %v470
    %v472 = vrot.slane %v465, %v471
    %v473 = vcombine.low %v448, %v456
    %v474 = vcombine.high %v448, %v456
    %v476 = vunpack.c.l.s4 1934713408
    %v477 = vunpack.c.0.s8 %v476
    %v478 = vlaneseq
    %v479 = vshrl.u32 %v478, 7
    %v480 = vsub.s32 %v477, %v479
    %v481 = vrot.slane %v473, %v480
    %v483 = vunpack.c.l.s4 1934713408
    %v484 = vunpack.c.0.s8 %v483
    %v485 = vlaneseq
    %v486 = vshrl.u32 %v485, 7
    %v487 = vsub.s32 %v484, %v486
    %v488 = vrot.slane %v474, %v487
    %v489 = vcombine.low %v464, %v472
    %v490 = vcombine.high %v464, %v472
    %v492 = vunpack.c.l.s4 1934713408
    %v493 = vunpack.c.0.s8 %v492
    %v494 = vlaneseq
    %v495 = vshrl.u32 %v494, 7
    %v496 = vsub.s32 %v493, %v495
    %v497 = vrot.slane %v489, %v496
    %v499 = vunpack.c.l.s4 1934713408
    %v500 = vunpack.c.0.s8 %v499
    %v501 = vlaneseq
    %v502 = vshrl.u32 %v501, 7
    %v503 = vsub.s32 %v500, %v502
    %v504 = vrot.slane %v490, %v503
    %v505 = vcombine.low %v481, %v497
    %v506 = vcombine.high %v481, %v497
    %v507 = vcombine.low %v488, %v504
    %v508 = vcombine.high %v488, %v504
    %v509 = vpack.c.bf16 %v437, %v437
    %v510 = vpack.c.bf16 %v438, %v438
    %v511 = vpack.c.bf16 %v439, %v439
    %v512 = vpack.c.bf16 %v440, %v440
    %v513 = vpack.c.bf16 %v505, %v505
    %v514 = vpack.c.bf16 %v506, %v506
    %v515 = vpack.c.bf16 %v507, %v507
    %v516 = vpack.c.bf16 %v508, %v508
    %517 = vrot.lane.b32.xlu0 %v211, 96
    %v518 = vpop.permute.xlu0 %517
    %519 = vrot.lane.b32.xlu0 %v214, 96
    %v520 = vpop.permute.xlu0 %519
    %521 = vrot.lane.b32.xlu0 %v220, 96
    %v522 = vpop.permute.xlu0 %521
    %523 = vrot.lane.b32.xlu0 %v222, 96
    %v524 = vpop.permute.xlu0 %523
    %525 = vrot.lane.b32.xlu0 %v226, 96
    %v526 = vpop.permute.xlu0 %525
    %527 = vrot.lane.b32.xlu0 %v228, 96
    %v528 = vpop.permute.xlu0 %527
    %529 = vrot.lane.b32.xlu0 %v232, 96
    %v530 = vpop.permute.xlu0 %529
    %531 = vrot.lane.b32.xlu0 %v234, 96
    %v532 = vpop.permute.xlu0 %531
    %v541 = vcombine.low %v518, %v526
    %v542 = vcombine.high %v518, %v526
    %v544 = vunpack.c.l.s4 1983009808
    %v545 = vunpack.c.0.s8 %v544
    %v546 = vlaneseq
    %v547 = vshrl.u32 %v546, 7
    %v548 = vsub.s32 %v545, %v547
    %v549 = vrot.slane %v541, %v548
    %v551 = vunpack.c.l.s4 1983009808
    %v552 = vunpack.c.0.s8 %v551
    %v553 = vlaneseq
    %v554 = vshrl.u32 %v553, 7
    %v555 = vsub.s32 %v552, %v554
    %v556 = vrot.slane %v542, %v555
    %v557 = vcombine.low %v522, %v530
    %v558 = vcombine.high %v522, %v530
    %v560 = vunpack.c.l.s4 1983009808
    %v561 = vunpack.c.0.s8 %v560
    %v562 = vlaneseq
    %v563 = vshrl.u32 %v562, 7
    %v564 = vsub.s32 %v561, %v563
    %v565 = vrot.slane %v557, %v564
    %v567 = vunpack.c.l.s4 1983009808
    %v568 = vunpack.c.0.s8 %v567
    %v569 = vlaneseq
    %v570 = vshrl.u32 %v569, 7
    %v571 = vsub.s32 %v568, %v570
    %v572 = vrot.slane %v558, %v571
    %v573 = vcombine.low %v549, %v565
    %v574 = vcombine.high %v549, %v565
    %v576 = vunpack.c.l.s4 1934713408
    %v577 = vunpack.c.0.s8 %v576
    %v578 = vlaneseq
    %v579 = vshrl.u32 %v578, 7
    %v580 = vsub.s32 %v577, %v579
    %v581 = vrot.slane %v573, %v580
    %v583 = vunpack.c.l.s4 1934713408
    %v584 = vunpack.c.0.s8 %v583
    %v585 = vlaneseq
    %v586 = vshrl.u32 %v585, 7
    %v587 = vsub.s32 %v584, %v586
    %v588 = vrot.slane %v574, %v587
    %v589 = vcombine.low %v556, %v572
    %v590 = vcombine.high %v556, %v572
    %v592 = vunpack.c.l.s4 1934713408
    %v593 = vunpack.c.0.s8 %v592
    %v594 = vlaneseq
    %v595 = vshrl.u32 %v594, 7
    %v596 = vsub.s32 %v593, %v595
    %v597 = vrot.slane %v589, %v596
    %v599 = vunpack.c.l.s4 1934713408
    %v600 = vunpack.c.0.s8 %v599
    %v601 = vlaneseq
    %v602 = vshrl.u32 %v601, 7
    %v603 = vsub.s32 %v600, %v602
    %v604 = vrot.slane %v590, %v603
    %v605 = vcombine.high %v581, 0.0
    %v606 = vcombine.high %v588, 0.0
    %v607 = vcombine.high %v597, 0.0
    %v608 = vcombine.high %v604, 0.0
    %v609 = vcombine.low %v520, %v528
    %v610 = vcombine.high %v520, %v528
    %v612 = vunpack.c.l.s4 1983009808
    %v613 = vunpack.c.0.s8 %v612
    %v614 = vlaneseq
    %v615 = vshrl.u32 %v614, 7
    %v616 = vsub.s32 %v613, %v615
    %v617 = vrot.slane %v609, %v616
    %v619 = vunpack.c.l.s4 1983009808
    %v620 = vunpack.c.0.s8 %v619
    %v621 = vlaneseq
    %v622 = vshrl.u32 %v621, 7
    %v623 = vsub.s32 %v620, %v622
    %v624 = vrot.slane %v610, %v623
    %v625 = vcombine.low %v524, %v532
    %v626 = vcombine.high %v524, %v532
    %v628 = vunpack.c.l.s4 1983009808
    %v629 = vunpack.c.0.s8 %v628
    %v630 = vlaneseq
    %v631 = vshrl.u32 %v630, 7
    %v632 = vsub.s32 %v629, %v631
    %v633 = vrot.slane %v625, %v632
    %v635 = vunpack.c.l.s4 1983009808
    %v636 = vunpack.c.0.s8 %v635
    %v637 = vlaneseq
    %v638 = vshrl.u32 %v637, 7
    %v639 = vsub.s32 %v636, %v638
    %v640 = vrot.slane %v626, %v639
    %v641 = vcombine.low %v617, %v633
    %v642 = vcombine.high %v617, %v633
    %v644 = vunpack.c.l.s4 1934713408
    %v645 = vunpack.c.0.s8 %v644
    %v646 = vlaneseq
    %v647 = vshrl.u32 %v646, 7
    %v648 = vsub.s32 %v645, %v647
    %v649 = vrot.slane %v641, %v648
    %v651 = vunpack.c.l.s4 1934713408
    %v652 = vunpack.c.0.s8 %v651
    %v653 = vlaneseq
    %v654 = vshrl.u32 %v653, 7
    %v655 = vsub.s32 %v652, %v654
    %v656 = vrot.slane %v642, %v655
    %v657 = vcombine.low %v624, %v640
    %v658 = vcombine.high %v624, %v640
    %v660 = vunpack.c.l.s4 1934713408
    %v661 = vunpack.c.0.s8 %v660
    %v662 = vlaneseq
    %v663 = vshrl.u32 %v662, 7
    %v664 = vsub.s32 %v661, %v663
    %v665 = vrot.slane %v657, %v664
    %v667 = vunpack.c.l.s4 1934713408
    %v668 = vunpack.c.0.s8 %v667
    %v669 = vlaneseq
    %v670 = vshrl.u32 %v669, 7
    %v671 = vsub.s32 %v668, %v670
    %v672 = vrot.slane %v658, %v671
    %v673 = vcombine.high %v649, 0.0
    %v674 = vcombine.high %v656, 0.0
    %v675 = vcombine.high %v665, 0.0
    %v676 = vcombine.high %v672, 0.0
    %v677 = vcombine.low %v581, %v588
    %v679 = vunpack.c.l.s4 1983009808
    %v680 = vunpack.c.0.s8 %v679
    %v681 = vlaneseq
    %v682 = vshrl.u32 %v681, 7
    %v683 = vsub.s32 %v680, %v682
    %v684 = vrot.slane %v677, %v683
    %v685 = vcombine.low %v605, %v606
    %v687 = vunpack.c.l.s4 1983009808
    %v688 = vunpack.c.0.s8 %v687
    %v689 = vlaneseq
    %v690 = vshrl.u32 %v689, 7
    %v691 = vsub.s32 %v688, %v690
    %v692 = vrot.slane %v685, %v691
    %v693 = vcombine.low %v597, %v604
    %v695 = vunpack.c.l.s4 1983009808
    %v696 = vunpack.c.0.s8 %v695
    %v697 = vlaneseq
    %v698 = vshrl.u32 %v697, 7
    %v699 = vsub.s32 %v696, %v698
    %v700 = vrot.slane %v693, %v699
    %v701 = vcombine.low %v607, %v608
    %v703 = vunpack.c.l.s4 1983009808
    %v704 = vunpack.c.0.s8 %v703
    %v705 = vlaneseq
    %v706 = vshrl.u32 %v705, 7
    %v707 = vsub.s32 %v704, %v706
    %v708 = vrot.slane %v701, %v707
    %v709 = vcombine.low %v684, %v692
    %v710 = vcombine.high %v684, %v692
    %v712 = vunpack.c.l.s4 1934713408
    %v713 = vunpack.c.0.s8 %v712
    %v714 = vlaneseq
    %v715 = vshrl.u32 %v714, 7
    %v716 = vsub.s32 %v713, %v715
    %v717 = vrot.slane %v709, %v716
    %v719 = vunpack.c.l.s4 1934713408
    %v720 = vunpack.c.0.s8 %v719
    %v721 = vlaneseq
    %v722 = vshrl.u32 %v721, 7
    %v723 = vsub.s32 %v720, %v722
    %v724 = vrot.slane %v710, %v723
    %v725 = vcombine.low %v700, %v708
    %v726 = vcombine.high %v700, %v708
    %v728 = vunpack.c.l.s4 1934713408
    %v729 = vunpack.c.0.s8 %v728
    %v730 = vlaneseq
    %v731 = vshrl.u32 %v730, 7
    %v732 = vsub.s32 %v729, %v731
    %v733 = vrot.slane %v725, %v732
    %v735 = vunpack.c.l.s4 1934713408
    %v736 = vunpack.c.0.s8 %v735
    %v737 = vlaneseq
    %v738 = vshrl.u32 %v737, 7
    %v739 = vsub.s32 %v736, %v738
    %v740 = vrot.slane %v726, %v739
    %v741 = vcombine.low %v717, %v733
    %v742 = vcombine.high %v717, %v733
    %v743 = vcombine.low %v724, %v740
    %v744 = vcombine.high %v724, %v740
    %v745 = vcombine.low %v649, %v656
    %v747 = vunpack.c.l.s4 1983009808
    %v748 = vunpack.c.0.s8 %v747
    %v749 = vlaneseq
    %v750 = vshrl.u32 %v749, 7
    %v751 = vsub.s32 %v748, %v750
    %v752 = vrot.slane %v745, %v751
    %v753 = vcombine.low %v673, %v674
    %v755 = vunpack.c.l.s4 1983009808
    %v756 = vunpack.c.0.s8 %v755
    %v757 = vlaneseq
    %v758 = vshrl.u32 %v757, 7
    %v759 = vsub.s32 %v756, %v758
    %v760 = vrot.slane %v753, %v759
    %v761 = vcombine.low %v665, %v672
    %v763 = vunpack.c.l.s4 1983009808
    %v764 = vunpack.c.0.s8 %v763
    %v765 = vlaneseq
    %v766 = vshrl.u32 %v765, 7
    %v767 = vsub.s32 %v764, %v766
    %v768 = vrot.slane %v761, %v767
    %v769 = vcombine.low %v675, %v676
    %v771 = vunpack.c.l.s4 1983009808
    %v772 = vunpack.c.0.s8 %v771
    %v773 = vlaneseq
    %v774 = vshrl.u32 %v773, 7
    %v775 = vsub.s32 %v772, %v774
    %v776 = vrot.slane %v769, %v775
    %v777 = vcombine.low %v752, %v760
    %v778 = vcombine.high %v752, %v760
    %v780 = vunpack.c.l.s4 1934713408
    %v781 = vunpack.c.0.s8 %v780
    %v782 = vlaneseq
    %v783 = vshrl.u32 %v782, 7
    %v784 = vsub.s32 %v781, %v783
    %v785 = vrot.slane %v777, %v784
    %v787 = vunpack.c.l.s4 1934713408
    %v788 = vunpack.c.0.s8 %v787
    %v789 = vlaneseq
    %v790 = vshrl.u32 %v789, 7
    %v791 = vsub.s32 %v788, %v790
    %v792 = vrot.slane %v778, %v791
    %v793 = vcombine.low %v768, %v776
    %v794 = vcombine.high %v768, %v776
    %v796 = vunpack.c.l.s4 1934713408
    %v797 = vunpack.c.0.s8 %v796
    %v798 = vlaneseq
    %v799 = vshrl.u32 %v798, 7
    %v800 = vsub.s32 %v797, %v799
    %v801 = vrot.slane %v793, %v800
    %v803 = vunpack.c.l.s4 1934713408
    %v804 = vunpack.c.0.s8 %v803
    %v805 = vlaneseq
    %v806 = vshrl.u32 %v805, 7
    %v807 = vsub.s32 %v804, %v806
    %v808 = vrot.slane %v794, %v807
    %v809 = vcombine.low %v785, %v801
    %v810 = vcombine.high %v785, %v801
    %v811 = vcombine.low %v792, %v808
    %v812 = vcombine.high %v792, %v808
    %v813 = vpack.c.bf16 %v741, %v741
    %v814 = vpack.c.bf16 %v742, %v742
    %v815 = vpack.c.bf16 %v743, %v743
    %v816 = vpack.c.bf16 %v744, %v744
    %v817 = vpack.c.bf16 %v809, %v809
    %v818 = vpack.c.bf16 %v810, %v810
    %v819 = vpack.c.bf16 %v811, %v811
    %v820 = vpack.c.bf16 %v812, %v812
    %821 = vrot.lane.b32.xlu0 %v211, 64
    %v822 = vpop.permute.xlu0 %821
    %823 = vrot.lane.b32.xlu0 %v214, 64
    %v824 = vpop.permute.xlu0 %823
    %825 = vrot.lane.b32.xlu0 %v220, 64
    %v826 = vpop.permute.xlu0 %825
    %827 = vrot.lane.b32.xlu0 %v222, 64
    %v828 = vpop.permute.xlu0 %827
    %829 = vrot.lane.b32.xlu0 %v226, 64
    %v830 = vpop.permute.xlu0 %829
    %831 = vrot.lane.b32.xlu0 %v228, 64
    %v832 = vpop.permute.xlu0 %831
    %833 = vrot.lane.b32.xlu0 %v232, 64
    %v834 = vpop.permute.xlu0 %833
    %835 = vrot.lane.b32.xlu0 %v234, 64
    %v836 = vpop.permute.xlu0 %835
    %v845 = vcombine.low %v822, %v830
    %v846 = vcombine.high %v822, %v830
    %v848 = vunpack.c.l.s4 1983009808
    %v849 = vunpack.c.0.s8 %v848
    %v850 = vlaneseq
    %v851 = vshrl.u32 %v850, 7
    %v852 = vsub.s32 %v849, %v851
    %v853 = vrot.slane %v845, %v852
    %v855 = vunpack.c.l.s4 1983009808
    %v856 = vunpack.c.0.s8 %v855
    %v857 = vlaneseq
    %v858 = vshrl.u32 %v857, 7
    %v859 = vsub.s32 %v856, %v858
    %v860 = vrot.slane %v846, %v859
    %v861 = vcombine.low %v826, %v834
    %v862 = vcombine.high %v826, %v834
    %v864 = vunpack.c.l.s4 1983009808
    %v865 = vunpack.c.0.s8 %v864
    %v866 = vlaneseq
    %v867 = vshrl.u32 %v866, 7
    %v868 = vsub.s32 %v865, %v867
    %v869 = vrot.slane %v861, %v868
    %v871 = vunpack.c.l.s4 1983009808
    %v872 = vunpack.c.0.s8 %v871
    %v873 = vlaneseq
    %v874 = vshrl.u32 %v873, 7
    %v875 = vsub.s32 %v872, %v874
    %v876 = vrot.slane %v862, %v875
    %v877 = vcombine.low %v853, %v869
    %v878 = vcombine.high %v853, %v869
    %v880 = vunpack.c.l.s4 1934713408
    %v881 = vunpack.c.0.s8 %v880
    %v882 = vlaneseq
    %v883 = vshrl.u32 %v882, 7
    %v884 = vsub.s32 %v881, %v883
    %v885 = vrot.slane %v877, %v884
    %v887 = vunpack.c.l.s4 1934713408
    %v888 = vunpack.c.0.s8 %v887
    %v889 = vlaneseq
    %v890 = vshrl.u32 %v889, 7
    %v891 = vsub.s32 %v888, %v890
    %v892 = vrot.slane %v878, %v891
    %v893 = vcombine.low %v860, %v876
    %v894 = vcombine.high %v860, %v876
    %v896 = vunpack.c.l.s4 1934713408
    %v897 = vunpack.c.0.s8 %v896
    %v898 = vlaneseq
    %v899 = vshrl.u32 %v898, 7
    %v900 = vsub.s32 %v897, %v899
    %v901 = vrot.slane %v893, %v900
    %v903 = vunpack.c.l.s4 1934713408
    %v904 = vunpack.c.0.s8 %v903
    %v905 = vlaneseq
    %v906 = vshrl.u32 %v905, 7
    %v907 = vsub.s32 %v904, %v906
    %v908 = vrot.slane %v894, %v907
    %v909 = vcombine.high %v885, 0.0
    %v910 = vcombine.high %v892, 0.0
    %v911 = vcombine.high %v901, 0.0
    %v912 = vcombine.high %v908, 0.0
    %v913 = vcombine.low %v824, %v832
    %v914 = vcombine.high %v824, %v832
    %v916 = vunpack.c.l.s4 1983009808
    %v917 = vunpack.c.0.s8 %v916
    %v918 = vlaneseq
    %v919 = vshrl.u32 %v918, 7
    %v920 = vsub.s32 %v917, %v919
    %v921 = vrot.slane %v913, %v920
    %v923 = vunpack.c.l.s4 1983009808
    %v924 = vunpack.c.0.s8 %v923
    %v925 = vlaneseq
    %v926 = vshrl.u32 %v925, 7
    %v927 = vsub.s32 %v924, %v926
    %v928 = vrot.slane %v914, %v927
    %v929 = vcombine.low %v828, %v836
    %v930 = vcombine.high %v828, %v836
    %v932 = vunpack.c.l.s4 1983009808
    %v933 = vunpack.c.0.s8 %v932
    %v934 = vlaneseq
    %v935 = vshrl.u32 %v934, 7
    %v936 = vsub.s32 %v933, %v935
    %v937 = vrot.slane %v929, %v936
    %v939 = vunpack.c.l.s4 1983009808
    %v940 = vunpack.c.0.s8 %v939
    %v941 = vlaneseq
    %v942 = vshrl.u32 %v941, 7
    %v943 = vsub.s32 %v940, %v942
    %v944 = vrot.slane %v930, %v943
    %v945 = vcombine.low %v921, %v937
    %v946 = vcombine.high %v921, %v937
    %v948 = vunpack.c.l.s4 1934713408
    %v949 = vunpack.c.0.s8 %v948
    %v950 = vlaneseq
    %v951 = vshrl.u32 %v950, 7
    %v952 = vsub.s32 %v949, %v951
    %v953 = vrot.slane %v945, %v952
    %v955 = vunpack.c.l.s4 1934713408
    %v956 = vunpack.c.0.s8 %v955
    %v957 = vlaneseq
    %v958 = vshrl.u32 %v957, 7
    %v959 = vsub.s32 %v956, %v958
    %v960 = vrot.slane %v946, %v959
    %v961 = vcombine.low %v928, %v944
    %v962 = vcombine.high %v928, %v944
    %v964 = vunpack.c.l.s4 1934713408
    %v965 = vunpack.c.0.s8 %v964
    %v966 = vlaneseq
    %v967 = vshrl.u32 %v966, 7
    %v968 = vsub.s32 %v965, %v967
    %v969 = vrot.slane %v961, %v968
    %v971 = vunpack.c.l.s4 1934713408
    %v972 = vunpack.c.0.s8 %v971
    %v973 = vlaneseq
    %v974 = vshrl.u32 %v973, 7
    %v975 = vsub.s32 %v972, %v974
    %v976 = vrot.slane %v962, %v975
    %v977 = vcombine.high %v953, 0.0
    %v978 = vcombine.high %v960, 0.0
    %v979 = vcombine.high %v969, 0.0
    %v980 = vcombine.high %v976, 0.0
    %v981 = vcombine.low %v885, %v892
    %v983 = vunpack.c.l.s4 1983009808
    %v984 = vunpack.c.0.s8 %v983
    %v985 = vlaneseq
    %v986 = vshrl.u32 %v985, 7
    %v987 = vsub.s32 %v984, %v986
    %v988 = vrot.slane %v981, %v987
    %v989 = vcombine.low %v909, %v910
    %v991 = vunpack.c.l.s4 1983009808
    %v992 = vunpack.c.0.s8 %v991
    %v993 = vlaneseq
    %v994 = vshrl.u32 %v993, 7
    %v995 = vsub.s32 %v992, %v994
    %v996 = vrot.slane %v989, %v995
    %v997 = vcombine.low %v901, %v908
    %v999 = vunpack.c.l.s4 1983009808
    %v1000 = vunpack.c.0.s8 %v999
    %v1001 = vlaneseq
    %v1002 = vshrl.u32 %v1001, 7
    %v1003 = vsub.s32 %v1000, %v1002
    %v1004 = vrot.slane %v997, %v1003
    %v1005 = vcombine.low %v911, %v912
    %v1007 = vunpack.c.l.s4 1983009808
    %v1008 = vunpack.c.0.s8 %v1007
    %v1009 = vlaneseq
    %v1010 = vshrl.u32 %v1009, 7
    %v1011 = vsub.s32 %v1008, %v1010
    %v1012 = vrot.slane %v1005, %v1011
    %v1013 = vcombine.low %v988, %v996
    %v1014 = vcombine.high %v988, %v996
    %v1016 = vunpack.c.l.s4 1934713408
    %v1017 = vunpack.c.0.s8 %v1016
    %v1018 = vlaneseq
    %v1019 = vshrl.u32 %v1018, 7
    %v1020 = vsub.s32 %v1017, %v1019
    %v1021 = vrot.slane %v1013, %v1020
    %v1023 = vunpack.c.l.s4 1934713408
    %v1024 = vunpack.c.0.s8 %v1023
    %v1025 = vlaneseq
    %v1026 = vshrl.u32 %v1025, 7
    %v1027 = vsub.s32 %v1024, %v1026
    %v1028 = vrot.slane %v1014, %v1027
    %v1029 = vcombine.low %v1004, %v1012
    %v1030 = vcombine.high %v1004, %v1012
    %v1032 = vunpack.c.l.s4 1934713408
    %v1033 = vunpack.c.0.s8 %v1032
    %v1034 = vlaneseq
    %v1035 = vshrl.u32 %v1034, 7
    %v1036 = vsub.s32 %v1033, %v1035
    %v1037 = vrot.slane %v1029, %v1036
    %v1039 = vunpack.c.l.s4 1934713408
    %v1040 = vunpack.c.0.s8 %v1039
    %v1041 = vlaneseq
    %v1042 = vshrl.u32 %v1041, 7
    %v1043 = vsub.s32 %v1040, %v1042
    %v1044 = vrot.slane %v1030, %v1043
    %v1045 = vcombine.low %v1021, %v1037
    %v1046 = vcombine.high %v1021, %v1037
    %v1047 = vcombine.low %v1028, %v1044
    %v1048 = vcombine.high %v1028, %v1044
    %v1049 = vcombine.low %v953, %v960
    %v1051 = vunpack.c.l.s4 1983009808
    %v1052 = vunpack.c.0.s8 %v1051
    %v1053 = vlaneseq
    %v1054 = vshrl.u32 %v1053, 7
    %v1055 = vsub.s32 %v1052, %v1054
    %v1056 = vrot.slane %v1049, %v1055
    %v1057 = vcombine.low %v977, %v978
    %v1059 = vunpack.c.l.s4 1983009808
    %v1060 = vunpack.c.0.s8 %v1059
    %v1061 = vlaneseq
    %v1062 = vshrl.u32 %v1061, 7
    %v1063 = vsub.s32 %v1060, %v1062
    %v1064 = vrot.slane %v1057, %v1063
    %v1065 = vcombine.low %v969, %v976
    %v1067 = vunpack.c.l.s4 1983009808
    %v1068 = vunpack.c.0.s8 %v1067
    %v1069 = vlaneseq
    %v1070 = vshrl.u32 %v1069, 7
    %v1071 = vsub.s32 %v1068, %v1070
    %v1072 = vrot.slane %v1065, %v1071
    %v1073 = vcombine.low %v979, %v980
    %v1075 = vunpack.c.l.s4 1983009808
    %v1076 = vunpack.c.0.s8 %v1075
    %v1077 = vlaneseq
    %v1078 = vshrl.u32 %v1077, 7
    %v1079 = vsub.s32 %v1076, %v1078
    %v1080 = vrot.slane %v1073, %v1079
    %v1081 = vcombine.low %v1056, %v1064
    %v1082 = vcombine.high %v1056, %v1064
    %v1084 = vunpack.c.l.s4 1934713408
    %v1085 = vunpack.c.0.s8 %v1084
    %v1086 = vlaneseq
    %v1087 = vshrl.u32 %v1086, 7
    %v1088 = vsub.s32 %v1085, %v1087
    %v1089 = vrot.slane %v1081, %v1088
    %v1091 = vunpack.c.l.s4 1934713408
    %v1092 = vunpack.c.0.s8 %v1091
    %v1093 = vlaneseq
    %v1094 = vshrl.u32 %v1093, 7
    %v1095 = vsub.s32 %v1092, %v1094
    %v1096 = vrot.slane %v1082, %v1095
    %v1097 = vcombine.low %v1072, %v1080
    %v1098 = vcombine.high %v1072, %v1080
    %v1100 = vunpack.c.l.s4 1934713408
    %v1101 = vunpack.c.0.s8 %v1100
    %v1102 = vlaneseq
    %v1103 = vshrl.u32 %v1102, 7
    %v1104 = vsub.s32 %v1101, %v1103
    %v1105 = vrot.slane %v1097, %v1104
    %v1107 = vunpack.c.l.s4 1934713408
    %v1108 = vunpack.c.0.s8 %v1107
    %v1109 = vlaneseq
    %v1110 = vshrl.u32 %v1109, 7
    %v1111 = vsub.s32 %v1108, %v1110
    %v1112 = vrot.slane %v1098, %v1111
    %v1113 = vcombine.low %v1089, %v1105
    %v1114 = vcombine.high %v1089, %v1105
    %v1115 = vcombine.low %v1096, %v1112
    %v1116 = vcombine.high %v1096, %v1112
    %v1117 = vpack.c.bf16 %v1045, %v1045
    %v1118 = vpack.c.bf16 %v1046, %v1046
    %v1119 = vpack.c.bf16 %v1047, %v1047
    %v1120 = vpack.c.bf16 %v1048, %v1048
    %v1121 = vpack.c.bf16 %v1113, %v1113
    %v1122 = vpack.c.bf16 %v1114, %v1114
    %v1123 = vpack.c.bf16 %v1115, %v1115
    %v1124 = vpack.c.bf16 %v1116, %v1116
    %vm1125 = vcmask 64512
    %v1127 = vsel %vm1125, %v509, 0
    %v1130 = vsel %vm1125, %v813, 0
    %1132 = vmatprep.subr.bf16.mxu0 0
    %1133 = vmatpush1.bf16.xpose.msra.mxu0 %v1130
    %1134 = vmatprep.subr.bf16.mxu0 0
    %1135 = vmatpush1.bf16.xpose.msra.mxu0 0
    %1136 = vmatprep.subr.bf16.mxu0 0
    %1137 = vmatpush1.bf16.xpose.msra.mxu0 0
    %1138 = vmatprep.subr.bf16.mxu0 0
    %1139 = vmatpush1.bf16.xpose.msra.mxu0 0
    %1140 = vmatprep.subr.bf16.mxu0 0
    %1141 = vmatpush1.bf16.xpose.msra.mxu0 0
    %1142 = vmatprep.subr.bf16.mxu0 0
    %1143 = vmatpush1.bf16.xpose.msra.mxu0 0
    %1144 = vmatprep.subr.bf16.mxu0 0
    %1145 = vmatpush1.bf16.xpose.msra.mxu0 0
    %1146 = vmatprep.subr.bf16.mxu0 0
    %1147 = vmatpush1.bf16.xpose.msra.mxu0 0
    %1148 = vmatprep.subr.bf16.mxu0 0
    %1149 = vmatpush1.bf16.xpose.msra.mxu0 0
    %1150 = vmatprep.subr.bf16.mxu0 0
    %1151 = vmatpush1.bf16.xpose.msra.mxu0 0
    %1152 = vmatprep.subr.bf16.mxu0 0
    %1153 = vmatpush1.bf16.xpose.msra.mxu0 0
    %1154 = vmatprep.subr.bf16.mxu0 0
    %1155 = vmatpush1.bf16.xpose.msra.mxu0 0
    %1156 = vmatprep.subr.bf16.mxu0 0
    %1157 = vmatpush1.bf16.xpose.msra.mxu0 0
    %1158 = vmatprep.subr.bf16.mxu0 0
    %1159 = vmatpush1.bf16.xpose.msra.mxu0 0
    %1160 = vmatprep.subr.bf16.mxu0 0
    %1161 = vmatpush1.bf16.xpose.msra.mxu0 0
    %1162 = vmatprep.subr.bf16.mxu0 0
    %1163 = vmatpush1.bf16.xpose.msra.mxu0 0
    %1164 = vmatprep.mubr.bf16.mxu0 0
    %1165 = vmatmul.mubr.bf16.gmra.mrb[0].mxu0 %v1127
    %v1166 = vpop.f32.mrb[0].mxu0
    %v1167 = vadd.f32 0.0, %v1166
    %v1168 = vpop.f32.mrb[0].mxu0
    %v1169 = vpop.f32.mrb[0].mxu0
    %v1170 = vpop.f32.mrb[0].mxu0
    %1171 = vdwg.mxu0
    %v1173 = vsel %vm1125, %v510, 0
    %v1176 = vsel %vm1125, %v814, 0
    %1178 = vmatprep.subr.bf16.mxu0 0
    %1179 = vmatpush1.bf16.xpose.msra.mxu0 %v1176
    %1180 = vmatprep.subr.bf16.mxu0 0
    %1181 = vmatpush1.bf16.xpose.msra.mxu0 0
    %1182 = vmatprep.subr.bf16.mxu0 0
    %1183 = vmatpush1.bf16.xpose.msra.mxu0 0
    %1184 = vmatprep.subr.bf16.mxu0 0
    %1185 = vmatpush1.bf16.xpose.msra.mxu0 0
    %1186 = vmatprep.subr.bf16.mxu0 0
    %1187 = vmatpush1.bf16.xpose.msra.mxu0 0
    %1188 = vmatprep.subr.bf16.mxu0 0
    %1189 = vmatpush1.bf16.xpose.msra.mxu0 0
    %1190 = vmatprep.subr.bf16.mxu0 0
    %1191 = vmatpush1.bf16.xpose.msra.mxu0 0
    %1192 = vmatprep.subr.bf16.mxu0 0
    %1193 = vmatpush1.bf16.xpose.msra.mxu0 0
    %1194 = vmatprep.subr.bf16.mxu0 0
    %1195 = vmatpush1.bf16.xpose.msra.mxu0 0
    %1196 = vmatprep.subr.bf16.mxu0 0
    %1197 = vmatpush1.bf16.xpose.msra.mxu0 0
    %1198 = vmatprep.subr.bf16.mxu0 0
    %1199 = vmatpush1.bf16.xpose.msra.mxu0 0
    %1200 = vmatprep.subr.bf16.mxu0 0
    %1201 = vmatpush1.bf16.xpose.msra.mxu0 0
    %1202 = vmatprep.subr.bf16.mxu0 0
    %1203 = vmatpush1.bf16.xpose.msra.mxu0 0
    %1204 = vmatprep.subr.bf16.mxu0 0
    %1205 = vmatpush1.bf16.xpose.msra.mxu0 0
    %1206 = vmatprep.subr.bf16.mxu0 0
    %1207 = vmatpush1.bf16.xpose.msra.mxu0 0
    %1208 = vmatprep.subr.bf16.mxu0 0
    %1209 = vmatpush1.bf16.xpose.msra.mxu0 0
    %1210 = vmatprep.mubr.bf16.mxu0 0
    %1211 = vmatmul.mubr.bf16.gmra.mrb[0].mxu0 %v1173
    %v1212 = vpop.f32.mrb[0].mxu0
    %v1213 = vadd.f32 0.0, %v1212
    %v1214 = vpop.f32.mrb[0].mxu0
    %v1215 = vpop.f32.mrb[0].mxu0
    %v1216 = vpop.f32.mrb[0].mxu0
    %1217 = vdwg.mxu0
    %v1219 = vsel %vm1125, %v511, 0
    %v1222 = vsel %vm1125, %v815, 0
    %1224 = vmatprep.subr.bf16.mxu0 0
    %1225 = vmatpush1.bf16.xpose.msra.mxu0 %v1222
    %1226 = vmatprep.subr.bf16.mxu0 0
    %1227 = vmatpush1.bf16.xpose.msra.mxu0 0
    %1228 = vmatprep.subr.bf16.mxu0 0
    %1229 = vmatpush1.bf16.xpose.msra.mxu0 0
    %1230 = vmatprep.subr.bf16.mxu0 0
    %1231 = vmatpush1.bf16.xpose.msra.mxu0 0
    %1232 = vmatprep.subr.bf16.mxu0 0
    %1233 = vmatpush1.bf16.xpose.msra.mxu0 0
    %1234 = vmatprep.subr.bf16.mxu0 0
    %1235 = vmatpush1.bf16.xpose.msra.mxu0 0
    %1236 = vmatprep.subr.bf16.mxu0 0
    %1237 = vmatpush1.bf16.xpose.msra.mxu0 0
    %1238 = vmatprep.subr.bf16.mxu0 0
    %1239 = vmatpush1.bf16.xpose.msra.mxu0 0
    %1240 = vmatprep.subr.bf16.mxu0 0
    %1241 = vmatpush1.bf16.xpose.msra.mxu0 0
    %1242 = vmatprep.subr.bf16.mxu0 0
    %1243 = vmatpush1.bf16.xpose.msra.mxu0 0
    %1244 = vmatprep.subr.bf16.mxu0 0
    %1245 = vmatpush1.bf16.xpose.msra.mxu0 0
    %1246 = vmatprep.subr.bf16.mxu0 0
    %1247 = vmatpush1.bf16.xpose.msra.mxu0 0
    %1248 = vmatprep.subr.bf16.mxu0 0
    %1249 = vmatpush1.bf16.xpose.msra.mxu0 0
    %1250 = vmatprep.subr.bf16.mxu0 0
    %1251 = vmatpush1.bf16.xpose.msra.mxu0 0
    %1252 = vmatprep.subr.bf16.mxu0 0
    %1253 = vmatpush1.bf16.xpose.msra.mxu0 0
    %1254 = vmatprep.subr.bf16.mxu0 0
    %1255 = vmatpush1.bf16.xpose.msra.mxu0 0
    %1256 = vmatprep.mubr.bf16.mxu0 0
    %1257 = vmatmul.mubr.bf16.gmra.mrb[0].mxu0 %v1219
    %v1258 = vpop.f32.mrb[0].mxu0
    %v1259 = vadd.f32 0.0, %v1258
    %v1260 = vpop.f32.mrb[0].mxu0
    %v1261 = vpop.f32.mrb[0].mxu0
    %v1262 = vpop.f32.mrb[0].mxu0
    %1263 = vdwg.mxu0
    %v1265 = vsel %vm1125, %v512, 0
    %v1268 = vsel %vm1125, %v816, 0
    %1270 = vmatprep.subr.bf16.mxu0 0
    %1271 = vmatpush1.bf16.xpose.msra.mxu0 %v1268
    %1272 = vmatprep.subr.bf16.mxu0 0
    %1273 = vmatpush1.bf16.xpose.msra.mxu0 0
    %1274 = vmatprep.subr.bf16.mxu0 0
    %1275 = vmatpush1.bf16.xpose.msra.mxu0 0
    %1276 = vmatprep.subr.bf16.mxu0 0
    %1277 = vmatpush1.bf16.xpose.msra.mxu0 0
    %1278 = vmatprep.subr.bf16.mxu0 0
    %1279 = vmatpush1.bf16.xpose.msra.mxu0 0
    %1280 = vmatprep.subr.bf16.mxu0 0
    %1281 = vmatpush1.bf16.xpose.msra.mxu0 0
    %1282 = vmatprep.subr.bf16.mxu0 0
    %1283 = vmatpush1.bf16.xpose.msra.mxu0 0
    %1284 = vmatprep.subr.bf16.mxu0 0
    %1285 = vmatpush1.bf16.xpose.msra.mxu0 0
    %1286 = vmatprep.subr.bf16.mxu0 0
    %1287 = vmatpush1.bf16.xpose.msra.mxu0 0
    %1288 = vmatprep.subr.bf16.mxu0 0
    %1289 = vmatpush1.bf16.xpose.msra.mxu0 0
    %1290 = vmatprep.subr.bf16.mxu0 0
    %1291 = vmatpush1.bf16.xpose.msra.mxu0 0
    %1292 = vmatprep.subr.bf16.mxu0 0
    %1293 = vmatpush1.bf16.xpose.msra.mxu0 0
    %1294 = vmatprep.subr.bf16.mxu0 0
    %1295 = vmatpush1.bf16.xpose.msra.mxu0 0
    %1296 = vmatprep.subr.bf16.mxu0 0
    %1297 = vmatpush1.bf16.xpose.msra.mxu0 0
    %1298 = vmatprep.subr.bf16.mxu0 0
    %1299 = vmatpush1.bf16.xpose.msra.mxu0 0
    %1300 = vmatprep.subr.bf16.mxu0 0
    %1301 = vmatpush1.bf16.xpose.msra.mxu0 0
    %1302 = vmatprep.mubr.bf16.mxu0 0
    %1303 = vmatmul.mubr.bf16.gmra.mrb[0].mxu0 %v1265
    %v1304 = vpop.f32.mrb[0].mxu0
    %v1305 = vadd.f32 0.0, %v1304
    %v1306 = vpop.f32.mrb[0].mxu0
    %v1307 = vpop.f32.mrb[0].mxu0
    %v1308 = vpop.f32.mrb[0].mxu0
    %1309 = vdwg.mxu0
    %v1311 = vsel %vm1125, %v513, 0
    %v1314 = vsel %vm1125, %v817, 0
    %1316 = vmatprep.subr.bf16.mxu0 0
    %1317 = vmatpush1.bf16.xpose.msra.mxu0 %v1314
    %1318 = vmatprep.subr.bf16.mxu0 0
    %1319 = vmatpush1.bf16.xpose.msra.mxu0 0
    %1320 = vmatprep.subr.bf16.mxu0 0
    %1321 = vmatpush1.bf16.xpose.msra.mxu0 0
    %1322 = vmatprep.subr.bf16.mxu0 0
    %1323 = vmatpush1.bf16.xpose.msra.mxu0 0
    %1324 = vmatprep.subr.bf16.mxu0 0
    %1325 = vmatpush1.bf16.xpose.msra.mxu0 0
    %1326 = vmatprep.subr.bf16.mxu0 0
    %1327 = vmatpush1.bf16.xpose.msra.mxu0 0
    %1328 = vmatprep.subr.bf16.mxu0 0
    %1329 = vmatpush1.bf16.xpose.msra.mxu0 0
    %1330 = vmatprep.subr.bf16.mxu0 0
    %1331 = vmatpush1.bf16.xpose.msra.mxu0 0
    %1332 = vmatprep.subr.bf16.mxu0 0
    %1333 = vmatpush1.bf16.xpose.msra.mxu0 0
    %1334 = vmatprep.subr.bf16.mxu0 0
    %1335 = vmatpush1.bf16.xpose.msra.mxu0 0
    %1336 = vmatprep.subr.bf16.mxu0 0
    %1337 = vmatpush1.bf16.xpose.msra.mxu0 0
    %1338 = vmatprep.subr.bf16.mxu0 0
    %1339 = vmatpush1.bf16.xpose.msra.mxu0 0
    %1340 = vmatprep.subr.bf16.mxu0 0
    %1341 = vmatpush1.bf16.xpose.msra.mxu0 0
    %1342 = vmatprep.subr.bf16.mxu0 0
    %1343 = vmatpush1.bf16.xpose.msra.mxu0 0
    %1344 = vmatprep.subr.bf16.mxu0 0
    %1345 = vmatpush1.bf16.xpose.msra.mxu0 0
    %1346 = vmatprep.subr.bf16.mxu0 0
    %1347 = vmatpush1.bf16.xpose.msra.mxu0 0
    %1348 = vmatprep.mubr.bf16.mxu0 0
    %1349 = vmatmul.mubr.bf16.gmra.mrb[0].mxu0 %v1311
    %v1350 = vpop.f32.mrb[0].mxu0
    %v1351 = vadd.f32 0.0, %v1350
    %v1352 = vpop.f32.mrb[0].mxu0
    %v1353 = vpop.f32.mrb[0].mxu0
    %v1354 = vpop.f32.mrb[0].mxu0
    %1355 = vdwg.mxu0
    %v1357 = vsel %vm1125, %v514, 0
    %v1360 = vsel %vm1125, %v818, 0
    %1362 = vmatprep.subr.bf16.mxu0 0
    %1363 = vmatpush1.bf16.xpose.msra.mxu0 %v1360
    %1364 = vmatprep.subr.bf16.mxu0 0
    %1365 = vmatpush1.bf16.xpose.msra.mxu0 0
    %1366 = vmatprep.subr.bf16.mxu0 0
    %1367 = vmatpush1.bf16.xpose.msra.mxu0 0
    %1368 = vmatprep.subr.bf16.mxu0 0
    %1369 = vmatpush1.bf16.xpose.msra.mxu0 0
    %1370 = vmatprep.subr.bf16.mxu0 0
    %1371 = vmatpush1.bf16.xpose.msra.mxu0 0
    %1372 = vmatprep.subr.bf16.mxu0 0
    %1373 = vmatpush1.bf16.xpose.msra.mxu0 0
    %1374 = vmatprep.subr.bf16.mxu0 0
    %1375 = vmatpush1.bf16.xpose.msra.mxu0 0
    %1376 = vmatprep.subr.bf16.mxu0 0
    %1377 = vmatpush1.bf16.xpose.msra.mxu0 0
    %1378 = vmatprep.subr.bf16.mxu0 0
    %1379 = vmatpush1.bf16.xpose.msra.mxu0 0
    %1380 = vmatprep.subr.bf16.mxu0 0
    %1381 = vmatpush1.bf16.xpose.msra.mxu0 0
    %1382 = vmatprep.subr.bf16.mxu0 0
    %1383 = vmatpush1.bf16.xpose.msra.mxu0 0
    %1384 = vmatprep.subr.bf16.mxu0 0
    %1385 = vmatpush1.bf16.xpose.msra.mxu0 0
    %1386 = vmatprep.subr.bf16.mxu0 0
    %1387 = vmatpush1.bf16.xpose.msra.mxu0 0
    %1388 = vmatprep.subr.bf16.mxu0 0
    %1389 = vmatpush1.bf16.xpose.msra.mxu0 0
    %1390 = vmatprep.subr.bf16.mxu0 0
    %1391 = vmatpush1.bf16.xpose.msra.mxu0 0
    %1392 = vmatprep.subr.bf16.mxu0 0
    %1393 = vmatpush1.bf16.xpose.msra.mxu0 0
    %1394 = vmatprep.mubr.bf16.mxu0 0
    %1395 = vmatmul.mubr.bf16.gmra.mrb[0].mxu0 %v1357
    %v1396 = vpop.f32.mrb[0].mxu0
    %v1397 = vadd.f32 0.0, %v1396
    %v1398 = vpop.f32.mrb[0].mxu0
    %v1399 = vpop.f32.mrb[0].mxu0
    %v1400 = vpop.f32.mrb[0].mxu0
    %1401 = vdwg.mxu0
    %v1403 = vsel %vm1125, %v515, 0
    %v1406 = vsel %vm1125, %v819, 0
    %1408 = vmatprep.subr.bf16.mxu0 0
    %1409 = vmatpush1.bf16.xpose.msra.mxu0 %v1406
    %1410 = vmatprep.subr.bf16.mxu0 0
    %1411 = vmatpush1.bf16.xpose.msra.mxu0 0
    %1412 = vmatprep.subr.bf16.mxu0 0
    %1413 = vmatpush1.bf16.xpose.msra.mxu0 0
    %1414 = vmatprep.subr.bf16.mxu0 0
    %1415 = vmatpush1.bf16.xpose.msra.mxu0 0
    %1416 = vmatprep.subr.bf16.mxu0 0
    %1417 = vmatpush1.bf16.xpose.msra.mxu0 0
    %1418 = vmatprep.subr.bf16.mxu0 0
    %1419 = vmatpush1.bf16.xpose.msra.mxu0 0
    %1420 = vmatprep.subr.bf16.mxu0 0
    %1421 = vmatpush1.bf16.xpose.msra.mxu0 0
    %1422 = vmatprep.subr.bf16.mxu0 0
    %1423 = vmatpush1.bf16.xpose.msra.mxu0 0
    %1424 = vmatprep.subr.bf16.mxu0 0
    %1425 = vmatpush1.bf16.xpose.msra.mxu0 0
    %1426 = vmatprep.subr.bf16.mxu0 0
    %1427 = vmatpush1.bf16.xpose.msra.mxu0 0
    %1428 = vmatprep.subr.bf16.mxu0 0
    %1429 = vmatpush1.bf16.xpose.msra.mxu0 0
    %1430 = vmatprep.subr.bf16.mxu0 0
    %1431 = vmatpush1.bf16.xpose.msra.mxu0 0
    %1432 = vmatprep.subr.bf16.mxu0 0
    %1433 = vmatpush1.bf16.xpose.msra.mxu0 0
    %1434 = vmatprep.subr.bf16.mxu0 0
    %1435 = vmatpush1.bf16.xpose.msra.mxu0 0
    %1436 = vmatprep.subr.bf16.mxu0 0
    %1437 = vmatpush1.bf16.xpose.msra.mxu0 0
    %1438 = vmatprep.subr.bf16.mxu0 0
    %1439 = vmatpush1.bf16.xpose.msra.mxu0 0
    %1440 = vmatprep.mubr.bf16.mxu0 0
    %1441 = vmatmul.mubr.bf16.gmra.mrb[0].mxu0 %v1403
    %v1442 = vpop.f32.mrb[0].mxu0
    %v1443 = vadd.f32 0.0, %v1442
    %v1444 = vpop.f32.mrb[0].mxu0
    %v1445 = vpop.f32.mrb[0].mxu0
    %v1446 = vpop.f32.mrb[0].mxu0
    %1447 = vdwg.mxu0
    %v1449 = vsel %vm1125, %v516, 0
    %v1452 = vsel %vm1125, %v820, 0
    %1454 = vmatprep.subr.bf16.mxu0 0
    %1455 = vmatpush1.bf16.xpose.msra.mxu0 %v1452
    %1456 = vmatprep.subr.bf16.mxu0 0
    %1457 = vmatpush1.bf16.xpose.msra.mxu0 0
    %1458 = vmatprep.subr.bf16.mxu0 0
    %1459 = vmatpush1.bf16.xpose.msra.mxu0 0
    %1460 = vmatprep.subr.bf16.mxu0 0
    %1461 = vmatpush1.bf16.xpose.msra.mxu0 0
    %1462 = vmatprep.subr.bf16.mxu0 0
    %1463 = vmatpush1.bf16.xpose.msra.mxu0 0
    %1464 = vmatprep.subr.bf16.mxu0 0
    %1465 = vmatpush1.bf16.xpose.msra.mxu0 0
    %1466 = vmatprep.subr.bf16.mxu0 0
    %1467 = vmatpush1.bf16.xpose.msra.mxu0 0
    %1468 = vmatprep.subr.bf16.mxu0 0
    %1469 = vmatpush1.bf16.xpose.msra.mxu0 0
    %1470 = vmatprep.subr.bf16.mxu0 0
    %1471 = vmatpush1.bf16.xpose.msra.mxu0 0
    %1472 = vmatprep.subr.bf16.mxu0 0
    %1473 = vmatpush1.bf16.xpose.msra.mxu0 0
    %1474 = vmatprep.subr.bf16.mxu0 0
    %1475 = vmatpush1.bf16.xpose.msra.mxu0 0
    %1476 = vmatprep.subr.bf16.mxu0 0
    %1477 = vmatpush1.bf16.xpose.msra.mxu0 0
    %1478 = vmatprep.subr.bf16.mxu0 0
    %1479 = vmatpush1.bf16.xpose.msra.mxu0 0
    %1480 = vmatprep.subr.bf16.mxu0 0
    %1481 = vmatpush1.bf16.xpose.msra.mxu0 0
    %1482 = vmatprep.subr.bf16.mxu0 0
    %1483 = vmatpush1.bf16.xpose.msra.mxu0 0
    %1484 = vmatprep.subr.bf16.mxu0 0
    %1485 = vmatpush1.bf16.xpose.msra.mxu0 0
    %1486 = vmatprep.mubr.bf16.mxu0 0
    %1487 = vmatmul.mubr.bf16.gmra.mrb[0].mxu0 %v1449
    %v1488 = vpop.f32.mrb[0].mxu0
    %v1489 = vadd.f32 0.0, %v1488
    %v1490 = vpop.f32.mrb[0].mxu0
    %v1491 = vpop.f32.mrb[0].mxu0
    %v1492 = vpop.f32.mrb[0].mxu0
    %1493 = vdwg.mxu0
    %v1494 = vsel %vm1125, %v1167, -inf
    %1495 = vmax.xlane.f32.xlu0 %v1494
    %v1496 = vpop.xlane.xlu0 %1495
    %v1497 = vsel %vm1125, %v1213, -inf
    %1498 = vmax.xlane.f32.xlu0 %v1497
    %v1499 = vpop.xlane.xlu0 %1498
    %v1500 = vsel %vm1125, %v1259, -inf
    %1501 = vmax.xlane.f32.xlu0 %v1500
    %v1502 = vpop.xlane.xlu0 %1501
    %v1503 = vsel %vm1125, %v1305, -inf
    %1504 = vmax.xlane.f32.xlu0 %v1503
    %v1505 = vpop.xlane.xlu0 %1504
    %v1506 = vsel %vm1125, %v1351, -inf
    %1507 = vmax.xlane.f32.xlu0 %v1506
    %v1508 = vpop.xlane.xlu0 %1507
    %v1509 = vsel %vm1125, %v1397, -inf
    %1510 = vmax.xlane.f32.xlu0 %v1509
    %v1511 = vpop.xlane.xlu0 %1510
    %v1512 = vsel %vm1125, %v1443, -inf
    %1513 = vmax.xlane.f32.xlu0 %v1512
    %v1514 = vpop.xlane.xlu0 %1513
    %v1515 = vsel %vm1125, %v1489, -inf
    %1516 = vmax.xlane.f32.xlu0 %v1515
    %v1517 = vpop.xlane.xlu0 %1516
    %v1518 = vsub.f32 %v1167, %v1496
    %v1519 = vsub.f32 %v1213, %v1499
    %v1520 = vsub.f32 %v1259, %v1502
    %v1521 = vsub.f32 %v1305, %v1505
    %v1522 = vsub.f32 %v1351, %v1508
    %v1523 = vsub.f32 %v1397, %v1511
    %v1524 = vsub.f32 %v1443, %v1514
    %v1525 = vsub.f32 %v1489, %v1517
    %v1526 = vmul.f32 %v1518, 1.442695
    %v1527 = vpow.pop %v1526
    %v1528 = vmul.f32 %v1519, 1.442695
    %v1529 = vpow.pop %v1528
    %v1530 = vmul.f32 %v1520, 1.442695
    %v1531 = vpow.pop %v1530
    %v1532 = vmul.f32 %v1521, 1.442695
    %v1533 = vpow.pop %v1532
    %v1534 = vmul.f32 %v1522, 1.442695
    %v1535 = vpow.pop %v1534
    %v1536 = vmul.f32 %v1523, 1.442695
    %v1537 = vpow.pop %v1536
    %v1538 = vmul.f32 %v1524, 1.442695
    %v1539 = vpow.pop %v1538
    %v1540 = vmul.f32 %v1525, 1.442695
    %v1541 = vpow.pop %v1540
    %v1542 = vsel %vm1125, %v1527, 0.0
    %1543 = vadd.xlane.f32.xlu0 %v1542
    %v1544 = vpop.xlane.xlu0 %1543
    %v1545 = vsel %vm1125, %v1529, 0.0
    %1546 = vadd.xlane.f32.xlu0 %v1545
    %v1547 = vpop.xlane.xlu0 %1546
    %v1548 = vsel %vm1125, %v1531, 0.0
    %1549 = vadd.xlane.f32.xlu0 %v1548
    %v1550 = vpop.xlane.xlu0 %1549
    %v1551 = vsel %vm1125, %v1533, 0.0
    %1552 = vadd.xlane.f32.xlu0 %v1551
    %v1553 = vpop.xlane.xlu0 %1552
    %v1554 = vsel %vm1125, %v1535, 0.0
    %1555 = vadd.xlane.f32.xlu0 %v1554
    %v1556 = vpop.xlane.xlu0 %1555
    %v1557 = vsel %vm1125, %v1537, 0.0
    %1558 = vadd.xlane.f32.xlu0 %v1557
    %v1559 = vpop.xlane.xlu0 %1558
    %v1560 = vsel %vm1125, %v1539, 0.0
    %1561 = vadd.xlane.f32.xlu0 %v1560
    %v1562 = vpop.xlane.xlu0 %1561
    %v1563 = vsel %vm1125, %v1541, 0.0
    %1564 = vadd.xlane.f32.xlu0 %v1563
    %v1565 = vpop.xlane.xlu0 %1564
    %v1566 = vrcp.pop %v1544
    %v1567 = vrcp.pop %v1547
    %v1568 = vrcp.pop %v1550
    %v1569 = vrcp.pop %v1553
    %v1570 = vrcp.pop %v1556
    %v1571 = vrcp.pop %v1559
    %v1572 = vrcp.pop %v1562
    %v1573 = vrcp.pop %v1565
    %v1574 = vmul.f32 %v1527, %v1566
    %v1575 = vmul.f32 %v1529, %v1567
    %v1576 = vmul.f32 %v1531, %v1568
    %v1577 = vmul.f32 %v1533, %v1569
    %v1578 = vmul.f32 %v1535, %v1570
    %v1579 = vmul.f32 %v1537, %v1571
    %v1580 = vmul.f32 %v1539, %v1572
    %v1581 = vmul.f32 %v1541, %v1573
    %1582 = vst.msk [vmem:[#allocation11] sm:$0xff] %vm1125, %v1574
    %1583 = vst.msk [vmem:[#allocation11 + $0x8] sm:$0xff] %vm1125, %v1575
    %1584 = vst.msk [vmem:[#allocation11 + $0x10] sm:$0xff] %vm1125, %v1576
    %1585 = vst.msk [vmem:[#allocation11 + $0x18] sm:$0xff] %vm1125, %v1577
    %1586 = vst.msk [vmem:[#allocation11 + $0x20] sm:$0xff] %vm1125, %v1578
    %1587 = vst.msk [vmem:[#allocation11 + $0x28] sm:$0xff] %vm1125, %v1579
    %1588 = vst.msk [vmem:[#allocation11 + $0x30] sm:$0xff] %vm1125, %v1580
    %1589 = vst.msk [vmem:[#allocation11 + $0x38] sm:$0xff] %vm1125, %v1581
    %v1590 = vpack.c.bf16 %v1574, %v1574
    %v1591 = vpack.c.bf16 %v1575, %v1575
    %v1592 = vpack.c.bf16 %v1576, %v1576
    %v1593 = vpack.c.bf16 %v1577, %v1577
    %v1594 = vpack.c.bf16 %v1578, %v1578
    %v1595 = vpack.c.bf16 %v1579, %v1579
    %v1596 = vpack.c.bf16 %v1580, %v1580
    %v1597 = vpack.c.bf16 %v1581, %v1581
    %v1599 = vsel %vm1125, %v1590, 0
    %vm1601 = vcmask 1043456
    %v1603 = vsel %vm1601, %v1117, 0
    %1605 = vmatprep.subr.bf16.mxu0 0
    %1606 = vmatpush1.bf16.msra.mxu0 %v1603
    %1607 = vmatprep.subr.bf16.mxu0 0
    %1608 = vmatpush1.bf16.msra.mxu0 0
    %1609 = vmatprep.subr.bf16.mxu0 0
    %1610 = vmatpush1.bf16.msra.mxu0 0
    %1611 = vmatprep.subr.bf16.mxu0 0
    %1612 = vmatpush1.bf16.msra.mxu0 0
    %1613 = vmatprep.subr.bf16.mxu0 0
    %1614 = vmatpush1.bf16.msra.mxu0 0
    %1615 = vmatprep.subr.bf16.mxu0 0
    %1616 = vmatpush1.bf16.msra.mxu0 0
    %1617 = vmatprep.subr.bf16.mxu0 0
    %1618 = vmatpush1.bf16.msra.mxu0 0
    %1619 = vmatprep.subr.bf16.mxu0 0
    %1620 = vmatpush1.bf16.msra.mxu0 0
    %1621 = vmatprep.subr.bf16.mxu0 0
    %1622 = vmatpush1.bf16.msra.mxu0 0
    %1623 = vmatprep.subr.bf16.mxu0 0
    %1624 = vmatpush1.bf16.msra.mxu0 0
    %1625 = vmatprep.subr.bf16.mxu0 0
    %1626 = vmatpush1.bf16.msra.mxu0 0
    %1627 = vmatprep.subr.bf16.mxu0 0
    %1628 = vmatpush1.bf16.msra.mxu0 0
    %1629 = vmatprep.subr.bf16.mxu0 0
    %1630 = vmatpush1.bf16.msra.mxu0 0
    %1631 = vmatprep.subr.bf16.mxu0 0
    %1632 = vmatpush1.bf16.msra.mxu0 0
    %1633 = vmatprep.subr.bf16.mxu0 0
    %1634 = vmatpush1.bf16.msra.mxu0 0
    %1635 = vmatprep.subr.bf16.mxu0 0
    %1636 = vmatpush1.bf16.msra.mxu0 0
    %1637 = vmatprep.mubr.bf16.mxu0 0
    %1638 = vmatmul.mubr.bf16.gmra.mrb[0].mxu0 %v1599
    %v1639 = vpop.f32.mrb[0].mxu0
    %v1640 = vadd.f32 0.0, %v1639
    %v1641 = vpop.f32.mrb[0].mxu0
    %v1642 = vpop.f32.mrb[0].mxu0
    %v1643 = vpop.f32.mrb[0].mxu0
    %1644 = vdwg.mxu0
    %v1646 = vsel %vm1125, %v1591, 0
    %v1649 = vsel %vm1601, %v1118, 0
    %1651 = vmatprep.subr.bf16.mxu0 0
    %1652 = vmatpush1.bf16.msra.mxu0 %v1649
    %1653 = vmatprep.subr.bf16.mxu0 0
    %1654 = vmatpush1.bf16.msra.mxu0 0
    %1655 = vmatprep.subr.bf16.mxu0 0
    %1656 = vmatpush1.bf16.msra.mxu0 0
    %1657 = vmatprep.subr.bf16.mxu0 0
    %1658 = vmatpush1.bf16.msra.mxu0 0
    %1659 = vmatprep.subr.bf16.mxu0 0
    %1660 = vmatpush1.bf16.msra.mxu0 0
    %1661 = vmatprep.subr.bf16.mxu0 0
    %1662 = vmatpush1.bf16.msra.mxu0 0
    %1663 = vmatprep.subr.bf16.mxu0 0
    %1664 = vmatpush1.bf16.msra.mxu0 0
    %1665 = vmatprep.subr.bf16.mxu0 0
    %1666 = vmatpush1.bf16.msra.mxu0 0
    %1667 = vmatprep.subr.bf16.mxu0 0
    %1668 = vmatpush1.bf16.msra.mxu0 0
    %1669 = vmatprep.subr.bf16.mxu0 0
    %1670 = vmatpush1.bf16.msra.mxu0 0
    %1671 = vmatprep.subr.bf16.mxu0 0
    %1672 = vmatpush1.bf16.msra.mxu0 0
    %1673 = vmatprep.subr.bf16.mxu0 0
    %1674 = vmatpush1.bf16.msra.mxu0 0
    %1675 = vmatprep.subr.bf16.mxu0 0
    %1676 = vmatpush1.bf16.msra.mxu0 0
    %1677 = vmatprep.subr.bf16.mxu0 0
    %1678 = vmatpush1.bf16.msra.mxu0 0
    %1679 = vmatprep.subr.bf16.mxu0 0
    %1680 = vmatpush1.bf16.msra.mxu0 0
    %1681 = vmatprep.subr.bf16.mxu0 0
    %1682 = vmatpush1.bf16.msra.mxu0 0
    %1683 = vmatprep.mubr.bf16.mxu0 0
    %1684 = vmatmul.mubr.bf16.gmra.mrb[0].mxu0 %v1646
    %v1685 = vpop.f32.mrb[0].mxu0
    %v1686 = vadd.f32 0.0, %v1685
    %v1687 = vpop.f32.mrb[0].mxu0
    %v1688 = vpop.f32.mrb[0].mxu0
    %v1689 = vpop.f32.mrb[0].mxu0
    %1690 = vdwg.mxu0
    %v1692 = vsel %vm1125, %v1592, 0
    %v1695 = vsel %vm1601, %v1119, 0
    %1697 = vmatprep.subr.bf16.mxu0 0
    %1698 = vmatpush1.bf16.msra.mxu0 %v1695
    %1699 = vmatprep.subr.bf16.mxu0 0
    %1700 = vmatpush1.bf16.msra.mxu0 0
    %1701 = vmatprep.subr.bf16.mxu0 0
    %1702 = vmatpush1.bf16.msra.mxu0 0
    %1703 = vmatprep.subr.bf16.mxu0 0
    %1704 = vmatpush1.bf16.msra.mxu0 0
    %1705 = vmatprep.subr.bf16.mxu0 0
    %1706 = vmatpush1.bf16.msra.mxu0 0
    %1707 = vmatprep.subr.bf16.mxu0 0
    %1708 = vmatpush1.bf16.msra.mxu0 0
    %1709 = vmatprep.subr.bf16.mxu0 0
    %1710 = vmatpush1.bf16.msra.mxu0 0
    %1711 = vmatprep.subr.bf16.mxu0 0
    %1712 = vmatpush1.bf16.msra.mxu0 0
    %1713 = vmatprep.subr.bf16.mxu0 0
    %1714 = vmatpush1.bf16.msra.mxu0 0
    %1715 = vmatprep.subr.bf16.mxu0 0
    %1716 = vmatpush1.bf16.msra.mxu0 0
    %1717 = vmatprep.subr.bf16.mxu0 0
    %1718 = vmatpush1.bf16.msra.mxu0 0
    %1719 = vmatprep.subr.bf16.mxu0 0
    %1720 = vmatpush1.bf16.msra.mxu0 0
    %1721 = vmatprep.subr.bf16.mxu0 0
    %1722 = vmatpush1.bf16.msra.mxu0 0
    %1723 = vmatprep.subr.bf16.mxu0 0
    %1724 = vmatpush1.bf16.msra.mxu0 0
    %1725 = vmatprep.subr.bf16.mxu0 0
    %1726 = vmatpush1.bf16.msra.mxu0 0
    %1727 = vmatprep.subr.bf16.mxu0 0
    %1728 = vmatpush1.bf16.msra.mxu0 0
    %1729 = vmatprep.mubr.bf16.mxu0 0
    %1730 = vmatmul.mubr.bf16.gmra.mrb[0].mxu0 %v1692
    %v1731 = vpop.f32.mrb[0].mxu0
    %v1732 = vadd.f32 0.0, %v1731
    %v1733 = vpop.f32.mrb[0].mxu0
    %v1734 = vpop.f32.mrb[0].mxu0
    %v1735 = vpop.f32.mrb[0].mxu0
    %1736 = vdwg.mxu0
    %v1738 = vsel %vm1125, %v1593, 0
    %v1741 = vsel %vm1601, %v1120, 0
    %1743 = vmatprep.subr.bf16.mxu0 0
    %1744 = vmatpush1.bf16.msra.mxu0 %v1741
    %1745 = vmatprep.subr.bf16.mxu0 0
    %1746 = vmatpush1.bf16.msra.mxu0 0
    %1747 = vmatprep.subr.bf16.mxu0 0
    %1748 = vmatpush1.bf16.msra.mxu0 0
    %1749 = vmatprep.subr.bf16.mxu0 0
    %1750 = vmatpush1.bf16.msra.mxu0 0
    %1751 = vmatprep.subr.bf16.mxu0 0
    %1752 = vmatpush1.bf16.msra.mxu0 0
    %1753 = vmatprep.subr.bf16.mxu0 0
    %1754 = vmatpush1.bf16.msra.mxu0 0
    %1755 = vmatprep.subr.bf16.mxu0 0
    %1756 = vmatpush1.bf16.msra.mxu0 0
    %1757 = vmatprep.subr.bf16.mxu0 0
    %1758 = vmatpush1.bf16.msra.mxu0 0
    %1759 = vmatprep.subr.bf16.mxu0 0
    %1760 = vmatpush1.bf16.msra.mxu0 0
    %1761 = vmatprep.subr.bf16.mxu0 0
    %1762 = vmatpush1.bf16.msra.mxu0 0
    %1763 = vmatprep.subr.bf16.mxu0 0
    %1764 = vmatpush1.bf16.msra.mxu0 0
    %1765 = vmatprep.subr.bf16.mxu0 0
    %1766 = vmatpush1.bf16.msra.mxu0 0
    %1767 = vmatprep.subr.bf16.mxu0 0
    %1768 = vmatpush1.bf16.msra.mxu0 0
    %1769 = vmatprep.subr.bf16.mxu0 0
    %1770 = vmatpush1.bf16.msra.mxu0 0
    %1771 = vmatprep.subr.bf16.mxu0 0
    %1772 = vmatpush1.bf16.msra.mxu0 0
    %1773 = vmatprep.subr.bf16.mxu0 0
    %1774 = vmatpush1.bf16.msra.mxu0 0
    %1775 = vmatprep.mubr.bf16.mxu0 0
    %1776 = vmatmul.mubr.bf16.gmra.mrb[0].mxu0 %v1738
    %v1777 = vpop.f32.mrb[0].mxu0
    %v1778 = vadd.f32 0.0, %v1777
    %v1779 = vpop.f32.mrb[0].mxu0
    %v1780 = vpop.f32.mrb[0].mxu0
    %v1781 = vpop.f32.mrb[0].mxu0
    %1782 = vdwg.mxu0
    %v1784 = vsel %vm1125, %v1594, 0
    %v1787 = vsel %vm1601, %v1121, 0
    %1789 = vmatprep.subr.bf16.mxu0 0
    %1790 = vmatpush1.bf16.msra.mxu0 %v1787
    %1791 = vmatprep.subr.bf16.mxu0 0
    %1792 = vmatpush1.bf16.msra.mxu0 0
    %1793 = vmatprep.subr.bf16.mxu0 0
    %1794 = vmatpush1.bf16.msra.mxu0 0
    %1795 = vmatprep.subr.bf16.mxu0 0
    %1796 = vmatpush1.bf16.msra.mxu0 0
    %1797 = vmatprep.subr.bf16.mxu0 0
    %1798 = vmatpush1.bf16.msra.mxu0 0
    %1799 = vmatprep.subr.bf16.mxu0 0
    %1800 = vmatpush1.bf16.msra.mxu0 0
    %1801 = vmatprep.subr.bf16.mxu0 0
    %1802 = vmatpush1.bf16.msra.mxu0 0
    %1803 = vmatprep.subr.bf16.mxu0 0
    %1804 = vmatpush1.bf16.msra.mxu0 0
    %1805 = vmatprep.subr.bf16.mxu0 0
    %1806 = vmatpush1.bf16.msra.mxu0 0
    %1807 = vmatprep.subr.bf16.mxu0 0
    %1808 = vmatpush1.bf16.msra.mxu0 0
    %1809 = vmatprep.subr.bf16.mxu0 0
    %1810 = vmatpush1.bf16.msra.mxu0 0
    %1811 = vmatprep.subr.bf16.mxu0 0
    %1812 = vmatpush1.bf16.msra.mxu0 0
    %1813 = vmatprep.subr.bf16.mxu0 0
    %1814 = vmatpush1.bf16.msra.mxu0 0
    %1815 = vmatprep.subr.bf16.mxu0 0
    %1816 = vmatpush1.bf16.msra.mxu0 0
    %1817 = vmatprep.subr.bf16.mxu0 0
    %1818 = vmatpush1.bf16.msra.mxu0 0
    %1819 = vmatprep.subr.bf16.mxu0 0
    %1820 = vmatpush1.bf16.msra.mxu0 0
    %1821 = vmatprep.mubr.bf16.mxu0 0
    %1822 = vmatmul.mubr.bf16.gmra.mrb[0].mxu0 %v1784
    %v1823 = vpop.f32.mrb[0].mxu0
    %v1824 = vadd.f32 0.0, %v1823
    %v1825 = vpop.f32.mrb[0].mxu0
    %v1826 = vpop.f32.mrb[0].mxu0
    %v1827 = vpop.f32.mrb[0].mxu0
    %1828 = vdwg.mxu0
    %v1830 = vsel %vm1125, %v1595, 0
    %v1833 = vsel %vm1601, %v1122, 0
    %1835 = vmatprep.subr.bf16.mxu0 0
    %1836 = vmatpush1.bf16.msra.mxu0 %v1833
    %1837 = vmatprep.subr.bf16.mxu0 0
    %1838 = vmatpush1.bf16.msra.mxu0 0
    %1839 = vmatprep.subr.bf16.mxu0 0
    %1840 = vmatpush1.bf16.msra.mxu0 0
    %1841 = vmatprep.subr.bf16.mxu0 0
    %1842 = vmatpush1.bf16.msra.mxu0 0
    %1843 = vmatprep.subr.bf16.mxu0 0
    %1844 = vmatpush1.bf16.msra.mxu0 0
    %1845 = vmatprep.subr.bf16.mxu0 0
    %1846 = vmatpush1.bf16.msra.mxu0 0
    %1847 = vmatprep.subr.bf16.mxu0 0
    %1848 = vmatpush1.bf16.msra.mxu0 0
    %1849 = vmatprep.subr.bf16.mxu0 0
    %1850 = vmatpush1.bf16.msra.mxu0 0
    %1851 = vmatprep.subr.bf16.mxu0 0
    %1852 = vmatpush1.bf16.msra.mxu0 0
    %1853 = vmatprep.subr.bf16.mxu0 0
    %1854 = vmatpush1.bf16.msra.mxu0 0
    %1855 = vmatprep.subr.bf16.mxu0 0
    %1856 = vmatpush1.bf16.msra.mxu0 0
    %1857 = vmatprep.subr.bf16.mxu0 0
    %1858 = vmatpush1.bf16.msra.mxu0 0
    %1859 = vmatprep.subr.bf16.mxu0 0
    %1860 = vmatpush1.bf16.msra.mxu0 0
    %1861 = vmatprep.subr.bf16.mxu0 0
    %1862 = vmatpush1.bf16.msra.mxu0 0
    %1863 = vmatprep.subr.bf16.mxu0 0
    %1864 = vmatpush1.bf16.msra.mxu0 0
    %1865 = vmatprep.subr.bf16.mxu0 0
    %1866 = vmatpush1.bf16.msra.mxu0 0
    %1867 = vmatprep.mubr.bf16.mxu0 0
    %1868 = vmatmul.mubr.bf16.gmra.mrb[0].mxu0 %v1830
    %v1869 = vpop.f32.mrb[0].mxu0
    %v1870 = vadd.f32 0.0, %v1869
    %v1871 = vpop.f32.mrb[0].mxu0
    %v1872 = vpop.f32.mrb[0].mxu0
    %v1873 = vpop.f32.mrb[0].mxu0
    %1874 = vdwg.mxu0
    %v1876 = vsel %vm1125, %v1596, 0
    %v1879 = vsel %vm1601, %v1123, 0
    %1881 = vmatprep.subr.bf16.mxu0 0
    %1882 = vmatpush1.bf16.msra.mxu0 %v1879
    %1883 = vmatprep.subr.bf16.mxu0 0
    %1884 = vmatpush1.bf16.msra.mxu0 0
    %1885 = vmatprep.subr.bf16.mxu0 0
    %1886 = vmatpush1.bf16.msra.mxu0 0
    %1887 = vmatprep.subr.bf16.mxu0 0
    %1888 = vmatpush1.bf16.msra.mxu0 0
    %1889 = vmatprep.subr.bf16.mxu0 0
    %1890 = vmatpush1.bf16.msra.mxu0 0
    %1891 = vmatprep.subr.bf16.mxu0 0
    %1892 = vmatpush1.bf16.msra.mxu0 0
    %1893 = vmatprep.subr.bf16.mxu0 0
    %1894 = vmatpush1.bf16.msra.mxu0 0
    %1895 = vmatprep.subr.bf16.mxu0 0
    %1896 = vmatpush1.bf16.msra.mxu0 0
    %1897 = vmatprep.subr.bf16.mxu0 0
    %1898 = vmatpush1.bf16.msra.mxu0 0
    %1899 = vmatprep.subr.bf16.mxu0 0
    %1900 = vmatpush1.bf16.msra.mxu0 0
    %1901 = vmatprep.subr.bf16.mxu0 0
    %1902 = vmatpush1.bf16.msra.mxu0 0
    %1903 = vmatprep.subr.bf16.mxu0 0
    %1904 = vmatpush1.bf16.msra.mxu0 0
    %1905 = vmatprep.subr.bf16.mxu0 0
    %1906 = vmatpush1.bf16.msra.mxu0 0
    %1907 = vmatprep.subr.bf16.mxu0 0
    %1908 = vmatpush1.bf16.msra.mxu0 0
    %1909 = vmatprep.subr.bf16.mxu0 0
    %1910 = vmatpush1.bf16.msra.mxu0 0
    %1911 = vmatprep.subr.bf16.mxu0 0
    %1912 = vmatpush1.bf16.msra.mxu0 0
    %1913 = vmatprep.mubr.bf16.mxu0 0
    %1914 = vmatmul.mubr.bf16.gmra.mrb[0].mxu0 %v1876
    %v1915 = vpop.f32.mrb[0].mxu0
    %v1916 = vadd.f32 0.0, %v1915
    %v1917 = vpop.f32.mrb[0].mxu0
    %v1918 = vpop.f32.mrb[0].mxu0
    %v1919 = vpop.f32.mrb[0].mxu0
    %1920 = vdwg.mxu0
    %v1922 = vsel %vm1125, %v1597, 0
    %v1925 = vsel %vm1601, %v1124, 0
    %1927 = vmatprep.subr.bf16.mxu0 0
    %1928 = vmatpush1.bf16.msra.mxu0 %v1925
    %1929 = vmatprep.subr.bf16.mxu0 0
    %1930 = vmatpush1.bf16.msra.mxu0 0
    %1931 = vmatprep.subr.bf16.mxu0 0
    %1932 = vmatpush1.bf16.msra.mxu0 0
    %1933 = vmatprep.subr.bf16.mxu0 0
    %1934 = vmatpush1.bf16.msra.mxu0 0
    %1935 = vmatprep.subr.bf16.mxu0 0
    %1936 = vmatpush1.bf16.msra.mxu0 0
    %1937 = vmatprep.subr.bf16.mxu0 0
    %1938 = vmatpush1.bf16.msra.mxu0 0
    %1939 = vmatprep.subr.bf16.mxu0 0
    %1940 = vmatpush1.bf16.msra.mxu0 0
    %1941 = vmatprep.subr.bf16.mxu0 0
    %1942 = vmatpush1.bf16.msra.mxu0 0
    %1943 = vmatprep.subr.bf16.mxu0 0
    %1944 = vmatpush1.bf16.msra.mxu0 0
    %1945 = vmatprep.subr.bf16.mxu0 0
    %1946 = vmatpush1.bf16.msra.mxu0 0
    %1947 = vmatprep.subr.bf16.mxu0 0
    %1948 = vmatpush1.bf16.msra.mxu0 0
    %1949 = vmatprep.subr.bf16.mxu0 0
    %1950 = vmatpush1.bf16.msra.mxu0 0
    %1951 = vmatprep.subr.bf16.mxu0 0
    %1952 = vmatpush1.bf16.msra.mxu0 0
    %1953 = vmatprep.subr.bf16.mxu0 0
    %1954 = vmatpush1.bf16.msra.mxu0 0
    %1955 = vmatprep.subr.bf16.mxu0 0
    %1956 = vmatpush1.bf16.msra.mxu0 0
    %1957 = vmatprep.subr.bf16.mxu0 0
    %1958 = vmatpush1.bf16.msra.mxu0 0
    %1959 = vmatprep.mubr.bf16.mxu0 0
    %1960 = vmatmul.mubr.bf16.gmra.mrb[0].mxu0 %v1922
    %v1961 = vpop.f32.mrb[0].mxu0
    %v1962 = vadd.f32 0.0, %v1961
    %v1963 = vpop.f32.mrb[0].mxu0
    %v1964 = vpop.f32.mrb[0].mxu0
    %v1965 = vpop.f32.mrb[0].mxu0
    %1966 = vdwg.mxu0
    %v1967 = vpack.c.bf16 %v1824, %v1640
    %v1968 = vld [vmem:[%s5] sm:$0xf]
    %v1969 = vpack.c.bf16 %v1870, %v1686
    %s1970 = scalar_lea.vmem %s5, 4
    %v1971 = vld [vmem:[%s1970] sm:$0xf]
    %v1973 = vsel %vm1125, %v1969, 0
    %v1976 = vsel %vm1601, %v1971, 0
    %1978 = vmatprep.subr.bf16.mxu0 0
    %1979 = vmatpush1.bf16.msra.mxu0 %v1976
    %1980 = vmatprep.subr.bf16.mxu0 0
    %1981 = vmatpush1.bf16.msra.mxu0 0
    %1982 = vmatprep.subr.bf16.mxu0 0
    %1983 = vmatpush1.bf16.msra.mxu0 0
    %1984 = vmatprep.subr.bf16.mxu0 0
    %1985 = vmatpush1.bf16.msra.mxu0 0
    %1986 = vmatprep.subr.bf16.mxu0 0
    %1987 = vmatpush1.bf16.msra.mxu0 0
    %1988 = vmatprep.subr.bf16.mxu0 0
    %1989 = vmatpush1.bf16.msra.mxu0 0
    %1990 = vmatprep.subr.bf16.mxu0 0
    %1991 = vmatpush1.bf16.msra.mxu0 0
    %1992 = vmatprep.subr.bf16.mxu0 0
    %1993 = vmatpush1.bf16.msra.mxu0 0
    %1994 = vmatprep.subr.bf16.mxu0 0
    %1995 = vmatpush1.bf16.msra.mxu0 0
    %1996 = vmatprep.subr.bf16.mxu0 0
    %1997 = vmatpush1.bf16.msra.mxu0 0
    %1998 = vmatprep.subr.bf16.mxu0 0
    %1999 = vmatpush1.bf16.msra.mxu0 0
    %2000 = vmatprep.subr.bf16.mxu0 0
    %2001 = vmatpush1.bf16.msra.mxu0 0
    %2002 = vmatprep.subr.bf16.mxu0 0
    %2003 = vmatpush1.bf16.msra.mxu0 0
    %2004 = vmatprep.subr.bf16.mxu0 0
    %2005 = vmatpush1.bf16.msra.mxu0 0
    %2006 = vmatprep.subr.bf16.mxu0 0
    %2007 = vmatpush1.bf16.msra.mxu0 0
    %2008 = vmatprep.subr.bf16.mxu0 0
    %2009 = vmatpush1.bf16.msra.mxu0 0
    %2010 = vmatprep.mubr.bf16.mxu0 0
    %2011 = vmatmul.mubr.bf16.gmra.mrb[0].mxu0 %v1973
    %v2012 = vpop.f32.mrb[0].mxu0
    %v2013 = vadd.f32 0.0, %v2012
    %v2014 = vpop.f32.mrb[0].mxu0
    %v2015 = vpop.f32.mrb[0].mxu0
    %v2016 = vadd.f32 0.0, %v2015
    %v2017 = vpop.f32.mrb[0].mxu0
    %2018 = vdwg.mxu0
    %v2020 = vsel %vm1125, %v1967, 0
    %v2023 = vsel %vm1601, %v1968, 0
    %2025 = vmatprep.subr.bf16.mxu0 0
    %2026 = vmatpush1.bf16.msra.mxu0 %v2023
    %2027 = vmatprep.subr.bf16.mxu0 0
    %2028 = vmatpush1.bf16.msra.mxu0 0
    %2029 = vmatprep.subr.bf16.mxu0 0
    %2030 = vmatpush1.bf16.msra.mxu0 0
    %2031 = vmatprep.subr.bf16.mxu0 0
    %2032 = vmatpush1.bf16.msra.mxu0 0
    %2033 = vmatprep.subr.bf16.mxu0 0
    %2034 = vmatpush1.bf16.msra.mxu0 0
    %2035 = vmatprep.subr.bf16.mxu0 0
    %2036 = vmatpush1.bf16.msra.mxu0 0
    %2037 = vmatprep.subr.bf16.mxu0 0
    %2038 = vmatpush1.bf16.msra.mxu0 0
    %2039 = vmatprep.subr.bf16.mxu0 0
    %2040 = vmatpush1.bf16.msra.mxu0 0
    %2041 = vmatprep.subr.bf16.mxu0 0
    %2042 = vmatpush1.bf16.msra.mxu0 0
    %2043 = vmatprep.subr.bf16.mxu0 0
    %2044 = vmatpush1.bf16.msra.mxu0 0
    %2045 = vmatprep.subr.bf16.mxu0 0
    %2046 = vmatpush1.bf16.msra.mxu0 0
    %2047 = vmatprep.subr.bf16.mxu0 0
    %2048 = vmatpush1.bf16.msra.mxu0 0
    %2049 = vmatprep.subr.bf16.mxu0 0
    %2050 = vmatpush1.bf16.msra.mxu0 0
    %2051 = vmatprep.subr.bf16.mxu0 0
    %2052 = vmatpush1.bf16.msra.mxu0 0
    %2053 = vmatprep.subr.bf16.mxu0 0
    %2054 = vmatpush1.bf16.msra.mxu0 0
    %2055 = vmatprep.subr.bf16.mxu0 0
    %2056 = vmatpush1.bf16.msra.mxu0 0
    %2057 = vmatprep.mubr.bf16.mxu0 0
    %2058 = vmatmul.mubr.bf16.gmra.mrb[0].mxu0 %v2020
    %v2059 = vpop.f32.mrb[0].mxu0
    %v2060 = vadd.f32 %v2013, %v2059
    %v2061 = vpop.f32.mrb[0].mxu0
    %v2062 = vpop.f32.mrb[0].mxu0
    %v2063 = vadd.f32 %v2016, %v2062
    %v2064 = vpop.f32.mrb[0].mxu0
    %2065 = vdwg.mxu0
    %v2066 = vpack.c.bf16 %v1916, %v1732
    %s2067 = scalar_lea.vmem %s5, 8
    %v2068 = vld [vmem:[%s2067] sm:$0xf]
    %v2070 = vsel %vm1125, %v2066, 0
    %v2073 = vsel %vm1601, %v2068, 0
    %2075 = vmatprep.subr.bf16.mxu0 0
    %2076 = vmatpush1.bf16.msra.mxu0 %v2073
    %2077 = vmatprep.subr.bf16.mxu0 0
    %2078 = vmatpush1.bf16.msra.mxu0 0
    %2079 = vmatprep.subr.bf16.mxu0 0
    %2080 = vmatpush1.bf16.msra.mxu0 0
    %2081 = vmatprep.subr.bf16.mxu0 0
    %2082 = vmatpush1.bf16.msra.mxu0 0
    %2083 = vmatprep.subr.bf16.mxu0 0
    %2084 = vmatpush1.bf16.msra.mxu0 0
    %2085 = vmatprep.subr.bf16.mxu0 0
    %2086 = vmatpush1.bf16.msra.mxu0 0
    %2087 = vmatprep.subr.bf16.mxu0 0
    %2088 = vmatpush1.bf16.msra.mxu0 0
    %2089 = vmatprep.subr.bf16.mxu0 0
    %2090 = vmatpush1.bf16.msra.mxu0 0
    %2091 = vmatprep.subr.bf16.mxu0 0
    %2092 = vmatpush1.bf16.msra.mxu0 0
    %2093 = vmatprep.subr.bf16.mxu0 0
    %2094 = vmatpush1.bf16.msra.mxu0 0
    %2095 = vmatprep.subr.bf16.mxu0 0
    %2096 = vmatpush1.bf16.msra.mxu0 0
    %2097 = vmatprep.subr.bf16.mxu0 0
    %2098 = vmatpush1.bf16.msra.mxu0 0
    %2099 = vmatprep.subr.bf16.mxu0 0
    %2100 = vmatpush1.bf16.msra.mxu0 0
    %2101 = vmatprep.subr.bf16.mxu0 0
    %2102 = vmatpush1.bf16.msra.mxu0 0
    %2103 = vmatprep.subr.bf16.mxu0 0
    %2104 = vmatpush1.bf16.msra.mxu0 0
    %2105 = vmatprep.subr.bf16.mxu0 0
    %2106 = vmatpush1.bf16.msra.mxu0 0
    %2107 = vmatprep.mubr.bf16.mxu0 0
    %2108 = vmatmul.mubr.bf16.gmra.mrb[0].mxu0 %v2070
    %v2109 = vpop.f32.mrb[0].mxu0
    %v2110 = vadd.f32 0.0, %v2109
    %v2111 = vpop.f32.mrb[0].mxu0
    %v2112 = vpop.f32.mrb[0].mxu0
    %v2113 = vadd.f32 0.0, %v2112
    %v2114 = vpop.f32.mrb[0].mxu0
    %2115 = vdwg.mxu0
    %v2116 = vadd.f32 %v2060, %v2110
    %v2117 = vadd.f32 %v2063, %v2113
    %v2118 = vpack.c.bf16 %v1962, %v1778
    %s2119 = scalar_lea.vmem %s5, 12
    %v2120 = vld [vmem:[%s2119] sm:$0xf]
    %v2122 = vsel %vm1125, %v2118, 0
    %v2125 = vsel %vm1601, %v2120, 0
    %2127 = vmatprep.subr.bf16.mxu0 0
    %2128 = vmatpush1.bf16.msra.mxu0 %v2125
    %2129 = vmatprep.subr.bf16.mxu0 0
    %2130 = vmatpush1.bf16.msra.mxu0 0
    %2131 = vmatprep.subr.bf16.mxu0 0
    %2132 = vmatpush1.bf16.msra.mxu0 0
    %2133 = vmatprep.subr.bf16.mxu0 0
    %2134 = vmatpush1.bf16.msra.mxu0 0
    %2135 = vmatprep.subr.bf16.mxu0 0
    %2136 = vmatpush1.bf16.msra.mxu0 0
    %2137 = vmatprep.subr.bf16.mxu0 0
    %2138 = vmatpush1.bf16.msra.mxu0 0
    %2139 = vmatprep.subr.bf16.mxu0 0
    %2140 = vmatpush1.bf16.msra.mxu0 0
    %2141 = vmatprep.subr.bf16.mxu0 0
    %2142 = vmatpush1.bf16.msra.mxu0 0
    %2143 = vmatprep.subr.bf16.mxu0 0
    %2144 = vmatpush1.bf16.msra.mxu0 0
    %2145 = vmatprep.subr.bf16.mxu0 0
    %2146 = vmatpush1.bf16.msra.mxu0 0
    %2147 = vmatprep.subr.bf16.mxu0 0
    %2148 = vmatpush1.bf16.msra.mxu0 0
    %2149 = vmatprep.subr.bf16.mxu0 0
    %2150 = vmatpush1.bf16.msra.mxu0 0
    %2151 = vmatprep.subr.bf16.mxu0 0
    %2152 = vmatpush1.bf16.msra.mxu0 0
    %2153 = vmatprep.subr.bf16.mxu0 0
    %2154 = vmatpush1.bf16.msra.mxu0 0
    %2155 = vmatprep.subr.bf16.mxu0 0
    %2156 = vmatpush1.bf16.msra.mxu0 0
    %2157 = vmatprep.subr.bf16.mxu0 0
    %2158 = vmatpush1.bf16.msra.mxu0 0
    %2159 = vmatprep.mubr.bf16.mxu0 0
    %2160 = vmatmul.mubr.bf16.gmra.mrb[0].mxu0 %v2122
    %v2161 = vpop.f32.mrb[0].mxu0
    %v2162 = vadd.f32 0.0, %v2161
    %v2163 = vpop.f32.mrb[0].mxu0
    %v2164 = vpop.f32.mrb[0].mxu0
    %v2165 = vadd.f32 0.0, %v2164
    %v2166 = vpop.f32.mrb[0].mxu0
    %2167 = vdwg.mxu0
    %v2168 = vadd.f32 %v2116, %v2162
    %v2169 = vadd.f32 %v2117, %v2165
    %v2170 = vld [vmem:[#allocation5] sm:$0x1]
    %v2172 = vlaneseq
    %v2173 = vshrl.u32 %v2172, 7
    %v2174 = vsub.s32 0, %v2173
    %v2175 = vrot.slane %v2170, %v2174
    %v2177 = vadd.f32 %v2168, %v2175
    %v2178 = vadd.f32 %v2169, %v2175
    %v2179 = vadd.f32 %v2177, %v96
    %v2180 = vadd.f32 %v2178, %v97
    %v2181 = vld [vmem:[#allocation7] sm:$0x1]
    %v2182 = vld [vmem:[#allocation8] sm:$0x1]
    %v2183 = vsel %vm100, %v2179, 0.0
    %2184 = vadd.xlane.f32.xlu0 %v2183
    %v2185 = vpop.xlane.xlu0 %2184
    %v2186 = vsel %vm100, %v2180, 0.0
    %2187 = vadd.xlane.f32.xlu0 %v2186
    %v2188 = vpop.xlane.xlu0 %2187
    %v2189 = vmul.f32 %v2179, %v2179
    %v2190 = vmul.f32 %v2180, %v2180
    %v2191 = vsel %vm100, %v2189, 0.0
    %2192 = vadd.xlane.f32.xlu0 %v2191
    %v2193 = vpop.xlane.xlu0 %2192
    %v2194 = vsel %vm100, %v2190, 0.0
    %2195 = vadd.xlane.f32.xlu0 %v2194
    %v2196 = vpop.xlane.xlu0 %2195
    %v2197 = vmul.f32 %v2185, 0.03125
    %v2198 = vmul.f32 %v2188, 0.03125
    %v2199 = vmul.f32 %v2193, 0.03125
    %v2200 = vmul.f32 %v2196, 0.03125
    %v2201 = vmul.f32 %v2197, %v2197
    %v2202 = vmul.f32 %v2198, %v2198
    %v2203 = vsub.f32 %v2199, %v2201
    %v2204 = vsub.f32 %v2200, %v2202
    %v2205 = vmax.f32 %v2203, 0.0
    %v2206 = vmax.f32 %v2204, 0.0
    %v2207 = vsub.f32 %v2179, %v2197
    %v2208 = vsub.f32 %v2180, %v2198
    %v2209 = vadd.f32 %v2205, 1e-06
    %v2210 = vadd.f32 %v2206, 1e-06
    %v2211 = vrsqrt.pop %v2209
    %v2212 = vrsqrt.pop %v2210
    %v2213 = vmul.f32 %v2207, %v2211
    %v2214 = vmul.f32 %v2208, %v2212
    %v2216 = vlaneseq
    %v2217 = vshrl.u32 %v2216, 7
    %v2218 = vsub.s32 0, %v2217
    %v2219 = vrot.slane %v2181, %v2218
    %v2221 = vmul.f32 %v2213, %v2219
    %v2222 = vmul.f32 %v2214, %v2219
    %v2224 = vlaneseq
    %v2225 = vshrl.u32 %v2224, 7
    %v2226 = vsub.s32 0, %v2225
    %v2227 = vrot.slane %v2182, %v2226
    %v2229 = vadd.f32 %v2221, %v2227
    %v2230 = vadd.f32 %v2222, %v2227
    %v2231 = vpack.c.bf16 %v2230, %v2229
    %v2232 = vld [vmem:[%s9] sm:$0xf]
    %v2233 = vld [vmem:[%s9 + $0x4] sm:$0xf]
    %v2234 = vld [vmem:[%s9 + $0x8] sm:$0xf]
    %v2235 = vld [vmem:[%s9 + $0xc] sm:$0xf]
    %v2236 = vld [vmem:[%s10] sm:$0x1]
    %v2238 = vlaneseq
    %v2239 = vshrl.u32 %v2238, 7
    %v2240 = vsub.s32 0, %v2239
    %v2241 = vrot.slane %v2236, %v2240
    %v2247 = vunpack.c.l.b16 %v2232
    %v2248 = vunpack.c.l.b16 %v2233
    %v2249 = vunpack.c.l.b16 %v2234
    %v2250 = vunpack.c.l.b16 %v2235
    %v2251 = vpack.c.b16 %v2248, %v2247
    %v2252 = vpack.c.b16 %v2250, %v2249
    %v2256 = vsel %vm100, %v2231, 0
    %2258 = vmatprep.subr.bf16.mxu0 0
    %2259 = vmatpush1.bf16.msra.mxu0 %v2251
    %2260 = vmatprep.subr.bf16.mxu0 0
    %2261 = vmatpush1.bf16.msra.mxu0 %v2252
    %2262 = vmatprep.subr.bf16.mxu0 0
    %2263 = vmatpush1.bf16.msra.mxu0 0
    %2264 = vmatprep.subr.bf16.mxu0 0
    %2265 = vmatpush1.bf16.msra.mxu0 0
    %2266 = vmatprep.subr.bf16.mxu0 0
    %2267 = vmatpush1.bf16.msra.mxu0 0
    %2268 = vmatprep.subr.bf16.mxu0 0
    %2269 = vmatpush1.bf16.msra.mxu0 0
    %2270 = vmatprep.subr.bf16.mxu0 0
    %2271 = vmatpush1.bf16.msra.mxu0 0
    %2272 = vmatprep.subr.bf16.mxu0 0
    %2273 = vmatpush1.bf16.msra.mxu0 0
    %2274 = vmatprep.subr.bf16.mxu0 0
    %2275 = vmatpush1.bf16.msra.mxu0 0
    %2276 = vmatprep.subr.bf16.mxu0 0
    %2277 = vmatpush1.bf16.msra.mxu0 0
    %2278 = vmatprep.subr.bf16.mxu0 0
    %2279 = vmatpush1.bf16.msra.mxu0 0
    %2280 = vmatprep.subr.bf16.mxu0 0
    %2281 = vmatpush1.bf16.msra.mxu0 0
    %2282 = vmatprep.subr.bf16.mxu0 0
    %2283 = vmatpush1.bf16.msra.mxu0 0
    %2284 = vmatprep.subr.bf16.mxu0 0
    %2285 = vmatpush1.bf16.msra.mxu0 0
    %2286 = vmatprep.subr.bf16.mxu0 0
    %2287 = vmatpush1.bf16.msra.mxu0 0
    %2288 = vmatprep.subr.bf16.mxu0 0
    %2289 = vmatpush1.bf16.msra.mxu0 0
    %2290 = vmatprep.mubr.bf16.mxu0 0
    %2291 = vmatmul.mubr.bf16.gmra.mrb[0].mxu0 %v2256
    %v2292 = vpop.f32.mrb[0].mxu0
    %v2293 = vadd.f32 %v2241, %v2292
    %v2294 = vpop.f32.mrb[0].mxu0
    %v2295 = vpop.f32.mrb[0].mxu0
    %v2296 = vadd.f32 %v2241, %v2295
    %v2297 = vpop.f32.mrb[0].mxu0
    %2298 = vdwg.mxu0
    %v2299 = vmul.f32 %v2293, 0.5
    %v2300 = vmul.f32 %v2296, 0.5
    %v2301 = vmul.f32 %v2293, 0.70710677
    %v2302 = vmul.f32 %v2296, 0.70710677
    %vm2303 = vcmp.ge.f32.partialorder %v2301, 0.0
    %vm2304 = vcmp.ge.f32.partialorder %v2302, 0.0
    %v2305 = vsel %vm2303, 1.0, -1.0
    %v2306 = vsel %vm2304, 1.0, -1.0
    %v2307 = vand.u32 2147483647, %v2301
    %v2308 = vand.u32 2147483647, %v2302
    %v2309 = vmul.f32 %v2307, 0.3275911
    %v2310 = vmul.f32 %v2308, 0.3275911
    %v2311 = vadd.f32 %v2309, 1.0
    %v2312 = vadd.f32 %v2310, 1.0
    %v2313 = vrcp.pop %v2311
    %v2314 = vmul.f32 1.0, %v2313
    %v2315 = vrcp.pop %v2312
    %v2316 = vmul.f32 1.0, %v2315
    %v2317 = vmul.f32 %v2314, 1.0614054
    %v2318 = vmul.f32 %v2316, 1.0614054
    %v2319 = vadd.f32 %v2317, -1.4531521
    %v2320 = vadd.f32 %v2318, -1.4531521
    %v2321 = vmul.f32 %v2319, %v2314
    %v2322 = vmul.f32 %v2320, %v2316
    %v2323 = vadd.f32 %v2321, 1.4214138
    %v2324 = vadd.f32 %v2322, 1.4214138
    %v2325 = vmul.f32 %v2323, %v2314
    %v2326 = vmul.f32 %v2324, %v2316
    %v2327 = vadd.f32 %v2325, -0.28449672
    %v2328 = vadd.f32 %v2326, -0.28449672
    %v2329 = vmul.f32 %v2327, %v2314
    %v2330 = vmul.f32 %v2328, %v2316
    %v2331 = vadd.f32 %v2329, 0.2548296
    %v2332 = vadd.f32 %v2330, 0.2548296
    %v2333 = vmul.f32 %v2331, %v2314
    %v2334 = vmul.f32 %v2332, %v2316
    %v2335 = vsub.f32 0.0, %v2307
    %v2336 = vsub.f32 0.0, %v2308
    %v2337 = vmul.f32 %v2335, %v2307
    %v2338 = vmul.f32 %v2336, %v2308
    %v2339 = vmul.f32 %v2337, 1.442695
    %v2340 = vpow.pop %v2339
    %v2341 = vmul.f32 %v2338, 1.442695
    %v2342 = vpow.pop %v2341
    %v2343 = vmul.f32 %v2333, %v2340
    %v2344 = vmul.f32 %v2334, %v2342
    %v2345 = vsub.f32 1.0, %v2343
    %v2346 = vsub.f32 1.0, %v2344
    %v2347 = vmul.f32 %v2305, %v2345
    %v2348 = vmul.f32 %v2306, %v2346
    %v2349 = vadd.f32 %v2347, 1.0
    %v2350 = vadd.f32 %v2348, 1.0
    %v2351 = vmul.f32 %v2299, %v2349
    %v2352 = vmul.f32 %v2300, %v2350
    %v2353 = vpack.c.bf16 %v2352, %v2351
    %v2354 = vld [vmem:[%s11] sm:$0xf]
    %v2355 = vld [vmem:[%s11 + $0x4] sm:$0xf]
    %v2356 = vld [vmem:[%s11 + $0x8] sm:$0xf]
    %v2357 = vld [vmem:[%s11 + $0xc] sm:$0xf]
    %v2358 = vld [vmem:[%s11 + $0x10] sm:$0xf]
    %v2359 = vld [vmem:[%s11 + $0x14] sm:$0xf]
    %v2360 = vld [vmem:[%s11 + $0x18] sm:$0xf]
    %v2361 = vld [vmem:[%s11 + $0x1c] sm:$0xf]
    %v2362 = vld [vmem:[%s12] sm:$0x1]
    %v2364 = vlaneseq
    %v2365 = vshrl.u32 %v2364, 7
    %v2366 = vsub.s32 0, %v2365
    %v2367 = vrot.slane %v2362, %v2366
    %v2377 = vunpack.c.l.b16 %v2354
    %v2378 = vunpack.c.l.b16 %v2355
    %v2379 = vunpack.c.l.b16 %v2356
    %v2380 = vunpack.c.l.b16 %v2357
    %v2381 = vunpack.c.l.b16 %v2358
    %v2382 = vunpack.c.l.b16 %v2359
    %v2383 = vunpack.c.l.b16 %v2360
    %v2384 = vunpack.c.l.b16 %v2361
    %v2385 = vpack.c.b16 %v2378, %v2377
    %v2386 = vpack.c.b16 %v2380, %v2379
    %v2387 = vpack.c.b16 %v2382, %v2381
    %v2388 = vpack.c.b16 %v2384, %v2383
    %vm2393 = vcmask 523264
    %v2395 = vsel %vm2393, %v2353, 0
    %2397 = vmatprep.subr.bf16.mxu0 0
    %2398 = vmatpush1.bf16.msra.mxu0 %v2385
    %2399 = vmatprep.subr.bf16.mxu0 0
    %2400 = vmatpush1.bf16.msra.mxu0 %v2386
    %2401 = vmatprep.subr.bf16.mxu0 0
    %2402 = vmatpush1.bf16.msra.mxu0 %v2387
    %2403 = vmatprep.subr.bf16.mxu0 0
    %2404 = vmatpush1.bf16.msra.mxu0 %v2388
    %2405 = vmatprep.subr.bf16.mxu0 0
    %2406 = vmatpush1.bf16.msra.mxu0 0
    %2407 = vmatprep.subr.bf16.mxu0 0
    %2408 = vmatpush1.bf16.msra.mxu0 0
    %2409 = vmatprep.subr.bf16.mxu0 0
    %2410 = vmatpush1.bf16.msra.mxu0 0
    %2411 = vmatprep.subr.bf16.mxu0 0
    %2412 = vmatpush1.bf16.msra.mxu0 0
    %2413 = vmatprep.subr.bf16.mxu0 0
    %2414 = vmatpush1.bf16.msra.mxu0 0
    %2415 = vmatprep.subr.bf16.mxu0 0
    %2416 = vmatpush1.bf16.msra.mxu0 0
    %2417 = vmatprep.subr.bf16.mxu0 0
    %2418 = vmatpush1.bf16.msra.mxu0 0
    %2419 = vmatprep.subr.bf16.mxu0 0
    %2420 = vmatpush1.bf16.msra.mxu0 0
    %2421 = vmatprep.subr.bf16.mxu0 0
    %2422 = vmatpush1.bf16.msra.mxu0 0
    %2423 = vmatprep.subr.bf16.mxu0 0
    %2424 = vmatpush1.bf16.msra.mxu0 0
    %2425 = vmatprep.subr.bf16.mxu0 0
    %2426 = vmatpush1.bf16.msra.mxu0 0
    %2427 = vmatprep.subr.bf16.mxu0 0
    %2428 = vmatpush1.bf16.msra.mxu0 0
    %2429 = vmatprep.mubr.bf16.mxu0 0
    %2430 = vmatmul.mubr.bf16.gmra.mrb[0].mxu0 %v2395
    %v2431 = vpop.f32.mrb[0].mxu0
    %v2432 = vadd.f32 %v2367, %v2431
    %v2433 = vpop.f32.mrb[0].mxu0
    %v2434 = vpop.f32.mrb[0].mxu0
    %v2435 = vadd.f32 %v2367, %v2434
    %v2436 = vpop.f32.mrb[0].mxu0
    %2437 = vdwg.mxu0
    %v2438 = vadd.f32 %v2432, %v2179
    %v2439 = vadd.f32 %v2435, %v2180
    %2440 = vst.msk [vmem:[#allocation10] sm:$0xff] %vm100, %v2438
    %2441 = vst.msk [vmem:[#allocation10 + $0x8] sm:$0xff] %vm100, %v2439
    // Predicated region
    $region70: #{tpu_custom_call.1} parent=1 // pred_check
      _
    $region71: #{tpu_custom_call.1} parent=1 // pred_check_branch
      %2443 = sbr.rel (0) target = $region73
    $region72: #{tpu_custom_call.1} parent=1 // pred_region
      %s2445 = ssub.s32 256, 256
      %2446 = vsyncadd [#allocation4], %s2445
      %s2447 = sshll.u32 [#allocation10], 4
      %s2448 = int_to_ptr.vmem [resolvable:$true] %s2447
      %2453 = dma.vmem_to_hbm [thread:$0]  %s2448, 256, %s13, [#allocation4], 128, 128, 8
    $region73: #{tpu_custom_call.1} parent=1 // pred_fallthru
      _
    // Predicated region
    $region74: #{tpu_custom_call.1} parent=1 // pred_check
      _
    $region75: #{tpu_custom_call.1} parent=1 // pred_check_branch
      %2455 = sbr.rel (0) target = $region77
    $region76: #{tpu_custom_call.1} parent=1 // pred_region
      %s2457 = ssub.s32 1024, 1024
      %2458 = vsyncadd [#allocation12], %s2457
      %s2459 = sshll.u32 [#allocation11], 4
      %s2460 = int_to_ptr.vmem [resolvable:$true] %s2459
      %2465 = dma.vmem_to_hbm [thread:$0]  %s2460, 1024, %s14, [#allocation12], 128, 128, 8
    $region77: #{tpu_custom_call.1} parent=1 // pred_fallthru
      _
    // Predicated region
    $region78: #{tpu_custom_call.1} parent=1 // pred_check
      _
    $region79: #{tpu_custom_call.1} parent=1 // pred_check_branch
      %2467 = sbr.rel (0) target = $region81
    $region80: #{tpu_custom_call.1} parent=1 // pred_region
      %2468 = dma.done [#allocation4], 256
    $region81: #{tpu_custom_call.1} parent=1 // pred_fallthru
      _
    // Predicated region
    $region82: #{tpu_custom_call.1} parent=1 // pred_check
      _
    $region83: #{tpu_custom_call.1} parent=1 // pred_check_branch
      %2470 = sbr.rel (0) target = $region85
    $region84: #{tpu_custom_call.1} parent=1 // pred_region
      %2471 = dma.done [#allocation12], 1024
    $region85: #{tpu_custom_call.1} parent=1 // pred_fallthru
      _
    %2472 = vsyncpa [#allocation3], 1
    %2473 = vsyncpa [#allocation6], 1
    %2474 = vsyncpa [#allocation9], 1
    %2475 = vsyncpa [#allocation4], 1
    %2476 = vsyncpa [#allocation12], 1

</llo_original>
